<compile_context>
chip_gen: v5e
topology: v5e:2x2
jax: 0.10.0
libtpu: 0.0.40
codegen_flags: <defaults>
</compile_context>

<pallas_src>
import jax
import jax.numpy as jnp
from jax.experimental import pallas as pl
from jax.experimental.pallas import tpu as pltpu  # noqa: F401  (TPU backend assumed)


# LayerNorm eps: the reference STGCN (hazdzz-style) uses eps=1e-12; switch to
# 1e-5 if the target checkpoint uses PyTorch's nn.LayerNorm default.
_LN_EPS = 1e-12


# ------------------------------ fused kernel --------------------------------

def _stgcn_fused_kernel(
    x_ref,                                        # (B, 8, V*4) bf16, lane = v*4 + c
    w1p_ref, w1q_ref, b1p_ref, b1q_ref,           # temporal GLU 1 (kron-expanded)
    wgc_ref, bgc_ref,                             # collapsed align+Cheb graph conv
    w2p_ref, w2q_ref, b2p_ref, b2q_ref,           # temporal GLU 2 (node-shared raw)
    ln1g_ref, ln1b_ref,                           # ST-block LayerNorm affine (V, 16)
    wop_ref, woq_ref, bop_ref, boq_ref,           # OutputBlock temporal GLU (raw)
    olng_ref, olnb_ref,                           # OutputBlock LayerNorm affine (V, 16)
    wf1_ref, bf1_ref, wf2_ref, bf2_ref,           # fc1 ; fc2 fused with avg-pool
    o_ref,                                        # (B, 128) f32
):
    B, T0, L0 = x_ref.shape
    V = ln1g_ref.shape[0]

    def ln_vc(x, g, b):
        # LayerNorm over the trailing (V, C) dims; two-pass mean/var in f32.
        n = x.shape[-1] * x.shape[-2]
        mean = jnp.sum(jnp.sum(x, axis=-1, keepdims=True),
                       axis=-2, keepdims=True) * (1.0 / n)
        d = x - mean
        var = jnp.sum(jnp.sum(d * d, axis=-1, keepdims=True),
                      axis=-2, keepdims=True) * (1.0 / n)
        return d * jax.lax.rsqrt(var + _LN_EPS) * g + b

    # ----- Temporal GLU 1 : lane-dense layout (rows = b*t, lanes = v*c) ------
    x = x_ref[...]                                # bf16 (B, 8, 64)
    Kt = w1p_ref.shape[0]
    T1 = T0 - Kt + 1                              # 6
    p = b1p_ref[...]
    q = b1q_ref[...]
    for k in range(Kt):                           # Kt accumulated matmuls, no im2col temp
        xk = x[:, k:k + T1, :].reshape(B * T1, L0)
        p = p + jnp.dot(xk, w1p_ref[k], preferred_element_type=jnp.float32)
        q = q + jnp.dot(xk, w1q_ref[k], preferred_element_type=jnp.float32)
    # Align (zero-pad) residual is pre-folded into the last tap of w1p.
    x = p * jax.nn.sigmoid(q)                     # f32 (B*T1, V*16)

    # ----- GraphConvLayer (align + Chebyshev + residual) as ONE matmul + ReLU
    x = jnp.dot(x.astype(jnp.bfloat16), wgc_ref[...],
                preferred_element_type=jnp.float32) + bgc_ref[...]
    x = jnp.maximum(x, 0.0)                       # (B*T1, V*8)

    # ----- Switch to node-major layout: rows = (b, t, v), lanes = channels ---
    C2 = w2p_ref.shape[1]                         # 8
    x = x.reshape(B * T1, V, C2).reshape(B, T1, V, C2)

    # ----- Temporal GLU 2 (raw node-shared weights; Align residual in last tap)
    Kt2, _, C3 = w2p_ref.shape                    # (3, 8, 16)
    T2 = T1 - Kt2 + 1                             # 4
    p = b2p_ref[...]
    q = b2q_ref[...]
    for k in range(Kt2):
        xk = x[:, k:k + T2].reshape(B * T2 * V, C2)
        p = p + jnp.dot(xk, w2p_ref[k], preferred_element_type=jnp.float32)
        q = q + jnp.dot(xk, w2q_ref[k], preferred_element_type=jnp.float32)
    x = (p * jax.nn.sigmoid(q)).reshape(B, T2, V, C3)

    # ----- STConvBlock LayerNorm (dropout = identity at inference) -----------
    x = ln_vc(x, ln1g_ref[...], ln1b_ref[...])

    # ----- OutputBlock temporal GLU (Ko taps, T_out = 1) ----------------------
    Ko, _, C4 = wop_ref.shape                     # (4, 16, 16)
    p = bop_ref[...]
    q = boq_ref[...]
    for k in range(Ko):
        xk = x[:, k].reshape(B * V, C3)
        p = p + jnp.dot(xk, wop_ref[k], preferred_element_type=jnp.float32)
        q = q + jnp.dot(xk, woq_ref[k], preferred_element_type=jnp.float32)
    x = (p * jax.nn.sigmoid(q)).reshape(B, V, C4)

    # ----- OutputBlock LayerNorm ----------------------------------------------
    x = ln_vc(x, olng_ref[...], olnb_ref[...])

    # ----- fc1 + ReLU (dropout identity) --------------------------------------
    h = jnp.dot(x.reshape(B * V, C4), wf1_ref[...],
                preferred_element_type=jnp.float32) + bf1_ref[...]
    h = jnp.maximum(h, 0.0)

    # ----- fc2 (16 -> 1) fused with AdaptiveAvgPool2d((1,1)) ------------------
    h = h.reshape(B, V, -1) * wf2_ref[...]        # wf2 already divided by V
    s = jnp.sum(jnp.sum(h, axis=-1, keepdims=True), axis=-2, keepdims=True)
    pooled = s.reshape(B, 1) + bf2_ref[...]       # (B, 1)
    o_ref[...] = jnp.broadcast_to(pooled, o_ref.shape)   # lane-dense store


# ------------------------------- wrapper -------------------------------------

def stgcn_forward(x_nchw, ops):
    """STGCNChebGraphConv forward, task_type='forecasting'.

    x_nchw: (B, C_in, T=n_his, V) as in the PyTorch module.
    ops:    list of pre-packed kernel operands (see pack_params).
    Returns: (B,) — the global-average-pooled forecast (.view(B))."""
    B, C, T, V = x_nchw.shape
    # Layout plumbing only: NCHW -> (B, T, V*C) lane-dense rows, bf16.
    x = jnp.transpose(x_nchw, (0, 2, 3, 1)).reshape(B, T, V * C).astype(jnp.bfloat16)

    # Single invocation (no grid): whole batch in one shot, every operand is a
    # full-array VMEM block (no double-buffering, no per-core weight duplication).
    out = pl.pallas_call(
        _stgcn_fused_kernel,
        out_shape=jax.ShapeDtypeStruct((B, 128), jnp.float32),
    )(x, *ops)
    return out[:, 0]


# ----------------------- weight packing (done once) --------------------------

def pack_params(p, *, V=16):
    """Pack PyTorch-shaped weights into the operands consumed by the fused
    kernel (run once, outside jit)."""
    f32, bf16 = jnp.float32, jnp.bfloat16
    eye_v = jnp.eye(V, dtype=f32)

    def per_node(w_small):                       # (cin, cout) -> (V*cin, V*cout)
        return jnp.kron(eye_v, w_small.astype(f32))

    def tile_bias(b_vec):                        # (c,) -> (1, V*c), lane = v*c + i
        return jnp.tile(jnp.asarray(b_vec, f32).reshape(-1), V)[None, :]

    # ---- Temporal GLU 1: kron(I_V, .)-expanded; Align residual folded into last tap
    Kt, cin1, two1 = p['tc1_w'].shape
    co1 = two1 // 2
    w1p = jnp.stack([per_node(p['tc1_w'][k, :, :co1]) for k in range(Kt)], axis=0)
    w1q = jnp.stack([per_node(p['tc1_w'][k, :, co1:]) for k in range(Kt)], axis=0)
    w1p = w1p.at[Kt - 1].add(per_node(jnp.eye(cin1, co1, dtype=f32)))  # zero-pad residual
    b1p = tile_bias(p['tc1_b'].reshape(-1)[:co1])
    b1q = tile_bias(p['tc1_b'].reshape(-1)[co1:])

    # ---- GraphConvLayer collapsed to ONE dense matrix:
    #      W_gc = kron(I_V, W_al) @ (sum_k kron(T_k(gso)^T, W_cheb_k) + I)
    gso = p['gso'].astype(f32)
    Ks, c2, _ = p['gc_w'].shape
    cheb = [jnp.eye(V, dtype=f32), gso]
    for _ in range(2, Ks):
        cheb.append(2.0 * gso @ cheb[-1] - cheb[-2])
    M = jnp.eye(V * c2, dtype=f32)               # "+ x_gc_in" residual
    for k in range(Ks):
        M = M + jnp.kron(cheb[k].T, p['gc_w'][k].astype(f32))
    wgc = (per_node(p['al_w']) @ M).astype(bf16)                       # (V*16, V*8)
    bgc = (tile_bias(p['al_b']) @ M + tile_bias(p['gc_b'])).astype(f32)

    # ---- Temporal GLU 2: raw node-shared weights (no kron expansion)
    Kt2, cin2, two2 = p['tc2_w'].shape
    co2 = two2 // 2
    w2p = p['tc2_w'][:, :, :co2].astype(f32)
    w2q = p['tc2_w'][:, :, co2:].astype(f32)
    w2p = w2p.at[Kt2 - 1].add(jnp.eye(cin2, co2, dtype=f32))           # zero-pad residual
    b2p = p['tc2_b'].reshape(-1)[:co2][None, :].astype(f32)
    b2q = p['tc2_b'].reshape(-1)[co2:][None, :].astype(f32)

    ln1g = p['ln1_g'].astype(f32)
    ln1b = p['ln1_b'].astype(f32)

    # ---- OutputBlock temporal GLU: raw node-shared weights
    Ko, cin3, two3 = p['otc_w'].shape
    co3 = two3 // 2
    wop = p['otc_w'][:, :, :co3].astype(f32)
    woq = p['otc_w'][:, :, co3:].astype(f32)
    wop = wop.at[Ko - 1].add(jnp.eye(cin3, co3, dtype=f32))            # identity residual
    bop = p['otc_b'].reshape(-1)[:co3][None, :].astype(f32)
    boq = p['otc_b'].reshape(-1)[co3:][None, :].astype(f32)

    olng = p['oln_g'].astype(f32)
    olnb = p['oln_b'].astype(f32)

    wf1 = p['fc1_w'].astype(f32)
    bf1 = p['fc1_b'].reshape(1, -1).astype(f32)
    # fc2 (16 -> 1) fused with AdaptiveAvgPool2d((1,1)) over (T=1, V): divide by V.
    wf2 = (p['fc2_w'][:, 0] / float(V)).reshape(1, -1).astype(f32)
    bf2 = p['fc2_b'].reshape(1, 1).astype(f32)

    return [w1p.astype(bf16), w1q.astype(bf16), b1p, b1q,
            wgc, bgc,
            w2p, w2q, b2p, b2q,
            ln1g, ln1b,
            wop, woq, bop, boq,
            olng, olnb,
            wf1, bf1, wf2, bf2]


# ----------------------------- parameter init --------------------------------

def init_params(key):
    Kt, Ks, V = 3, 3, 16
    blocks = [[4], [16, 8, 16], [16, 16], [1]]
    n_his = 8
    Ko = n_his - (len(blocks) - 3) * 2 * (Kt - 1)   # = 4

    keys = iter(jax.random.split(key, 32))

    def w(shape, fan_in):
        return jax.random.normal(next(keys), shape, jnp.float32) / jnp.sqrt(float(fan_in))

    def b(shape):
        return 0.05 * jax.random.normal(next(keys), shape, jnp.float32)

    # Graph shift operator stand-in: symmetric, small spectral radius.
    a = jax.random.normal(next(keys), (V, V), jnp.float32)
    gso = (a + a.T) / (2.0 * V)

    return {
        'gso': gso,
        # STConvBlock temporal conv 1 (4 -> 16, GLU => 2*16 output channels)
        'tc1_w': w((Kt, blocks[0][0], 2 * blocks[1][0]), blocks[0][0] * Kt),
        'tc1_b': b((1, 2 * blocks[1][0])),
        # GraphConvLayer align 1x1 conv (16 -> 8)
        'al_w': w((blocks[1][0], blocks[1][1]), blocks[1][0]),
        'al_b': b((1, blocks[1][1])),
        # Chebyshev weights (Ks, C, C) + bias
        'gc_w': w((Ks, blocks[1][1], blocks[1][1]), blocks[1][1] * Ks),
        'gc_b': b((1, blocks[1][1])),
        # STConvBlock temporal conv 2 (8 -> 16)
        'tc2_w': w((Kt, blocks[1][1], 2 * blocks[1][2]), blocks[1][1] * Kt),
        'tc2_b': b((1, 2 * blocks[1][2])),
        # STConvBlock LayerNorm([n_vertex, channels[2]])
        'ln1_g': 1.0 + 0.1 * jax.random.normal(next(keys), (V, blocks[1][2]), jnp.float32),
        'ln1_b': 0.1 * jax.random.normal(next(keys), (V, blocks[1][2]), jnp.float32),
        # OutputBlock temporal conv (kernel Ko, 16 -> 16)
        'otc_w': w((Ko, blocks[1][2], 2 * blocks[2][0]), blocks[1][2] * Ko),
        'otc_b': b((1, 2 * blocks[2][0])),
        # OutputBlock LayerNorm([n_vertex, channels[0]])
        'oln_g': 1.0 + 0.1 * jax.random.normal(next(keys), (V, blocks[2][0]), jnp.float32),
        'oln_b': 0.1 * jax.random.normal(next(keys), (V, blocks[2][0]), jnp.float32),
        # fc1 / fc2 (weights stored (in, out))
        'fc1_w': w((blocks[2][0], blocks[2][1]), blocks[2][0]),
        'fc1_b': b((1, blocks[2][1])),
        'fc2_w': w((blocks[2][1], blocks[3][0]), blocks[2][1]),
        'fc2_b': b((1, blocks[3][0])),
    }


# ---------------------------------- main --------------------------------------

if __name__ == "__main__":
    key = jax.random.PRNGKey(0)
    kx, kp = jax.random.split(key)

    B, C_in, n_his, n_vertex = 2, 4, 8, 16
    x = jax.random.normal(kx, (B, C_in, n_his, n_vertex), jnp.float32)

    params = init_params(kp)
    ops = pack_params(params, V=n_vertex)      # one-time weight packing

    fwd = jax.jit(stgcn_forward)
    out = jax.block_until_ready(fwd(x, ops))
    assert out.shape == (B,) and out.dtype == jnp.float32
    assert bool(jnp.all(jnp.isfinite(out)))
    print("KERNEL_OK")
</pallas_src>

<mosaic_0001>
module attributes {stable_mosaic.version = 11 : i64} {
  func.func @_stgcn_fused_kernel(%arg0: memref<2x8x64xbf16, #tpu.memory_space<vmem>>, %arg1: memref<3x64x256xbf16, #tpu.memory_space<vmem>>, %arg2: memref<3x64x256xbf16, #tpu.memory_space<vmem>>, %arg3: memref<1x256xf32, #tpu.memory_space<vmem>>, %arg4: memref<1x256xf32, #tpu.memory_space<vmem>>, %arg5: memref<256x128xbf16, #tpu.memory_space<vmem>>, %arg6: memref<1x128xf32, #tpu.memory_space<vmem>>, %arg7: memref<3x8x16xf32, #tpu.memory_space<vmem>>, %arg8: memref<3x8x16xf32, #tpu.memory_space<vmem>>, %arg9: memref<1x16xf32, #tpu.memory_space<vmem>>, %arg10: memref<1x16xf32, #tpu.memory_space<vmem>>, %arg11: memref<16x16xf32, #tpu.memory_space<vmem>>, %arg12: memref<16x16xf32, #tpu.memory_space<vmem>>, %arg13: memref<4x16x16xf32, #tpu.memory_space<vmem>>, %arg14: memref<4x16x16xf32, #tpu.memory_space<vmem>>, %arg15: memref<1x16xf32, #tpu.memory_space<vmem>>, %arg16: memref<1x16xf32, #tpu.memory_space<vmem>>, %arg17: memref<16x16xf32, #tpu.memory_space<vmem>>, %arg18: memref<16x16xf32, #tpu.memory_space<vmem>>, %arg19: memref<16x16xf32, #tpu.memory_space<vmem>>, %arg20: memref<1x16xf32, #tpu.memory_space<vmem>>, %arg21: memref<1x16xf32, #tpu.memory_space<vmem>>, %arg22: memref<1x1xf32, #tpu.memory_space<vmem>>, %arg23: memref<2x128xf32, #tpu.memory_space<vmem>>) attributes {dimension_semantics = [], scalar_prefetch = 0 : i64, scratch_operands = 0 : i64, tpu.core_type = #tpu.core_type<tc>} {
    %c0 = arith.constant 0 : index
    %c0_0 = arith.constant 0 : index
    %c0_1 = arith.constant 0 : index
    %0 = vector.load %arg0[%c0, %c0_0, %c0_1] : memref<2x8x64xbf16, #tpu.memory_space<vmem>>, vector<2x8x64xbf16>
    %c0_2 = arith.constant 0 : index
    %c0_3 = arith.constant 0 : index
    %1 = vector.load %arg3[%c0_2, %c0_3] : memref<1x256xf32, #tpu.memory_space<vmem>>, vector<1x256xf32>
    %c0_4 = arith.constant 0 : index
    %c0_5 = arith.constant 0 : index
    %2 = vector.load %arg4[%c0_4, %c0_5] : memref<1x256xf32, #tpu.memory_space<vmem>>, vector<1x256xf32>
    %3 = vector.extract_strided_slice %0 {offsets = [0, 0, 0], sizes = [2, 6, 64], strides = [1, 1, 1]} : vector<2x8x64xbf16> to vector<2x6x64xbf16>
    %4 = vector.shape_cast %3 : vector<2x6x64xbf16> to vector<12x64xbf16>
    %c0_6 = arith.constant 0 : index
    %c0_7 = arith.constant 0 : index
    %c0_8 = arith.constant 0 : index
    %5 = vector.load %arg1[%c0_6, %c0_7, %c0_8] : memref<3x64x256xbf16, #tpu.memory_space<vmem>>, vector<1x64x256xbf16>
    %6 = vector.shape_cast %5 : vector<1x64x256xbf16> to vector<64x256xbf16>
    %cst = arith.constant dense<0.000000e+00> : vector<12x256xf32>
    %7 = tpu.matmul %4, %6, %cst {dimension_numbers = #tpu.dot_dimension_numbers<[1], [0], [0], [1], [0, 0, 1, 1], [], []>} : vector<12x64xbf16>, vector<64x256xbf16>, vector<12x256xf32> -> vector<12x256xf32>
    %8 = vector.broadcast %1 : vector<1x256xf32> to vector<12x256xf32>
    %9 = arith.addf %8, %7 : vector<12x256xf32>
    %c0_9 = arith.constant 0 : index
    %c0_10 = arith.constant 0 : index
    %c0_11 = arith.constant 0 : index
    %10 = vector.load %arg2[%c0_9, %c0_10, %c0_11] : memref<3x64x256xbf16, #tpu.memory_space<vmem>>, vector<1x64x256xbf16>
    %11 = vector.shape_cast %10 : vector<1x64x256xbf16> to vector<64x256xbf16>
    %cst_12 = arith.constant dense<0.000000e+00> : vector<12x256xf32>
    %12 = tpu.matmul %4, %11, %cst_12 {dimension_numbers = #tpu.dot_dimension_numbers<[1], [0], [0], [1], [0, 0, 1, 1], [], []>} : vector<12x64xbf16>, vector<64x256xbf16>, vector<12x256xf32> -> vector<12x256xf32>
    %13 = vector.broadcast %2 : vector<1x256xf32> to vector<12x256xf32>
    %14 = arith.addf %13, %12 : vector<12x256xf32>
    %15 = vector.extract_strided_slice %0 {offsets = [0, 1, 0], sizes = [2, 6, 64], strides = [1, 1, 1]} : vector<2x8x64xbf16> to vector<2x6x64xbf16>
    %16 = vector.shape_cast %15 : vector<2x6x64xbf16> to vector<12x64xbf16>
    %c1 = arith.constant 1 : index
    %c0_13 = arith.constant 0 : index
    %c0_14 = arith.constant 0 : index
    %17 = vector.load %arg1[%c1, %c0_13, %c0_14] : memref<3x64x256xbf16, #tpu.memory_space<vmem>>, vector<1x64x256xbf16>
    %18 = vector.shape_cast %17 : vector<1x64x256xbf16> to vector<64x256xbf16>
    %cst_15 = arith.constant dense<0.000000e+00> : vector<12x256xf32>
    %19 = tpu.matmul %16, %18, %cst_15 {dimension_numbers = #tpu.dot_dimension_numbers<[1], [0], [0], [1], [0, 0, 1, 1], [], []>} : vector<12x64xbf16>, vector<64x256xbf16>, vector<12x256xf32> -> vector<12x256xf32>
    %20 = arith.addf %9, %19 : vector<12x256xf32>
    %c1_16 = arith.constant 1 : index
    %c0_17 = arith.constant 0 : index
    %c0_18 = arith.constant 0 : index
    %21 = vector.load %arg2[%c1_16, %c0_17, %c0_18] : memref<3x64x256xbf16, #tpu.memory_space<vmem>>, vector<1x64x256xbf16>
    %22 = vector.shape_cast %21 : vector<1x64x256xbf16> to vector<64x256xbf16>
    %cst_19 = arith.constant dense<0.000000e+00> : vector<12x256xf32>
    %23 = tpu.matmul %16, %22, %cst_19 {dimension_numbers = #tpu.dot_dimension_numbers<[1], [0], [0], [1], [0, 0, 1, 1], [], []>} : vector<12x64xbf16>, vector<64x256xbf16>, vector<12x256xf32> -> vector<12x256xf32>
    %24 = arith.addf %14, %23 : vector<12x256xf32>
    %25 = vector.extract_strided_slice %0 {offsets = [0, 2, 0], sizes = [2, 6, 64], strides = [1, 1, 1]} : vector<2x8x64xbf16> to vector<2x6x64xbf16>
    %26 = vector.shape_cast %25 : vector<2x6x64xbf16> to vector<12x64xbf16>
    %c2 = arith.constant 2 : index
    %c0_20 = arith.constant 0 : index
    %c0_21 = arith.constant 0 : index
    %27 = vector.load %arg1[%c2, %c0_20, %c0_21] : memref<3x64x256xbf16, #tpu.memory_space<vmem>>, vector<1x64x256xbf16>
    %28 = vector.shape_cast %27 : vector<1x64x256xbf16> to vector<64x256xbf16>
    %cst_22 = arith.constant dense<0.000000e+00> : vector<12x256xf32>
    %29 = tpu.matmul %26, %28, %cst_22 {dimension_numbers = #tpu.dot_dimension_numbers<[1], [0], [0], [1], [0, 0, 1, 1], [], []>} : vector<12x64xbf16>, vector<64x256xbf16>, vector<12x256xf32> -> vector<12x256xf32>
    %30 = arith.addf %20, %29 : vector<12x256xf32>
    %c2_23 = arith.constant 2 : index
    %c0_24 = arith.constant 0 : index
    %c0_25 = arith.constant 0 : index
    %31 = vector.load %arg2[%c2_23, %c0_24, %c0_25] : memref<3x64x256xbf16, #tpu.memory_space<vmem>>, vector<1x64x256xbf16>
    %32 = vector.shape_cast %31 : vector<1x64x256xbf16> to vector<64x256xbf16>
    %cst_26 = arith.constant dense<0.000000e+00> : vector<12x256xf32>
    %33 = tpu.matmul %26, %32, %cst_26 {dimension_numbers = #tpu.dot_dimension_numbers<[1], [0], [0], [1], [0, 0, 1, 1], [], []>} : vector<12x64xbf16>, vector<64x256xbf16>, vector<12x256xf32> -> vector<12x256xf32>
    %34 = arith.addf %24, %33 : vector<12x256xf32>
    %35 = arith.negf %34 : vector<12x256xf32>
    %36 = math.exp %35 : vector<12x256xf32>
    %cst_27 = arith.constant 1.000000e+00 : f32
    %37 = vector.broadcast %cst_27 : f32 to vector<12x256xf32>
    %38 = arith.addf %37, %36 : vector<12x256xf32>
    %39 = arith.divf %37, %38 : vector<12x256xf32>
    %40 = arith.mulf %30, %39 : vector<12x256xf32>
    %41 = arith.truncf %40 : vector<12x256xf32> to vector<12x256xbf16>
    %c0_28 = arith.constant 0 : index
    %c0_29 = arith.constant 0 : index
    %42 = vector.load %arg5[%c0_28, %c0_29] : memref<256x128xbf16, #tpu.memory_space<vmem>>, vector<256x128xbf16>
    %cst_30 = arith.constant dense<0.000000e+00> : vector<12x128xf32>
    %43 = tpu.matmul %41, %42, %cst_30 {dimension_numbers = #tpu.dot_dimension_numbers<[1], [0], [0], [1], [0, 0, 1, 1], [], []>} : vector<12x256xbf16>, vector<256x128xbf16>, vector<12x128xf32> -> vector<12x128xf32>
    %c0_31 = arith.constant 0 : index
    %c0_32 = arith.constant 0 : index
    %44 = vector.load %arg6[%c0_31, %c0_32] : memref<1x128xf32, #tpu.memory_space<vmem>>, vector<1x128xf32>
    %45 = vector.broadcast %44 : vector<1x128xf32> to vector<12x128xf32>
    %46 = arith.addf %43, %45 : vector<12x128xf32>
    %cst_33 = arith.constant 0.000000e+00 : f32
    %47 = vector.broadcast %cst_33 : f32 to vector<12x128xf32>
    %48 = arith.maximumf %46, %47 : vector<12x128xf32>
    %49 = vector.shape_cast %48 : vector<12x128xf32> to vector<12x16x8xf32>
    %50 = vector.shape_cast %49 : vector<12x16x8xf32> to vector<2x6x16x8xf32>
    %c0_34 = arith.constant 0 : index
    %c0_35 = arith.constant 0 : index
    %51 = vector.load %arg9[%c0_34, %c0_35] : memref<1x16xf32, #tpu.memory_space<vmem>>, vector<1x16xf32>
    %c0_36 = arith.constant 0 : index
    %c0_37 = arith.constant 0 : index
    %52 = vector.load %arg10[%c0_36, %c0_37] : memref<1x16xf32, #tpu.memory_space<vmem>>, vector<1x16xf32>
    %53 = vector.extract_strided_slice %50 {offsets = [0, 0, 0, 0], sizes = [2, 4, 16, 8], strides = [1, 1, 1, 1]} : vector<2x6x16x8xf32> to vector<2x4x16x8xf32>
    %54 = vector.shape_cast %53 : vector<2x4x16x8xf32> to vector<128x8xf32>
    %c0_38 = arith.constant 0 : index
    %c0_39 = arith.constant 0 : index
    %c0_40 = arith.constant 0 : index
    %55 = vector.load %arg7[%c0_38, %c0_39, %c0_40] : memref<3x8x16xf32, #tpu.memory_space<vmem>>, vector<1x8x16xf32>
    %56 = vector.shape_cast %55 : vector<1x8x16xf32> to vector<8x16xf32>
    %cst_41 = arith.constant dense<0.000000e+00> : vector<128x16xf32>
    %57 = tpu.matmul %54, %56, %cst_41 {dimension_numbers = #tpu.dot_dimension_numbers<[1], [0], [0], [1], [0, 0, 1, 1], [], []>} : vector<128x8xf32>, vector<8x16xf32>, vector<128x16xf32> -> vector<128x16xf32>
    %58 = vector.broadcast %51 : vector<1x16xf32> to vector<128x16xf32>
    %59 = arith.addf %58, %57 : vector<128x16xf32>
    %c0_42 = arith.constant 0 : index
    %c0_43 = arith.constant 0 : index
    %c0_44 = arith.constant 0 : index
    %60 = vector.load %arg8[%c0_42, %c0_43, %c0_44] : memref<3x8x16xf32, #tpu.memory_space<vmem>>, vector<1x8x16xf32>
    %61 = vector.shape_cast %60 : vector<1x8x16xf32> to vector<8x16xf32>
    %cst_45 = arith.constant dense<0.000000e+00> : vector<128x16xf32>
    %62 = tpu.matmul %54, %61, %cst_45 {dimension_numbers = #tpu.dot_dimension_numbers<[1], [0], [0], [1], [0, 0, 1, 1], [], []>} : vector<128x8xf32>, vector<8x16xf32>, vector<128x16xf32> -> vector<128x16xf32>
    %63 = vector.broadcast %52 : vector<1x16xf32> to vector<128x16xf32>
    %64 = arith.addf %63, %62 : vector<128x16xf32>
    %65 = vector.extract_strided_slice %50 {offsets = [0, 1, 0, 0], sizes = [2, 4, 16, 8], strides = [1, 1, 1, 1]} : vector<2x6x16x8xf32> to vector<2x4x16x8xf32>
    %66 = vector.shape_cast %65 : vector<2x4x16x8xf32> to vector<128x8xf32>
    %c1_46 = arith.constant 1 : index
    %c0_47 = arith.constant 0 : index
    %c0_48 = arith.constant 0 : index
    %67 = vector.load %arg7[%c1_46, %c0_47, %c0_48] : memref<3x8x16xf32, #tpu.memory_space<vmem>>, vector<1x8x16xf32>
    %68 = vector.shape_cast %67 : vector<1x8x16xf32> to vector<8x16xf32>
    %cst_49 = arith.constant dense<0.000000e+00> : vector<128x16xf32>
    %69 = tpu.matmul %66, %68, %cst_49 {dimension_numbers = #tpu.dot_dimension_numbers<[1], [0], [0], [1], [0, 0, 1, 1], [], []>} : vector<128x8xf32>, vector<8x16xf32>, vector<128x16xf32> -> vector<128x16xf32>
    %70 = arith.addf %59, %69 : vector<128x16xf32>
    %c1_50 = arith.constant 1 : index
    %c0_51 = arith.constant 0 : index
    %c0_52 = arith.constant 0 : index
    %71 = vector.load %arg8[%c1_50, %c0_51, %c0_52] : memref<3x8x16xf32, #tpu.memory_space<vmem>>, vector<1x8x16xf32>
    %72 = vector.shape_cast %71 : vector<1x8x16xf32> to vector<8x16xf32>
    %cst_53 = arith.constant dense<0.000000e+00> : vector<128x16xf32>
    %73 = tpu.matmul %66, %72, %cst_53 {dimension_numbers = #tpu.dot_dimension_numbers<[1], [0], [0], [1], [0, 0, 1, 1], [], []>} : vector<128x8xf32>, vector<8x16xf32>, vector<128x16xf32> -> vector<128x16xf32>
    %74 = arith.addf %64, %73 : vector<128x16xf32>
    %75 = vector.extract_strided_slice %50 {offsets = [0, 2, 0, 0], sizes = [2, 4, 16, 8], strides = [1, 1, 1, 1]} : vector<2x6x16x8xf32> to vector<2x4x16x8xf32>
    %76 = vector.shape_cast %75 : vector<2x4x16x8xf32> to vector<128x8xf32>
    %c2_54 = arith.constant 2 : index
    %c0_55 = arith.constant 0 : index
    %c0_56 = arith.constant 0 : index
    %77 = vector.load %arg7[%c2_54, %c0_55, %c0_56] : memref<3x8x16xf32, #tpu.memory_space<vmem>>, vector<1x8x16xf32>
    %78 = vector.shape_cast %77 : vector<1x8x16xf32> to vector<8x16xf32>
    %cst_57 = arith.constant dense<0.000000e+00> : vector<128x16xf32>
    %79 = tpu.matmul %76, %78, %cst_57 {dimension_numbers = #tpu.dot_dimension_numbers<[1], [0], [0], [1], [0, 0, 1, 1], [], []>} : vector<128x8xf32>, vector<8x16xf32>, vector<128x16xf32> -> vector<128x16xf32>
    %80 = arith.addf %70, %79 : vector<128x16xf32>
    %c2_58 = arith.constant 2 : index
    %c0_59 = arith.constant 0 : index
    %c0_60 = arith.constant 0 : index
    %81 = vector.load %arg8[%c2_58, %c0_59, %c0_60] : memref<3x8x16xf32, #tpu.memory_space<vmem>>, vector<1x8x16xf32>
    %82 = vector.shape_cast %81 : vector<1x8x16xf32> to vector<8x16xf32>
    %cst_61 = arith.constant dense<0.000000e+00> : vector<128x16xf32>
    %83 = tpu.matmul %76, %82, %cst_61 {dimension_numbers = #tpu.dot_dimension_numbers<[1], [0], [0], [1], [0, 0, 1, 1], [], []>} : vector<128x8xf32>, vector<8x16xf32>, vector<128x16xf32> -> vector<128x16xf32>
    %84 = arith.addf %74, %83 : vector<128x16xf32>
    %85 = arith.negf %84 : vector<128x16xf32>
    %86 = math.exp %85 : vector<128x16xf32>
    %cst_62 = arith.constant 1.000000e+00 : f32
    %87 = vector.broadcast %cst_62 : f32 to vector<128x16xf32>
    %88 = arith.addf %87, %86 : vector<128x16xf32>
    %89 = arith.divf %87, %88 : vector<128x16xf32>
    %90 = arith.mulf %80, %89 : vector<128x16xf32>
    %91 = vector.shape_cast %90 : vector<128x16xf32> to vector<2x4x16x16xf32>
    %c0_63 = arith.constant 0 : index
    %c0_64 = arith.constant 0 : index
    %92 = vector.load %arg11[%c0_63, %c0_64] : memref<16x16xf32, #tpu.memory_space<vmem>>, vector<16x16xf32>
    %c0_65 = arith.constant 0 : index
    %c0_66 = arith.constant 0 : index
    %93 = vector.load %arg12[%c0_65, %c0_66] : memref<16x16xf32, #tpu.memory_space<vmem>>, vector<16x16xf32>
    %cst_67 = arith.constant dense<0.000000e+00> : vector<2x4x16xf32>
    %94 = vector.multi_reduction <add>, %91, %cst_67 [3] : vector<2x4x16x16xf32> to vector<2x4x16xf32>
    %95 = vector.shape_cast %94 : vector<2x4x16xf32> to vector<2x4x16x1xf32>
    %cst_68 = arith.constant dense<0.000000e+00> : vector<2x4x1xf32>
    %96 = vector.multi_reduction <add>, %95, %cst_68 [2] : vector<2x4x16x1xf32> to vector<2x4x1xf32>
    %97 = vector.shape_cast %96 : vector<2x4x1xf32> to vector<2x4x1x1xf32>
    %cst_69 = arith.constant 3.906250e-03 : f32
    %98 = vector.broadcast %cst_69 : f32 to vector<2x4x1x1xf32>
    %99 = arith.mulf %97, %98 : vector<2x4x1x1xf32>
    %100 = vector.broadcast %99 : vector<2x4x1x1xf32> to vector<2x4x16x16xf32>
    %101 = arith.subf %91, %100 : vector<2x4x16x16xf32>
    %102 = arith.mulf %101, %101 : vector<2x4x16x16xf32>
    %cst_70 = arith.constant dense<0.000000e+00> : vector<2x4x16xf32>
    %103 = vector.multi_reduction <add>, %102, %cst_70 [3] : vector<2x4x16x16xf32> to vector<2x4x16xf32>
    %104 = vector.shape_cast %103 : vector<2x4x16xf32> to vector<2x4x16x1xf32>
    %cst_71 = arith.constant dense<0.000000e+00> : vector<2x4x1xf32>
    %105 = vector.multi_reduction <add>, %104, %cst_71 [2] : vector<2x4x16x1xf32> to vector<2x4x1xf32>
    %106 = vector.shape_cast %105 : vector<2x4x1xf32> to vector<2x4x1x1xf32>
    %cst_72 = arith.constant 3.906250e-03 : f32
    %107 = vector.broadcast %cst_72 : f32 to vector<2x4x1x1xf32>
    %108 = arith.mulf %106, %107 : vector<2x4x1x1xf32>
    %cst_73 = arith.constant 9.99999996E-13 : f32
    %109 = vector.broadcast %cst_73 : f32 to vector<2x4x1x1xf32>
    %110 = arith.addf %108, %109 : vector<2x4x1x1xf32>
    %111 = math.rsqrt %110 : vector<2x4x1x1xf32>
    %112 = vector.broadcast %111 : vector<2x4x1x1xf32> to vector<2x4x16x16xf32>
    %113 = arith.mulf %101, %112 : vector<2x4x16x16xf32>
    %114 = vector.shape_cast %92 : vector<16x16xf32> to vector<1x1x16x16xf32>
    %115 = vector.broadcast %114 : vector<1x1x16x16xf32> to vector<2x4x16x16xf32>
    %116 = arith.mulf %113, %115 : vector<2x4x16x16xf32>
    %117 = vector.shape_cast %93 : vector<16x16xf32> to vector<1x1x16x16xf32>
    %118 = vector.broadcast %117 : vector<1x1x16x16xf32> to vector<2x4x16x16xf32>
    %119 = arith.addf %116, %118 : vector<2x4x16x16xf32>
    %c0_74 = arith.constant 0 : index
    %c0_75 = arith.constant 0 : index
    %120 = vector.load %arg15[%c0_74, %c0_75] : memref<1x16xf32, #tpu.memory_space<vmem>>, vector<1x16xf32>
    %c0_76 = arith.constant 0 : index
    %c0_77 = arith.constant 0 : index
    %121 = vector.load %arg16[%c0_76, %c0_77] : memref<1x16xf32, #tpu.memory_space<vmem>>, vector<1x16xf32>
    %122 = vector.extract_strided_slice %119 {offsets = [0, 0, 0, 0], sizes = [2, 1, 16, 16], strides = [1, 1, 1, 1]} : vector<2x4x16x16xf32> to vector<2x1x16x16xf32>
    %123 = vector.shape_cast %122 : vector<2x1x16x16xf32> to vector<2x16x16xf32>
    %124 = vector.shape_cast %123 : vector<2x16x16xf32> to vector<32x16xf32>
    %c0_78 = arith.constant 0 : index
    %c0_79 = arith.constant 0 : index
    %c0_80 = arith.constant 0 : index
    %125 = vector.load %arg13[%c0_78, %c0_79, %c0_80] : memref<4x16x16xf32, #tpu.memory_space<vmem>>, vector<1x16x16xf32>
    %126 = vector.shape_cast %125 : vector<1x16x16xf32> to vector<16x16xf32>
    %cst_81 = arith.constant dense<0.000000e+00> : vector<32x16xf32>
    %127 = tpu.matmul %124, %126, %cst_81 {dimension_numbers = #tpu.dot_dimension_numbers<[1], [0], [0], [1], [0, 0, 1, 1], [], []>} : vector<32x16xf32>, vector<16x16xf32>, vector<32x16xf32> -> vector<32x16xf32>
    %128 = vector.broadcast %120 : vector<1x16xf32> to vector<32x16xf32>
    %129 = arith.addf %128, %127 : vector<32x16xf32>
    %c0_82 = arith.constant 0 : index
    %c0_83 = arith.constant 0 : index
    %c0_84 = arith.constant 0 : index
    %130 = vector.load %arg14[%c0_82, %c0_83, %c0_84] : memref<4x16x16xf32, #tpu.memory_space<vmem>>, vector<1x16x16xf32>
    %131 = vector.shape_cast %130 : vector<1x16x16xf32> to vector<16x16xf32>
    %cst_85 = arith.constant dense<0.000000e+00> : vector<32x16xf32>
    %132 = tpu.matmul %124, %131, %cst_85 {dimension_numbers = #tpu.dot_dimension_numbers<[1], [0], [0], [1], [0, 0, 1, 1], [], []>} : vector<32x16xf32>, vector<16x16xf32>, vector<32x16xf32> -> vector<32x16xf32>
    %133 = vector.broadcast %121 : vector<1x16xf32> to vector<32x16xf32>
    %134 = arith.addf %133, %132 : vector<32x16xf32>
    %135 = vector.extract_strided_slice %119 {offsets = [0, 1, 0, 0], sizes = [2, 1, 16, 16], strides = [1, 1, 1, 1]} : vector<2x4x16x16xf32> to vector<2x1x16x16xf32>
    %136 = vector.shape_cast %135 : vector<2x1x16x16xf32> to vector<2x16x16xf32>
    %137 = vector.shape_cast %136 : vector<2x16x16xf32> to vector<32x16xf32>
    %c1_86 = arith.constant 1 : index
    %c0_87 = arith.constant 0 : index
    %c0_88 = arith.constant 0 : index
    %138 = vector.load %arg13[%c1_86, %c0_87, %c0_88] : memref<4x16x16xf32, #tpu.memory_space<vmem>>, vector<1x16x16xf32>
    %139 = vector.shape_cast %138 : vector<1x16x16xf32> to vector<16x16xf32>
    %cst_89 = arith.constant dense<0.000000e+00> : vector<32x16xf32>
    %140 = tpu.matmul %137, %139, %cst_89 {dimension_numbers = #tpu.dot_dimension_numbers<[1], [0], [0], [1], [0, 0, 1, 1], [], []>} : vector<32x16xf32>, vector<16x16xf32>, vector<32x16xf32> -> vector<32x16xf32>
    %141 = arith.addf %129, %140 : vector<32x16xf32>
    %c1_90 = arith.constant 1 : index
    %c0_91 = arith.constant 0 : index
    %c0_92 = arith.constant 0 : index
    %142 = vector.load %arg14[%c1_90, %c0_91, %c0_92] : memref<4x16x16xf32, #tpu.memory_space<vmem>>, vector<1x16x16xf32>
    %143 = vector.shape_cast %142 : vector<1x16x16xf32> to vector<16x16xf32>
    %cst_93 = arith.constant dense<0.000000e+00> : vector<32x16xf32>
    %144 = tpu.matmul %137, %143, %cst_93 {dimension_numbers = #tpu.dot_dimension_numbers<[1], [0], [0], [1], [0, 0, 1, 1], [], []>} : vector<32x16xf32>, vector<16x16xf32>, vector<32x16xf32> -> vector<32x16xf32>
    %145 = arith.addf %134, %144 : vector<32x16xf32>
    %146 = vector.extract_strided_slice %119 {offsets = [0, 2, 0, 0], sizes = [2, 1, 16, 16], strides = [1, 1, 1, 1]} : vector<2x4x16x16xf32> to vector<2x1x16x16xf32>
    %147 = vector.shape_cast %146 : vector<2x1x16x16xf32> to vector<2x16x16xf32>
    %148 = vector.shape_cast %147 : vector<2x16x16xf32> to vector<32x16xf32>
    %c2_94 = arith.constant 2 : index
    %c0_95 = arith.constant 0 : index
    %c0_96 = arith.constant 0 : index
    %149 = vector.load %arg13[%c2_94, %c0_95, %c0_96] : memref<4x16x16xf32, #tpu.memory_space<vmem>>, vector<1x16x16xf32>
    %150 = vector.shape_cast %149 : vector<1x16x16xf32> to vector<16x16xf32>
    %cst_97 = arith.constant dense<0.000000e+00> : vector<32x16xf32>
    %151 = tpu.matmul %148, %150, %cst_97 {dimension_numbers = #tpu.dot_dimension_numbers<[1], [0], [0], [1], [0, 0, 1, 1], [], []>} : vector<32x16xf32>, vector<16x16xf32>, vector<32x16xf32> -> vector<32x16xf32>
    %152 = arith.addf %141, %151 : vector<32x16xf32>
    %c2_98 = arith.constant 2 : index
    %c0_99 = arith.constant 0 : index
    %c0_100 = arith.constant 0 : index
    %153 = vector.load %arg14[%c2_98, %c0_99, %c0_100] : memref<4x16x16xf32, #tpu.memory_space<vmem>>, vector<1x16x16xf32>
    %154 = vector.shape_cast %153 : vector<1x16x16xf32> to vector<16x16xf32>
    %cst_101 = arith.constant dense<0.000000e+00> : vector<32x16xf32>
    %155 = tpu.matmul %148, %154, %cst_101 {dimension_numbers = #tpu.dot_dimension_numbers<[1], [0], [0], [1], [0, 0, 1, 1], [], []>} : vector<32x16xf32>, vector<16x16xf32>, vector<32x16xf32> -> vector<32x16xf32>
    %156 = arith.addf %145, %155 : vector<32x16xf32>
    %157 = vector.extract_strided_slice %119 {offsets = [0, 3, 0, 0], sizes = [2, 1, 16, 16], strides = [1, 1, 1, 1]} : vector<2x4x16x16xf32> to vector<2x1x16x16xf32>
    %158 = vector.shape_cast %157 : vector<2x1x16x16xf32> to vector<2x16x16xf32>
    %159 = vector.shape_cast %158 : vector<2x16x16xf32> to vector<32x16xf32>
    %c3 = arith.constant 3 : index
    %c0_102 = arith.constant 0 : index
    %c0_103 = arith.constant 0 : index
    %160 = vector.load %arg13[%c3, %c0_102, %c0_103] : memref<4x16x16xf32, #tpu.memory_space<vmem>>, vector<1x16x16xf32>
    %161 = vector.shape_cast %160 : vector<1x16x16xf32> to vector<16x16xf32>
    %cst_104 = arith.constant dense<0.000000e+00> : vector<32x16xf32>
    %162 = tpu.matmul %159, %161, %cst_104 {dimension_numbers = #tpu.dot_dimension_numbers<[1], [0], [0], [1], [0, 0, 1, 1], [], []>} : vector<32x16xf32>, vector<16x16xf32>, vector<32x16xf32> -> vector<32x16xf32>
    %163 = arith.addf %152, %162 : vector<32x16xf32>
    %c3_105 = arith.constant 3 : index
    %c0_106 = arith.constant 0 : index
    %c0_107 = arith.constant 0 : index
    %164 = vector.load %arg14[%c3_105, %c0_106, %c0_107] : memref<4x16x16xf32, #tpu.memory_space<vmem>>, vector<1x16x16xf32>
    %165 = vector.shape_cast %164 : vector<1x16x16xf32> to vector<16x16xf32>
    %cst_108 = arith.constant dense<0.000000e+00> : vector<32x16xf32>
    %166 = tpu.matmul %159, %165, %cst_108 {dimension_numbers = #tpu.dot_dimension_numbers<[1], [0], [0], [1], [0, 0, 1, 1], [], []>} : vector<32x16xf32>, vector<16x16xf32>, vector<32x16xf32> -> vector<32x16xf32>
    %167 = arith.addf %156, %166 : vector<32x16xf32>
    %168 = arith.negf %167 : vector<32x16xf32>
    %169 = math.exp %168 : vector<32x16xf32>
    %cst_109 = arith.constant 1.000000e+00 : f32
    %170 = vector.broadcast %cst_109 : f32 to vector<32x16xf32>
    %171 = arith.addf %170, %169 : vector<32x16xf32>
    %172 = arith.divf %170, %171 : vector<32x16xf32>
    %173 = arith.mulf %163, %172 : vector<32x16xf32>
    %174 = vector.shape_cast %173 : vector<32x16xf32> to vector<2x16x16xf32>
    %c0_110 = arith.constant 0 : index
    %c0_111 = arith.constant 0 : index
    %175 = vector.load %arg17[%c0_110, %c0_111] : memref<16x16xf32, #tpu.memory_space<vmem>>, vector<16x16xf32>
    %c0_112 = arith.constant 0 : index
    %c0_113 = arith.constant 0 : index
    %176 = vector.load %arg18[%c0_112, %c0_113] : memref<16x16xf32, #tpu.memory_space<vmem>>, vector<16x16xf32>
    %cst_114 = arith.constant dense<0.000000e+00> : vector<2x16xf32>
    %177 = vector.multi_reduction <add>, %174, %cst_114 [2] : vector<2x16x16xf32> to vector<2x16xf32>
    %178 = vector.shape_cast %177 : vector<2x16xf32> to vector<2x16x1xf32>
    %cst_115 = arith.constant dense<0.000000e+00> : vector<2x1xf32>
    %179 = vector.multi_reduction <add>, %178, %cst_115 [1] : vector<2x16x1xf32> to vector<2x1xf32>
    %180 = vector.shape_cast %179 : vector<2x1xf32> to vector<2x1x1xf32>
    %cst_116 = arith.constant 3.906250e-03 : f32
    %181 = vector.broadcast %cst_116 : f32 to vector<2x1x1xf32>
    %182 = arith.mulf %180, %181 : vector<2x1x1xf32>
    %183 = vector.broadcast %182 : vector<2x1x1xf32> to vector<2x16x16xf32>
    %184 = arith.subf %174, %183 : vector<2x16x16xf32>
    %185 = arith.mulf %184, %184 : vector<2x16x16xf32>
    %cst_117 = arith.constant dense<0.000000e+00> : vector<2x16xf32>
    %186 = vector.multi_reduction <add>, %185, %cst_117 [2] : vector<2x16x16xf32> to vector<2x16xf32>
    %187 = vector.shape_cast %186 : vector<2x16xf32> to vector<2x16x1xf32>
    %cst_118 = arith.constant dense<0.000000e+00> : vector<2x1xf32>
    %188 = vector.multi_reduction <add>, %187, %cst_118 [1] : vector<2x16x1xf32> to vector<2x1xf32>
    %189 = vector.shape_cast %188 : vector<2x1xf32> to vector<2x1x1xf32>
    %cst_119 = arith.constant 3.906250e-03 : f32
    %190 = vector.broadcast %cst_119 : f32 to vector<2x1x1xf32>
    %191 = arith.mulf %189, %190 : vector<2x1x1xf32>
    %cst_120 = arith.constant 9.99999996E-13 : f32
    %192 = vector.broadcast %cst_120 : f32 to vector<2x1x1xf32>
    %193 = arith.addf %191, %192 : vector<2x1x1xf32>
    %194 = math.rsqrt %193 : vector<2x1x1xf32>
    %195 = vector.broadcast %194 : vector<2x1x1xf32> to vector<2x16x16xf32>
    %196 = arith.mulf %184, %195 : vector<2x16x16xf32>
    %197 = vector.shape_cast %175 : vector<16x16xf32> to vector<1x16x16xf32>
    %198 = vector.broadcast %197 : vector<1x16x16xf32> to vector<2x16x16xf32>
    %199 = arith.mulf %196, %198 : vector<2x16x16xf32>
    %200 = vector.shape_cast %176 : vector<16x16xf32> to vector<1x16x16xf32>
    %201 = vector.broadcast %200 : vector<1x16x16xf32> to vector<2x16x16xf32>
    %202 = arith.addf %199, %201 : vector<2x16x16xf32>
    %203 = vector.shape_cast %202 : vector<2x16x16xf32> to vector<32x16xf32>
    %c0_121 = arith.constant 0 : index
    %c0_122 = arith.constant 0 : index
    %204 = vector.load %arg19[%c0_121, %c0_122] : memref<16x16xf32, #tpu.memory_space<vmem>>, vector<16x16xf32>
    %cst_123 = arith.constant dense<0.000000e+00> : vector<32x16xf32>
    %205 = tpu.matmul %203, %204, %cst_123 {dimension_numbers = #tpu.dot_dimension_numbers<[1], [0], [0], [1], [0, 0, 1, 1], [], []>} : vector<32x16xf32>, vector<16x16xf32>, vector<32x16xf32> -> vector<32x16xf32>
    %c0_124 = arith.constant 0 : index
    %c0_125 = arith.constant 0 : index
    %206 = vector.load %arg20[%c0_124, %c0_125] : memref<1x16xf32, #tpu.memory_space<vmem>>, vector<1x16xf32>
    %207 = vector.broadcast %206 : vector<1x16xf32> to vector<32x16xf32>
    %208 = arith.addf %205, %207 : vector<32x16xf32>
    %cst_126 = arith.constant 0.000000e+00 : f32
    %209 = vector.broadcast %cst_126 : f32 to vector<32x16xf32>
    %210 = arith.maximumf %208, %209 : vector<32x16xf32>
    %211 = vector.shape_cast %210 : vector<32x16xf32> to vector<2x16x16xf32>
    %c0_127 = arith.constant 0 : index
    %c0_128 = arith.constant 0 : index
    %212 = vector.load %arg21[%c0_127, %c0_128] : memref<1x16xf32, #tpu.memory_space<vmem>>, vector<1x16xf32>
    %213 = vector.shape_cast %212 : vector<1x16xf32> to vector<1x1x16xf32>
    %214 = vector.broadcast %213 : vector<1x1x16xf32> to vector<2x16x16xf32>
    %215 = arith.mulf %211, %214 : vector<2x16x16xf32>
    %cst_129 = arith.constant dense<0.000000e+00> : vector<2x16xf32>
    %216 = vector.multi_reduction <add>, %215, %cst_129 [2] : vector<2x16x16xf32> to vector<2x16xf32>
    %217 = vector.shape_cast %216 : vector<2x16xf32> to vector<2x16x1xf32>
    %cst_130 = arith.constant dense<0.000000e+00> : vector<2x1xf32>
    %218 = vector.multi_reduction <add>, %217, %cst_130 [1] : vector<2x16x1xf32> to vector<2x1xf32>
    %219 = vector.shape_cast %218 : vector<2x1xf32> to vector<2x1x1xf32>
    %220 = vector.shape_cast %219 : vector<2x1x1xf32> to vector<2x1xf32>
    %c0_131 = arith.constant 0 : index
    %c0_132 = arith.constant 0 : index
    %221 = vector.load %arg22[%c0_131, %c0_132] : memref<1x1xf32, #tpu.memory_space<vmem>>, vector<1x1xf32>
    %222 = vector.broadcast %221 : vector<1x1xf32> to vector<2x1xf32>
    %223 = arith.addf %220, %222 : vector<2x1xf32>
    %224 = vector.shape_cast %223 : vector<2x1xf32> to vector<2x1xf32>
    %225 = vector.broadcast %224 : vector<2x1xf32> to vector<2x128xf32>
    %c0_133 = arith.constant 0 : index
    %c0_134 = arith.constant 0 : index
    %226 = vector.load %arg23[%c0_133, %c0_134] : memref<2x128xf32, #tpu.memory_space<vmem>>, vector<2x128xf32>
    tpu.vector_store %arg23[%c0_133, %c0_134], %225 {strides = array<i32>} : memref<2x128xf32, #tpu.memory_space<vmem>>, vector<2x128xf32>,
    return
  }
}

</mosaic_0001>

<llo_original>
// kernel: stgcn_forward.1
$region0: #{stgcn_forward.1}
  #allocation0 [shape = 'u32[]', space=smem, size = 0x4, offset = 0x4, fixed_abs, tag = 'smem constant byte address 0x4 - core index']
  #allocation1 [shape = 'u32[72,128]{1,0:T(1,128)}', space=vmem, size = 0x9000, scoped, tag = 'internal scratch']
  #allocation2 [shape = 'f32[1,1]{1,0:T(1,128)S(1)}', space=vmem, size = 0x200, scoped, tag = 'scoped memory for stgcn_forward.1']
  %s0 = inlined_call_operand.vmem [shape: bf16[2,8,64], index: 0, kind: input, shape index: {}]
  %s1 = inlined_call_operand.vmem [shape: bf16[3,64,256], index: 1, kind: input, shape index: {}]
  %s2 = inlined_call_operand.hbm [shape: bf16[3,64,256], index: 2, kind: input, shape index: {}]
  %s3 = inlined_call_operand.vmem [shape: f32[1,256], index: 3, kind: input, shape index: {}]
  %s4 = inlined_call_operand.vmem [shape: f32[1,256], index: 4, kind: input, shape index: {}]
  %s5 = inlined_call_operand.hbm [shape: bf16[256,128], index: 5, kind: input, shape index: {}]
  %s6 = inlined_call_operand.vmem [shape: f32[1,128], index: 6, kind: input, shape index: {}]
  %s7 = inlined_call_operand.vmem [shape: f32[3,8,16], index: 7, kind: input, shape index: {}]
  %s8 = inlined_call_operand.hbm [shape: f32[3,8,16], index: 8, kind: input, shape index: {}]
  %s9 = inlined_call_operand.vmem [shape: f32[1,16], index: 9, kind: input, shape index: {}]
  %s10 = inlined_call_operand.hbm [shape: f32[1,16], index: 10, kind: input, shape index: {}]
  %s11 = inlined_call_operand.hbm [shape: f32[16,16], index: 11, kind: input, shape index: {}]
  %s12 = inlined_call_operand.hbm [shape: f32[16,16], index: 12, kind: input, shape index: {}]
  %s13 = inlined_call_operand.vmem [shape: f32[4,16,16], index: 13, kind: input, shape index: {}]
  %s14 = inlined_call_operand.hbm [shape: f32[4,16,16], index: 14, kind: input, shape index: {}]
  %s15 = inlined_call_operand.hbm [shape: f32[1,16], index: 15, kind: input, shape index: {}]
  %s16 = inlined_call_operand.hbm [shape: f32[1,16], index: 16, kind: input, shape index: {}]
  %s17 = inlined_call_operand.hbm [shape: f32[16,16], index: 17, kind: input, shape index: {}]
  %s18 = inlined_call_operand.hbm [shape: f32[16,16], index: 18, kind: input, shape index: {}]
  %s19 = inlined_call_operand.hbm [shape: f32[16,16], index: 19, kind: input, shape index: {}]
  %s20 = inlined_call_operand.hbm [shape: f32[1,16], index: 20, kind: input, shape index: {}]
  %s21 = inlined_call_operand.hbm [shape: f32[1,16], index: 21, kind: input, shape index: {}]
  %s22 = inlined_call_operand.<no memory space> [shape: f32[1,1], index: 22, kind: input, shape index: {}]
  %s23 = inlined_call_operand.vmem [shape: f32[2,128], index: 23, kind: output, shape index: {}]
  %s24 = sld [smem:[#allocation0]]
  $region158: #{stgcn_forward.1} parent=0
    _
  %s26 = ssub.s32 1, %s24
  %s27 = scalar_select 0, %s26, %s24
  %v28 = vstv %s22
  %29 = vst [vmem:[#allocation2] sm:$0x1] %v28
  $region1: #{stgcn_forward.1} parent=0
    #allocation3 [shape = 'u8[98304]{0}', space=vmem, size = 0x18000, scoped, tag = 'input window, operand 2, single buffered']
    #allocation4 [shape = 's32[1]{0}', space=sflag, size = 0x4, scoped, tag = 'scoped memory for stgcn_forward.1']
    #allocation5 [shape = 'u8[65536]{0}', space=vmem, size = 0x10000, scoped, tag = 'input window, operand 5, single buffered']
    #allocation6 [shape = 's32[1]{0}', space=sflag, size = 0x4, scoped, tag = 'scoped memory for stgcn_forward.1']
    #allocation7 [shape = 'u8[12288]{0}', space=vmem, size = 0x3000, scoped, tag = 'input window, operand 8, single buffered']
    #allocation8 [shape = 'u8[512]{0}', space=vmem, size = 0x400, scoped, tag = 'input window, operand 10, single buffered']
    #allocation9 [shape = 's32[1]{0}', space=sflag, size = 0x4, scoped, tag = 'scoped memory for stgcn_forward.1']
    #allocation10 [shape = 'u8[8192]{0}', space=vmem, size = 0x2000, scoped, tag = 'input window, operand 11, single buffered']
    #allocation11 [shape = 'u8[8192]{0}', space=vmem, size = 0x2000, scoped, tag = 'input window, operand 12, single buffered']
    #allocation12 [shape = 's32[1]{0}', space=sflag, size = 0x4, scoped, tag = 'scoped memory for stgcn_forward.1']
    #allocation13 [shape = 'u8[32768]{0}', space=vmem, size = 0x8000, scoped, tag = 'input window, operand 14, single buffered']
    #allocation14 [shape = 'u8[512]{0}', space=vmem, size = 0x400, scoped, tag = 'input window, operand 15, single buffered']
    #allocation15 [shape = 's32[1]{0}', space=sflag, size = 0x4, scoped, tag = 'scoped memory for stgcn_forward.1']
    #allocation16 [shape = 'u8[512]{0}', space=vmem, size = 0x400, scoped, tag = 'input window, operand 16, single buffered']
    #allocation17 [shape = 'u8[8192]{0}', space=vmem, size = 0x2000, scoped, tag = 'input window, operand 17, single buffered']
    #allocation18 [shape = 's32[1]{0}', space=sflag, size = 0x4, scoped, tag = 'scoped memory for stgcn_forward.1']
    #allocation19 [shape = 'u8[8192]{0}', space=vmem, size = 0x2000, scoped, tag = 'input window, operand 18, single buffered']
    #allocation20 [shape = 'u8[8192]{0}', space=vmem, size = 0x2000, scoped, tag = 'input window, operand 19, single buffered']
    #allocation21 [shape = 's32[1]{0}', space=sflag, size = 0x4, scoped, tag = 'scoped memory for stgcn_forward.1']
    #allocation22 [shape = 'u8[512]{0}', space=vmem, size = 0x400, scoped, tag = 'input window, operand 20, single buffered']
    #allocation23 [shape = 'u8[512]{0}', space=vmem, size = 0x400, scoped, tag = 'input window, operand 21, single buffered']
    #allocation24 [shape = 's32[1]{0}', space=sflag, size = 0x4, scoped, tag = 'scoped memory for stgcn_forward.1']
    %30 = vsyncpa [#allocation4], 0
    %31 = vsyncpa [#allocation6], 0
    %32 = vsyncpa [#allocation9], 0
    %33 = vsyncpa [#allocation12], 0
    %34 = vsyncpa [#allocation15], 0
    %35 = vsyncpa [#allocation18], 0
    %36 = vsyncpa [#allocation21], 0
    %37 = vsyncpa [#allocation24], 0
    // Predicated region
    $region2: #{stgcn_forward.1} parent=1 // pred_check
      _
    $region3: #{stgcn_forward.1} parent=1 // pred_check_branch
      %39 = sbr.rel (0) target = $region5
    $region4: #{stgcn_forward.1} parent=1 // pred_region
      _
    $region5: #{stgcn_forward.1} parent=1 // pred_fallthru
      _
    // Predicated region
    $region6: #{stgcn_forward.1} parent=1 // pred_check
      _
    $region7: #{stgcn_forward.1} parent=1 // pred_check_branch
      %41 = sbr.rel (0) target = $region9
    $region8: #{stgcn_forward.1} parent=1 // pred_region
      _
    $region9: #{stgcn_forward.1} parent=1 // pred_fallthru
      _
    // Predicated region
    $region10: #{stgcn_forward.1} parent=1 // pred_check
      _
    $region11: #{stgcn_forward.1} parent=1 // pred_check_branch
      %43 = sbr.rel (0) target = $region13
    $region12: #{stgcn_forward.1} parent=1 // pred_region
      %45 = vsyncadd [#allocation4], 0
      %s46 = sshll.u32 %s2, 4
      %s47 = int_to_ptr.hbm [resolvable:$true] %s46
      %s48 = sshll.u32 [#allocation3], 4
      %s49 = int_to_ptr.vmem [resolvable:$true] %s48
      %54 = dma.hbm_to_vmem [thread:$0]  %s47, 3072, %s49, [#allocation4], 128, 128, 8
    $region13: #{stgcn_forward.1} parent=1 // pred_fallthru
      _
    // Predicated region
    $region14: #{stgcn_forward.1} parent=1 // pred_check
      _
    $region15: #{stgcn_forward.1} parent=1 // pred_check_branch
      %56 = sbr.rel (0) target = $region17
    $region16: #{stgcn_forward.1} parent=1 // pred_region
      _
    $region17: #{stgcn_forward.1} parent=1 // pred_fallthru
      _
    // Predicated region
    $region18: #{stgcn_forward.1} parent=1 // pred_check
      _
    $region19: #{stgcn_forward.1} parent=1 // pred_check_branch
      %58 = sbr.rel (0) target = $region21
    $region20: #{stgcn_forward.1} parent=1 // pred_region
      _
    $region21: #{stgcn_forward.1} parent=1 // pred_fallthru
      _
    // Predicated region
    $region22: #{stgcn_forward.1} parent=1 // pred_check
      _
    $region23: #{stgcn_forward.1} parent=1 // pred_check_branch
      %60 = sbr.rel (0) target = $region25
    $region24: #{stgcn_forward.1} parent=1 // pred_region
      %62 = vsyncadd [#allocation6], 0
      %s63 = sshll.u32 %s5, 4
      %s64 = int_to_ptr.hbm [resolvable:$true] %s63
      %s65 = sshll.u32 [#allocation5], 4
      %s66 = int_to_ptr.vmem [resolvable:$true] %s65
      %71 = dma.hbm_to_vmem [thread:$0]  %s64, 2048, %s66, [#allocation6], 64, 64, 4
    $region25: #{stgcn_forward.1} parent=1 // pred_fallthru
      _
    // Predicated region
    $region26: #{stgcn_forward.1} parent=1 // pred_check
      _
    $region27: #{stgcn_forward.1} parent=1 // pred_check_branch
      %73 = sbr.rel (0) target = $region29
    $region28: #{stgcn_forward.1} parent=1 // pred_region
      _
    $region29: #{stgcn_forward.1} parent=1 // pred_fallthru
      _
    // Predicated region
    $region30: #{stgcn_forward.1} parent=1 // pred_check
      _
    $region31: #{stgcn_forward.1} parent=1 // pred_check_branch
      %75 = sbr.rel (0) target = $region33
    $region32: #{stgcn_forward.1} parent=1 // pred_region
      _
    $region33: #{stgcn_forward.1} parent=1 // pred_fallthru
      _
    // Predicated region
    $region34: #{stgcn_forward.1} parent=1 // pred_check
      _
    $region35: #{stgcn_forward.1} parent=1 // pred_check_branch
      %77 = sbr.rel (0) target = $region37
    $region36: #{stgcn_forward.1} parent=1 // pred_region
      %79 = vsyncadd [#allocation6], 0
      %s80 = sshll.u32 %s8, 4
      %s81 = int_to_ptr.hbm [resolvable:$true] %s80
      %s82 = sshll.u32 [#allocation7], 4
      %s83 = int_to_ptr.vmem [resolvable:$true] %s82
      %88 = dma.hbm_to_vmem [thread:$0]  %s81, 384, %s83, [#allocation6], 128, 128, 8
    $region37: #{stgcn_forward.1} parent=1 // pred_fallthru
      _
    // Predicated region
    $region38: #{stgcn_forward.1} parent=1 // pred_check
      _
    $region39: #{stgcn_forward.1} parent=1 // pred_check_branch
      %90 = sbr.rel (0) target = $region41
    $region40: #{stgcn_forward.1} parent=1 // pred_region
      _
    $region41: #{stgcn_forward.1} parent=1 // pred_fallthru
      _
    // Predicated region
    $region42: #{stgcn_forward.1} parent=1 // pred_check
      _
    $region43: #{stgcn_forward.1} parent=1 // pred_check_branch
      %92 = sbr.rel (0) target = $region45
    $region44: #{stgcn_forward.1} parent=1 // pred_region
      %94 = vsyncadd [#allocation9], 0
      %s96 = sshll.u32 %s10, 4
      %s97 = int_to_ptr.hbm [resolvable:$true] %s96
      %s98 = sshll.u32 [#allocation8], 4
      %s99 = int_to_ptr.vmem [resolvable:$true] %s98
      %101 = dma.hbm_to_vmem [thread:$0]  %s97, 16, %s99, [#allocation9]
    $region45: #{stgcn_forward.1} parent=1 // pred_fallthru
      _
    // Predicated region
    $region46: #{stgcn_forward.1} parent=1 // pred_check
      _
    $region47: #{stgcn_forward.1} parent=1 // pred_check_branch
      %103 = sbr.rel (0) target = $region49
    $region48: #{stgcn_forward.1} parent=1 // pred_region
      %105 = vsyncadd [#allocation9], 0
      %s106 = sshll.u32 %s11, 4
      %s107 = int_to_ptr.hbm [resolvable:$true] %s106
      %s108 = sshll.u32 [#allocation10], 4
      %s109 = int_to_ptr.vmem [resolvable:$true] %s108
      %114 = dma.hbm_to_vmem [thread:$0]  %s107, 256, %s109, [#allocation9], 128, 128, 8
    $region49: #{stgcn_forward.1} parent=1 // pred_fallthru
      _
    // Predicated region
    $region50: #{stgcn_forward.1} parent=1 // pred_check
      _
    $region51: #{stgcn_forward.1} parent=1 // pred_check_branch
      %116 = sbr.rel (0) target = $region53
    $region52: #{stgcn_forward.1} parent=1 // pred_region
      %118 = vsyncadd [#allocation12], 0
      %s119 = sshll.u32 %s12, 4
      %s120 = int_to_ptr.hbm [resolvable:$true] %s119
      %s121 = sshll.u32 [#allocation11], 4
      %s122 = int_to_ptr.vmem [resolvable:$true] %s121
      %127 = dma.hbm_to_vmem [thread:$0]  %s120, 256, %s122, [#allocation12], 128, 128, 8
    $region53: #{stgcn_forward.1} parent=1 // pred_fallthru
      _
    // Predicated region
    $region54: #{stgcn_forward.1} parent=1 // pred_check
      _
    $region55: #{stgcn_forward.1} parent=1 // pred_check_branch
      %129 = sbr.rel (0) target = $region57
    $region56: #{stgcn_forward.1} parent=1 // pred_region
      _
    $region57: #{stgcn_forward.1} parent=1 // pred_fallthru
      _
    // Predicated region
    $region58: #{stgcn_forward.1} parent=1 // pred_check
      _
    $region59: #{stgcn_forward.1} parent=1 // pred_check_branch
      %131 = sbr.rel (0) target = $region61
    $region60: #{stgcn_forward.1} parent=1 // pred_region
      %133 = vsyncadd [#allocation12], 0
      %s134 = sshll.u32 %s14, 4
      %s135 = int_to_ptr.hbm [resolvable:$true] %s134
      %s136 = sshll.u32 [#allocation13], 4
      %s137 = int_to_ptr.vmem [resolvable:$true] %s136
      %142 = dma.hbm_to_vmem [thread:$0]  %s135, 1024, %s137, [#allocation12], 128, 128, 8
    $region61: #{stgcn_forward.1} parent=1 // pred_fallthru
      _
    // Predicated region
    $region62: #{stgcn_forward.1} parent=1 // pred_check
      _
    $region63: #{stgcn_forward.1} parent=1 // pred_check_branch
      %144 = sbr.rel (0) target = $region65
    $region64: #{stgcn_forward.1} parent=1 // pred_region
      %146 = vsyncadd [#allocation15], 0
      %s148 = sshll.u32 %s15, 4
      %s149 = int_to_ptr.hbm [resolvable:$true] %s148
      %s150 = sshll.u32 [#allocation14], 4
      %s151 = int_to_ptr.vmem [resolvable:$true] %s150
      %153 = dma.hbm_to_vmem [thread:$0]  %s149, 16, %s151, [#allocation15]
    $region65: #{stgcn_forward.1} parent=1 // pred_fallthru
      _
    // Predicated region
    $region66: #{stgcn_forward.1} parent=1 // pred_check
      _
    $region67: #{stgcn_forward.1} parent=1 // pred_check_branch
      %155 = sbr.rel (0) target = $region69
    $region68: #{stgcn_forward.1} parent=1 // pred_region
      %157 = vsyncadd [#allocation15], 0
      %s159 = sshll.u32 %s16, 4
      %s160 = int_to_ptr.hbm [resolvable:$true] %s159
      %s161 = sshll.u32 [#allocation16], 4
      %s162 = int_to_ptr.vmem [resolvable:$true] %s161
      %164 = dma.hbm_to_vmem [thread:$0]  %s160, 16, %s162, [#allocation15]
    $region69: #{stgcn_forward.1} parent=1 // pred_fallthru
      _
    // Predicated region
    $region70: #{stgcn_forward.1} parent=1 // pred_check
      _
    $region71: #{stgcn_forward.1} parent=1 // pred_check_branch
      %166 = sbr.rel (0) target = $region73
    $region72: #{stgcn_forward.1} parent=1 // pred_region
      %168 = vsyncadd [#allocation18], 0
      %s169 = sshll.u32 %s17, 4
      %s170 = int_to_ptr.hbm [resolvable:$true] %s169
      %s171 = sshll.u32 [#allocation17], 4
      %s172 = int_to_ptr.vmem [resolvable:$true] %s171
      %177 = dma.hbm_to_vmem [thread:$0]  %s170, 256, %s172, [#allocation18], 128, 128, 8
    $region73: #{stgcn_forward.1} parent=1 // pred_fallthru
      _
    // Predicated region
    $region74: #{stgcn_forward.1} parent=1 // pred_check
      _
    $region75: #{stgcn_forward.1} parent=1 // pred_check_branch
      %179 = sbr.rel (0) target = $region77
    $region76: #{stgcn_forward.1} parent=1 // pred_region
      %181 = vsyncadd [#allocation18], 0
      %s182 = sshll.u32 %s18, 4
      %s183 = int_to_ptr.hbm [resolvable:$true] %s182
      %s184 = sshll.u32 [#allocation19], 4
      %s185 = int_to_ptr.vmem [resolvable:$true] %s184
      %190 = dma.hbm_to_vmem [thread:$0]  %s183, 256, %s185, [#allocation18], 128, 128, 8
    $region77: #{stgcn_forward.1} parent=1 // pred_fallthru
      _
    // Predicated region
    $region78: #{stgcn_forward.1} parent=1 // pred_check
      _
    $region79: #{stgcn_forward.1} parent=1 // pred_check_branch
      %192 = sbr.rel (0) target = $region81
    $region80: #{stgcn_forward.1} parent=1 // pred_region
      %194 = vsyncadd [#allocation21], 0
      %s195 = sshll.u32 %s19, 4
      %s196 = int_to_ptr.hbm [resolvable:$true] %s195
      %s197 = sshll.u32 [#allocation20], 4
      %s198 = int_to_ptr.vmem [resolvable:$true] %s197
      %203 = dma.hbm_to_vmem [thread:$0]  %s196, 256, %s198, [#allocation21], 128, 128, 8
    $region81: #{stgcn_forward.1} parent=1 // pred_fallthru
      _
    // Predicated region
    $region82: #{stgcn_forward.1} parent=1 // pred_check
      _
    $region83: #{stgcn_forward.1} parent=1 // pred_check_branch
      %205 = sbr.rel (0) target = $region85
    $region84: #{stgcn_forward.1} parent=1 // pred_region
      %207 = vsyncadd [#allocation21], 0
      %s209 = sshll.u32 %s20, 4
      %s210 = int_to_ptr.hbm [resolvable:$true] %s209
      %s211 = sshll.u32 [#allocation22], 4
      %s212 = int_to_ptr.vmem [resolvable:$true] %s211
      %214 = dma.hbm_to_vmem [thread:$0]  %s210, 16, %s212, [#allocation21]
    $region85: #{stgcn_forward.1} parent=1 // pred_fallthru
      _
    // Predicated region
    $region86: #{stgcn_forward.1} parent=1 // pred_check
      _
    $region87: #{stgcn_forward.1} parent=1 // pred_check_branch
      %216 = sbr.rel (0) target = $region89
    $region88: #{stgcn_forward.1} parent=1 // pred_region
      %218 = vsyncadd [#allocation24], 0
      %s220 = sshll.u32 %s21, 4
      %s221 = int_to_ptr.hbm [resolvable:$true] %s220
      %s222 = sshll.u32 [#allocation23], 4
      %s223 = int_to_ptr.vmem [resolvable:$true] %s222
      %225 = dma.hbm_to_vmem [thread:$0]  %s221, 16, %s223, [#allocation24]
    $region89: #{stgcn_forward.1} parent=1 // pred_fallthru
      _
    // Predicated region
    $region90: #{stgcn_forward.1} parent=1 // pred_check
      _
    $region91: #{stgcn_forward.1} parent=1 // pred_check_branch
      %227 = sbr.rel (0) target = $region93
    $region92: #{stgcn_forward.1} parent=1 // pred_region
      _
    $region93: #{stgcn_forward.1} parent=1 // pred_fallthru
      _
    // Predicated region
    $region94: #{stgcn_forward.1} parent=1 // pred_check
      _
    $region95: #{stgcn_forward.1} parent=1 // pred_check_branch
      %229 = sbr.rel (0) target = $region97
    $region96: #{stgcn_forward.1} parent=1 // pred_region
      %231 = dma.done [#allocation4], 3072
    $region97: #{stgcn_forward.1} parent=1 // pred_fallthru
      _
    // Predicated region
    $region98: #{stgcn_forward.1} parent=1 // pred_check
      _
    $region99: #{stgcn_forward.1} parent=1 // pred_check_branch
      %233 = sbr.rel (0) target = $region101
    $region100: #{stgcn_forward.1} parent=1 // pred_region
      %235 = dma.done [#allocation6], 2048
    $region101: #{stgcn_forward.1} parent=1 // pred_fallthru
      _
    // Predicated region
    $region102: #{stgcn_forward.1} parent=1 // pred_check
      _
    $region103: #{stgcn_forward.1} parent=1 // pred_check_branch
      %237 = sbr.rel (0) target = $region105
    $region104: #{stgcn_forward.1} parent=1 // pred_region
      %239 = dma.done [#allocation6], 384
    $region105: #{stgcn_forward.1} parent=1 // pred_fallthru
      _
    // Predicated region
    $region106: #{stgcn_forward.1} parent=1 // pred_check
      _
    $region107: #{stgcn_forward.1} parent=1 // pred_check_branch
      %241 = sbr.rel (0) target = $region109
    $region108: #{stgcn_forward.1} parent=1 // pred_region
      %243 = dma.done [#allocation9], 16
    $region109: #{stgcn_forward.1} parent=1 // pred_fallthru
      _
    // Predicated region
    $region110: #{stgcn_forward.1} parent=1 // pred_check
      _
    $region111: #{stgcn_forward.1} parent=1 // pred_check_branch
      %245 = sbr.rel (0) target = $region113
    $region112: #{stgcn_forward.1} parent=1 // pred_region
      %247 = dma.done [#allocation9], 256
    $region113: #{stgcn_forward.1} parent=1 // pred_fallthru
      _
    // Predicated region
    $region114: #{stgcn_forward.1} parent=1 // pred_check
      _
    $region115: #{stgcn_forward.1} parent=1 // pred_check_branch
      %249 = sbr.rel (0) target = $region117
    $region116: #{stgcn_forward.1} parent=1 // pred_region
      %251 = dma.done [#allocation12], 256
    $region117: #{stgcn_forward.1} parent=1 // pred_fallthru
      _
    // Predicated region
    $region118: #{stgcn_forward.1} parent=1 // pred_check
      _
    $region119: #{stgcn_forward.1} parent=1 // pred_check_branch
      %253 = sbr.rel (0) target = $region121
    $region120: #{stgcn_forward.1} parent=1 // pred_region
      %255 = dma.done [#allocation12], 1024
    $region121: #{stgcn_forward.1} parent=1 // pred_fallthru
      _
    // Predicated region
    $region122: #{stgcn_forward.1} parent=1 // pred_check
      _
    $region123: #{stgcn_forward.1} parent=1 // pred_check_branch
      %257 = sbr.rel (0) target = $region125
    $region124: #{stgcn_forward.1} parent=1 // pred_region
      %259 = dma.done [#allocation15], 16
    $region125: #{stgcn_forward.1} parent=1 // pred_fallthru
      _
    // Predicated region
    $region126: #{stgcn_forward.1} parent=1 // pred_check
      _
    $region127: #{stgcn_forward.1} parent=1 // pred_check_branch
      %261 = sbr.rel (0) target = $region129
    $region128: #{stgcn_forward.1} parent=1 // pred_region
      %263 = dma.done [#allocation15], 16
    $region129: #{stgcn_forward.1} parent=1 // pred_fallthru
      _
    // Predicated region
    $region130: #{stgcn_forward.1} parent=1 // pred_check
      _
    $region131: #{stgcn_forward.1} parent=1 // pred_check_branch
      %265 = sbr.rel (0) target = $region133
    $region132: #{stgcn_forward.1} parent=1 // pred_region
      %267 = dma.done [#allocation18], 256
    $region133: #{stgcn_forward.1} parent=1 // pred_fallthru
      _
    // Predicated region
    $region134: #{stgcn_forward.1} parent=1 // pred_check
      _
    $region135: #{stgcn_forward.1} parent=1 // pred_check_branch
      %269 = sbr.rel (0) target = $region137
    $region136: #{stgcn_forward.1} parent=1 // pred_region
      %271 = dma.done [#allocation18], 256
    $region137: #{stgcn_forward.1} parent=1 // pred_fallthru
      _
    // Predicated region
    $region138: #{stgcn_forward.1} parent=1 // pred_check
      _
    $region139: #{stgcn_forward.1} parent=1 // pred_check_branch
      %273 = sbr.rel (0) target = $region141
    $region140: #{stgcn_forward.1} parent=1 // pred_region
      %275 = dma.done [#allocation21], 256
    $region141: #{stgcn_forward.1} parent=1 // pred_fallthru
      _
    // Predicated region
    $region142: #{stgcn_forward.1} parent=1 // pred_check
      _
    $region143: #{stgcn_forward.1} parent=1 // pred_check_branch
      %277 = sbr.rel (0) target = $region145
    $region144: #{stgcn_forward.1} parent=1 // pred_region
      %279 = dma.done [#allocation21], 16
    $region145: #{stgcn_forward.1} parent=1 // pred_fallthru
      _
    // Predicated region
    $region146: #{stgcn_forward.1} parent=1 // pred_check
      _
    $region147: #{stgcn_forward.1} parent=1 // pred_check_branch
      %281 = sbr.rel (0) target = $region149
    $region148: #{stgcn_forward.1} parent=1 // pred_region
      %283 = dma.done [#allocation24], 16
    $region149: #{stgcn_forward.1} parent=1 // pred_fallthru
      _
    %v285 = vld [vmem:[%s0] sm:$0xf]
    %v286 = vld [vmem:[%s0 + $0x4] sm:$0xf]
    %v287 = vld [vmem:[%s3] sm:$0x3]
    %v288 = vld [vmem:[%s4] sm:$0x3]
    %v291 = vrot.slane %v285, 3
    %v292 = vrot.slane %v286, 3
    %vm293 = vcmask 1040384
    %v296 = vsel %vm293, %v285, %v291
    %vm297 = vcmask 1041409
    %v298 = vsel %vm297, %v285, %v291
    %v300 = vrot.slane %v298, 1
    %vm301 = vcmask 1042434
    %v302 = vsel %vm301, %v285, %v291
    %v304 = vrot.slane %v302, 2
    %v307 = vsel %vm293, %v286, %v292
    %v308 = vsel %vm297, %v286, %v292
    %v310 = vrot.slane %v308, 1
    %v311 = vsel %vm301, %v286, %v292
    %v313 = vrot.slane %v311, 2
    %v314 = vld [vmem:[%s1] sm:$0xff]
    %v315 = vld [vmem:[%s1 + $0x8] sm:$0xff]
    %v316 = vld [vmem:[%s1 + $0x10] sm:$0xff]
    %v317 = vld [vmem:[%s1 + $0x18] sm:$0xff]
    %v318 = vld [vmem:[%s1 + $0x20] sm:$0xff]
    %v319 = vld [vmem:[%s1 + $0x28] sm:$0xff]
    %v320 = vld [vmem:[%s1 + $0x30] sm:$0xff]
    %v321 = vld [vmem:[%s1 + $0x38] sm:$0xff]
    %322 = vst [vmem:[#allocation1] ss:$9 sm:$0xff] %v296
    %s324 = scalar_lea.vmem [#allocation1], 1
    %325 = vst [vmem:[%s324] ss:$9 sm:$0xff] %v300
    %s327 = scalar_lea.vmem [#allocation1], 2
    %328 = vst [vmem:[%s327] ss:$9 sm:$0xff] %v304
    %s329 = scalar_lea.vmem [#allocation1], 3
    %330 = vst [vmem:[%s329] ss:$9 sm:$0xff] %v307
    %s332 = scalar_lea.vmem [#allocation1], 4
    %333 = vst [vmem:[%s332] ss:$9 sm:$0xff] %v310
    %s335 = scalar_lea.vmem [#allocation1], 5
    %336 = vst [vmem:[%s335] ss:$9 sm:$0xff] %v313
    %v337 = vld [vmem:[#allocation1] sm:$0xff]
    %v346 = vunpack.c.l.b16 %v314
    %v347 = vunpack.c.h.b16 %v314
    %v348 = vunpack.c.l.b16 %v315
    %v349 = vunpack.c.h.b16 %v315
    %v350 = vunpack.c.l.b16 %v316
    %v351 = vunpack.c.h.b16 %v316
    %v352 = vunpack.c.l.b16 %v317
    %v353 = vunpack.c.h.b16 %v317
    %v354 = vunpack.c.l.b16 %v318
    %v355 = vunpack.c.h.b16 %v318
    %v356 = vunpack.c.l.b16 %v319
    %v357 = vunpack.c.h.b16 %v319
    %v358 = vunpack.c.l.b16 %v320
    %v359 = vunpack.c.h.b16 %v320
    %v360 = vunpack.c.l.b16 %v321
    %v361 = vunpack.c.h.b16 %v321
    %v362 = vpack.c.b16 %v348, %v346
    %v363 = vpack.c.b16 %v349, %v347
    %v364 = vpack.c.b16 %v352, %v350
    %v365 = vpack.c.b16 %v353, %v351
    %v366 = vpack.c.b16 %v356, %v354
    %v367 = vpack.c.b16 %v357, %v355
    %v368 = vpack.c.b16 %v360, %v358
    %v369 = vpack.c.b16 %v361, %v359
    %vm378 = vcmask 523264
    %v379 = vsel %vm378, %v337, 0
    %381 = vmatpush.bf16.msra.mxu0 0
    %382 = vmatpush.bf16.msra.mxu0 0
    %383 = vmatpush.bf16.msra.mxu0 0
    %384 = vmatpush.bf16.msra.mxu0 0
    %385 = vmatpush.bf16.msra.mxu0 %v368
    %386 = vmatpush.bf16.msra.mxu0 %v366
    %387 = vmatpush.bf16.msra.mxu0 %v364
    %388 = vmatpush.bf16.msra.mxu0 %v362
    %389 = vmatmul.bf16.gmra.mxu0 %v379
    %v390 = vpop.f32.mrf.mxu0
    %v391 = vadd.f32 0.0, %v390
    %v392 = vpop.f32.mrf.mxu0
    %v393 = vadd.f32 0.0, %v392
    %394 = vdwg.mxu0
    %395 = vmatpush.bf16.msra.mxu0 0
    %396 = vmatpush.bf16.msra.mxu0 0
    %397 = vmatpush.bf16.msra.mxu0 0
    %398 = vmatpush.bf16.msra.mxu0 0
    %399 = vmatpush.bf16.msra.mxu0 %v369
    %400 = vmatpush.bf16.msra.mxu0 %v367
    %401 = vmatpush.bf16.msra.mxu0 %v365
    %402 = vmatpush.bf16.msra.mxu0 %v363
    %403 = vmatmul.bf16.gmra.mxu0 %v379
    %v404 = vpop.f32.mrf.mxu0
    %v405 = vadd.f32 0.0, %v404
    %v406 = vpop.f32.mrf.mxu0
    %v407 = vadd.f32 0.0, %v406
    %408 = vdwg.mxu0
    %v410 = vperm.slane %v287, 0
    %v411 = vperm.slane %v287, 1
    %v414 = vadd.f32 %v410, %v391
    %v415 = vadd.f32 %v411, %v405
    %v416 = vadd.f32 %v410, %v393
    %v417 = vadd.f32 %v411, %v407
    %v418 = vld [vmem:[#allocation3] sm:$0xff]
    %v419 = vld [vmem:[#allocation3 + $0x8] sm:$0xff]
    %v420 = vld [vmem:[#allocation3 + $0x10] sm:$0xff]
    %v421 = vld [vmem:[#allocation3 + $0x18] sm:$0xff]
    %v422 = vld [vmem:[#allocation3 + $0x20] sm:$0xff]
    %v423 = vld [vmem:[#allocation3 + $0x28] sm:$0xff]
    %v424 = vld [vmem:[#allocation3 + $0x30] sm:$0xff]
    %v425 = vld [vmem:[#allocation3 + $0x38] sm:$0xff]
    %426 = vst [vmem:[#allocation1] ss:$9 sm:$0xff] %v296
    %s427 = scalar_lea.vmem [#allocation1], 1
    %428 = vst [vmem:[%s427] ss:$9 sm:$0xff] %v300
    %s429 = scalar_lea.vmem [#allocation1], 2
    %430 = vst [vmem:[%s429] ss:$9 sm:$0xff] %v304
    %s431 = scalar_lea.vmem [#allocation1], 3
    %432 = vst [vmem:[%s431] ss:$9 sm:$0xff] %v307
    %s433 = scalar_lea.vmem [#allocation1], 4
    %434 = vst [vmem:[%s433] ss:$9 sm:$0xff] %v310
    %s435 = scalar_lea.vmem [#allocation1], 5
    %436 = vst [vmem:[%s435] ss:$9 sm:$0xff] %v313
    %v437 = vld [vmem:[#allocation1] sm:$0xff]
    %v446 = vunpack.c.l.b16 %v418
    %v447 = vunpack.c.h.b16 %v418
    %v448 = vunpack.c.l.b16 %v419
    %v449 = vunpack.c.h.b16 %v419
    %v450 = vunpack.c.l.b16 %v420
    %v451 = vunpack.c.h.b16 %v420
    %v452 = vunpack.c.l.b16 %v421
    %v453 = vunpack.c.h.b16 %v421
    %v454 = vunpack.c.l.b16 %v422
    %v455 = vunpack.c.h.b16 %v422
    %v456 = vunpack.c.l.b16 %v423
    %v457 = vunpack.c.h.b16 %v423
    %v458 = vunpack.c.l.b16 %v424
    %v459 = vunpack.c.h.b16 %v424
    %v460 = vunpack.c.l.b16 %v425
    %v461 = vunpack.c.h.b16 %v425
    %v462 = vpack.c.b16 %v448, %v446
    %v463 = vpack.c.b16 %v449, %v447
    %v464 = vpack.c.b16 %v452, %v450
    %v465 = vpack.c.b16 %v453, %v451
    %v466 = vpack.c.b16 %v456, %v454
    %v467 = vpack.c.b16 %v457, %v455
    %v468 = vpack.c.b16 %v460, %v458
    %v469 = vpack.c.b16 %v461, %v459
    %v478 = vsel %vm378, %v437, 0
    %480 = vmatpush.bf16.msra.mxu0 0
    %481 = vmatpush.bf16.msra.mxu0 0
    %482 = vmatpush.bf16.msra.mxu0 0
    %483 = vmatpush.bf16.msra.mxu0 0
    %484 = vmatpush.bf16.msra.mxu0 %v468
    %485 = vmatpush.bf16.msra.mxu0 %v466
    %486 = vmatpush.bf16.msra.mxu0 %v464
    %487 = vmatpush.bf16.msra.mxu0 %v462
    %488 = vmatmul.bf16.gmra.mxu0 %v478
    %v489 = vpop.f32.mrf.mxu0
    %v490 = vadd.f32 0.0, %v489
    %v491 = vpop.f32.mrf.mxu0
    %v492 = vadd.f32 0.0, %v491
    %493 = vdwg.mxu0
    %494 = vmatpush.bf16.msra.mxu0 0
    %495 = vmatpush.bf16.msra.mxu0 0
    %496 = vmatpush.bf16.msra.mxu0 0
    %497 = vmatpush.bf16.msra.mxu0 0
    %498 = vmatpush.bf16.msra.mxu0 %v469
    %499 = vmatpush.bf16.msra.mxu0 %v467
    %500 = vmatpush.bf16.msra.mxu0 %v465
    %501 = vmatpush.bf16.msra.mxu0 %v463
    %502 = vmatmul.bf16.gmra.mxu0 %v478
    %v503 = vpop.f32.mrf.mxu0
    %v504 = vadd.f32 0.0, %v503
    %v505 = vpop.f32.mrf.mxu0
    %v506 = vadd.f32 0.0, %v505
    %507 = vdwg.mxu0
    %v509 = vperm.slane %v288, 0
    %v510 = vperm.slane %v288, 1
    %v513 = vadd.f32 %v509, %v490
    %v514 = vadd.f32 %v510, %v504
    %v515 = vadd.f32 %v509, %v492
    %v516 = vadd.f32 %v510, %v506
    %vm517 = vcmask 1043459
    %v518 = vsel %vm517, %v285, %v291
    %v520 = vrot.slane %v518, 3
    %v521 = vsel %vm517, %v286, %v292
    %v523 = vrot.slane %v521, 3
    %vm524 = vsmask.f32 256
    %vm525 = vsmask.f32 1284
    %vm526 = vmor %vm524, %vm525
    %vm527 = vsmask.f32 2312
    %vm528 = vmor %vm526, %vm527
    %vm529 = vsmask.f32 3340
    %vm530 = vmor %vm528, %vm529
    %vm531 = vsmask.f32 4368
    %vm532 = vmor %vm530, %vm531
    %vm533 = vsmask.f32 5396
    %vm534 = vmor %vm532, %vm533
    %vm535 = vsmask.f32 6424
    %vm536 = vmor %vm534, %vm535
    %vm537 = vsmask.f32 7452
    %vm538 = vmor %vm536, %vm537
    %v539 = vshrl.u32 %v296, 16
    %v541 = vrot.slane %v539, 7
    %v542 = vrot.slane %v541, 1
    %v543 = vshll.u32 %v300, 16
    %v545 = vsel %vm538, %v542, %v543
    %v546 = vshrl.u32 %v300, 16
    %v548 = vrot.slane %v546, 7
    %v549 = vrot.slane %v548, 1
    %v550 = vshll.u32 %v304, 16
    %v552 = vsel %vm538, %v549, %v550
    %v553 = vshrl.u32 %v304, 16
    %v555 = vrot.slane %v553, 7
    %v556 = vrot.slane %v555, 1
    %v558 = vshll.u32 %v520, 16
    %v560 = vsel %vm538, %v556, %v558
    %v561 = vshrl.u32 %v307, 16
    %v563 = vrot.slane %v561, 7
    %v564 = vrot.slane %v563, 1
    %v565 = vshll.u32 %v310, 16
    %v567 = vsel %vm538, %v564, %v565
    %v568 = vshrl.u32 %v310, 16
    %v570 = vrot.slane %v568, 7
    %v571 = vrot.slane %v570, 1
    %v572 = vshll.u32 %v313, 16
    %v574 = vsel %vm538, %v571, %v572
    %v575 = vshrl.u32 %v313, 16
    %v577 = vrot.slane %v575, 7
    %v578 = vrot.slane %v577, 1
    %v580 = vshll.u32 %v523, 16
    %v582 = vsel %vm538, %v578, %v580
    %s583 = scalar_lea.vmem %s1, 64
    %v584 = vld [vmem:[%s583] sm:$0xff]
    %v585 = vld [vmem:[%s583 + $0x8] sm:$0xff]
    %v586 = vld [vmem:[%s583 + $0x10] sm:$0xff]
    %v587 = vld [vmem:[%s583 + $0x18] sm:$0xff]
    %v588 = vld [vmem:[%s583 + $0x20] sm:$0xff]
    %v589 = vld [vmem:[%s583 + $0x28] sm:$0xff]
    %v590 = vld [vmem:[%s583 + $0x30] sm:$0xff]
    %v591 = vld [vmem:[%s583 + $0x38] sm:$0xff]
    %593 = vst [vmem:[#allocation1] ss:$9 sm:$0xff] %v545
    %s595 = scalar_lea.vmem [#allocation1], 1
    %596 = vst [vmem:[%s595] ss:$9 sm:$0xff] %v552
    %s598 = scalar_lea.vmem [#allocation1], 2
    %599 = vst [vmem:[%s598] ss:$9 sm:$0xff] %v560
    %s601 = scalar_lea.vmem [#allocation1], 3
    %602 = vst [vmem:[%s601] ss:$9 sm:$0xff] %v567
    %s604 = scalar_lea.vmem [#allocation1], 4
    %605 = vst [vmem:[%s604] ss:$9 sm:$0xff] %v574
    %s607 = scalar_lea.vmem [#allocation1], 5
    %608 = vst [vmem:[%s607] ss:$9 sm:$0xff] %v582
    %v609 = vld [vmem:[#allocation1] sm:$0xff]
    %v618 = vunpack.c.l.b16 %v584
    %v619 = vunpack.c.h.b16 %v584
    %v620 = vunpack.c.l.b16 %v585
    %v621 = vunpack.c.h.b16 %v585
    %v622 = vunpack.c.l.b16 %v586
    %v623 = vunpack.c.h.b16 %v586
    %v624 = vunpack.c.l.b16 %v587
    %v625 = vunpack.c.h.b16 %v587
    %v626 = vunpack.c.l.b16 %v588
    %v627 = vunpack.c.h.b16 %v588
    %v628 = vunpack.c.l.b16 %v589
    %v629 = vunpack.c.h.b16 %v589
    %v630 = vunpack.c.l.b16 %v590
    %v631 = vunpack.c.h.b16 %v590
    %v632 = vunpack.c.l.b16 %v591
    %v633 = vunpack.c.h.b16 %v591
    %v634 = vpack.c.b16 %v620, %v618
    %v635 = vpack.c.b16 %v621, %v619
    %v636 = vpack.c.b16 %v624, %v622
    %v637 = vpack.c.b16 %v625, %v623
    %v638 = vpack.c.b16 %v628, %v626
    %v639 = vpack.c.b16 %v629, %v627
    %v640 = vpack.c.b16 %v632, %v630
    %v641 = vpack.c.b16 %v633, %v631
    %v650 = vsel %vm378, %v609, 0
    %652 = vmatpush.bf16.msra.mxu0 0
    %653 = vmatpush.bf16.msra.mxu0 0
    %654 = vmatpush.bf16.msra.mxu0 0
    %655 = vmatpush.bf16.msra.mxu0 0
    %656 = vmatpush.bf16.msra.mxu0 %v640
    %657 = vmatpush.bf16.msra.mxu0 %v638
    %658 = vmatpush.bf16.msra.mxu0 %v636
    %659 = vmatpush.bf16.msra.mxu0 %v634
    %660 = vmatmul.bf16.gmra.mxu0 %v650
    %v661 = vpop.f32.mrf.mxu0
    %v662 = vadd.f32 0.0, %v661
    %v663 = vpop.f32.mrf.mxu0
    %v664 = vadd.f32 0.0, %v663
    %665 = vdwg.mxu0
    %666 = vmatpush.bf16.msra.mxu0 0
    %667 = vmatpush.bf16.msra.mxu0 0
    %668 = vmatpush.bf16.msra.mxu0 0
    %669 = vmatpush.bf16.msra.mxu0 0
    %670 = vmatpush.bf16.msra.mxu0 %v641
    %671 = vmatpush.bf16.msra.mxu0 %v639
    %672 = vmatpush.bf16.msra.mxu0 %v637
    %673 = vmatpush.bf16.msra.mxu0 %v635
    %674 = vmatmul.bf16.gmra.mxu0 %v650
    %v675 = vpop.f32.mrf.mxu0
    %v676 = vadd.f32 0.0, %v675
    %v677 = vpop.f32.mrf.mxu0
    %v678 = vadd.f32 0.0, %v677
    %679 = vdwg.mxu0
    %v680 = vadd.f32 %v414, %v662
    %v681 = vadd.f32 %v415, %v676
    %v682 = vadd.f32 %v416, %v664
    %v683 = vadd.f32 %v417, %v678
    %s684 = scalar_lea.vmem [#allocation3], 64
    %v685 = vld [vmem:[%s684] sm:$0xff]
    %v686 = vld [vmem:[%s684 + $0x8] sm:$0xff]
    %v687 = vld [vmem:[%s684 + $0x10] sm:$0xff]
    %v688 = vld [vmem:[%s684 + $0x18] sm:$0xff]
    %v689 = vld [vmem:[%s684 + $0x20] sm:$0xff]
    %v690 = vld [vmem:[%s684 + $0x28] sm:$0xff]
    %v691 = vld [vmem:[%s684 + $0x30] sm:$0xff]
    %v692 = vld [vmem:[%s684 + $0x38] sm:$0xff]
    %693 = vst [vmem:[#allocation1] ss:$9 sm:$0xff] %v545
    %s694 = scalar_lea.vmem [#allocation1], 1
    %695 = vst [vmem:[%s694] ss:$9 sm:$0xff] %v552
    %s696 = scalar_lea.vmem [#allocation1], 2
    %697 = vst [vmem:[%s696] ss:$9 sm:$0xff] %v560
    %s698 = scalar_lea.vmem [#allocation1], 3
    %699 = vst [vmem:[%s698] ss:$9 sm:$0xff] %v567
    %s700 = scalar_lea.vmem [#allocation1], 4
    %701 = vst [vmem:[%s700] ss:$9 sm:$0xff] %v574
    %s702 = scalar_lea.vmem [#allocation1], 5
    %703 = vst [vmem:[%s702] ss:$9 sm:$0xff] %v582
    %v704 = vld [vmem:[#allocation1] sm:$0xff]
    %v713 = vunpack.c.l.b16 %v685
    %v714 = vunpack.c.h.b16 %v685
    %v715 = vunpack.c.l.b16 %v686
    %v716 = vunpack.c.h.b16 %v686
    %v717 = vunpack.c.l.b16 %v687
    %v718 = vunpack.c.h.b16 %v687
    %v719 = vunpack.c.l.b16 %v688
    %v720 = vunpack.c.h.b16 %v688
    %v721 = vunpack.c.l.b16 %v689
    %v722 = vunpack.c.h.b16 %v689
    %v723 = vunpack.c.l.b16 %v690
    %v724 = vunpack.c.h.b16 %v690
    %v725 = vunpack.c.l.b16 %v691
    %v726 = vunpack.c.h.b16 %v691
    %v727 = vunpack.c.l.b16 %v692
    %v728 = vunpack.c.h.b16 %v692
    %v729 = vpack.c.b16 %v715, %v713
    %v730 = vpack.c.b16 %v716, %v714
    %v731 = vpack.c.b16 %v719, %v717
    %v732 = vpack.c.b16 %v720, %v718
    %v733 = vpack.c.b16 %v723, %v721
    %v734 = vpack.c.b16 %v724, %v722
    %v735 = vpack.c.b16 %v727, %v725
    %v736 = vpack.c.b16 %v728, %v726
    %v745 = vsel %vm378, %v704, 0
    %747 = vmatpush.bf16.msra.mxu0 0
    %748 = vmatpush.bf16.msra.mxu0 0
    %749 = vmatpush.bf16.msra.mxu0 0
    %750 = vmatpush.bf16.msra.mxu0 0
    %751 = vmatpush.bf16.msra.mxu0 %v735
    %752 = vmatpush.bf16.msra.mxu0 %v733
    %753 = vmatpush.bf16.msra.mxu0 %v731
    %754 = vmatpush.bf16.msra.mxu0 %v729
    %755 = vmatmul.bf16.gmra.mxu0 %v745
    %v756 = vpop.f32.mrf.mxu0
    %v757 = vadd.f32 0.0, %v756
    %v758 = vpop.f32.mrf.mxu0
    %v759 = vadd.f32 0.0, %v758
    %760 = vdwg.mxu0
    %761 = vmatpush.bf16.msra.mxu0 0
    %762 = vmatpush.bf16.msra.mxu0 0
    %763 = vmatpush.bf16.msra.mxu0 0
    %764 = vmatpush.bf16.msra.mxu0 0
    %765 = vmatpush.bf16.msra.mxu0 %v736
    %766 = vmatpush.bf16.msra.mxu0 %v734
    %767 = vmatpush.bf16.msra.mxu0 %v732
    %768 = vmatpush.bf16.msra.mxu0 %v730
    %769 = vmatmul.bf16.gmra.mxu0 %v745
    %v770 = vpop.f32.mrf.mxu0
    %v771 = vadd.f32 0.0, %v770
    %v772 = vpop.f32.mrf.mxu0
    %v773 = vadd.f32 0.0, %v772
    %774 = vdwg.mxu0
    %v775 = vadd.f32 %v513, %v757
    %v776 = vadd.f32 %v514, %v771
    %v777 = vadd.f32 %v515, %v759
    %v778 = vadd.f32 %v516, %v773
    %779 = vst [vmem:[#allocation1] sm:$0xff] %v285
    %s780 = scalar_lea.vmem [#allocation1], 1
    %v781 = vld [vmem:[%s780] ss:$4 sm:$0xff]
    %s782 = scalar_lea.vmem [#allocation1], 2
    %v783 = vld [vmem:[%s782] ss:$4 sm:$0xff]
    %s784 = scalar_lea.vmem [#allocation1], 3
    %v785 = vld [vmem:[%s784] ss:$4 sm:$0xff]
    %786 = vst [vmem:[#allocation1 + $0x20] sm:$0xff] %v286
    %s787 = scalar_lea.vmem [#allocation1], 33
    %v788 = vld [vmem:[%s787] ss:$4 sm:$0xff]
    %s789 = scalar_lea.vmem [#allocation1], 34
    %v790 = vld [vmem:[%s789] ss:$4 sm:$0xff]
    %s791 = scalar_lea.vmem [#allocation1], 35
    %v792 = vld [vmem:[%s791] ss:$4 sm:$0xff]
    %s793 = scalar_lea.vmem %s1, 128
    %v794 = vld [vmem:[%s793] sm:$0xff]
    %v795 = vld [vmem:[%s793 + $0x8] sm:$0xff]
    %v796 = vld [vmem:[%s793 + $0x10] sm:$0xff]
    %v797 = vld [vmem:[%s793 + $0x18] sm:$0xff]
    %v798 = vld [vmem:[%s793 + $0x20] sm:$0xff]
    %v799 = vld [vmem:[%s793 + $0x28] sm:$0xff]
    %v800 = vld [vmem:[%s793 + $0x30] sm:$0xff]
    %v801 = vld [vmem:[%s793 + $0x38] sm:$0xff]
    %802 = vst [vmem:[#allocation1] ss:$9 sm:$0xff] %v781
    %s803 = scalar_lea.vmem [#allocation1], 1
    %804 = vst [vmem:[%s803] ss:$9 sm:$0xff] %v783
    %s805 = scalar_lea.vmem [#allocation1], 2
    %806 = vst [vmem:[%s805] ss:$9 sm:$0xff] %v785
    %s807 = scalar_lea.vmem [#allocation1], 3
    %808 = vst [vmem:[%s807] ss:$9 sm:$0xff] %v788
    %s809 = scalar_lea.vmem [#allocation1], 4
    %810 = vst [vmem:[%s809] ss:$9 sm:$0xff] %v790
    %s811 = scalar_lea.vmem [#allocation1], 5
    %812 = vst [vmem:[%s811] ss:$9 sm:$0xff] %v792
    %v813 = vld [vmem:[#allocation1] sm:$0xff]
    %v822 = vunpack.c.l.b16 %v794
    %v823 = vunpack.c.h.b16 %v794
    %v824 = vunpack.c.l.b16 %v795
    %v825 = vunpack.c.h.b16 %v795
    %v826 = vunpack.c.l.b16 %v796
    %v827 = vunpack.c.h.b16 %v796
    %v828 = vunpack.c.l.b16 %v797
    %v829 = vunpack.c.h.b16 %v797
    %v830 = vunpack.c.l.b16 %v798
    %v831 = vunpack.c.h.b16 %v798
    %v832 = vunpack.c.l.b16 %v799
    %v833 = vunpack.c.h.b16 %v799
    %v834 = vunpack.c.l.b16 %v800
    %v835 = vunpack.c.h.b16 %v800
    %v836 = vunpack.c.l.b16 %v801
    %v837 = vunpack.c.h.b16 %v801
    %v838 = vpack.c.b16 %v824, %v822
    %v839 = vpack.c.b16 %v825, %v823
    %v840 = vpack.c.b16 %v828, %v826
    %v841 = vpack.c.b16 %v829, %v827
    %v842 = vpack.c.b16 %v832, %v830
    %v843 = vpack.c.b16 %v833, %v831
    %v844 = vpack.c.b16 %v836, %v834
    %v845 = vpack.c.b16 %v837, %v835
    %v854 = vsel %vm378, %v813, 0
    %856 = vmatpush.bf16.msra.mxu0 0
    %857 = vmatpush.bf16.msra.mxu0 0
    %858 = vmatpush.bf16.msra.mxu0 0
    %859 = vmatpush.bf16.msra.mxu0 0
    %860 = vmatpush.bf16.msra.mxu0 %v844
    %861 = vmatpush.bf16.msra.mxu0 %v842
    %862 = vmatpush.bf16.msra.mxu0 %v840
    %863 = vmatpush.bf16.msra.mxu0 %v838
    %864 = vmatmul.bf16.gmra.mxu0 %v854
    %v865 = vpop.f32.mrf.mxu0
    %v866 = vadd.f32 0.0, %v865
    %v867 = vpop.f32.mrf.mxu0
    %v868 = vadd.f32 0.0, %v867
    %869 = vdwg.mxu0
    %870 = vmatpush.bf16.msra.mxu0 0
    %871 = vmatpush.bf16.msra.mxu0 0
    %872 = vmatpush.bf16.msra.mxu0 0
    %873 = vmatpush.bf16.msra.mxu0 0
    %874 = vmatpush.bf16.msra.mxu0 %v845
    %875 = vmatpush.bf16.msra.mxu0 %v843
    %876 = vmatpush.bf16.msra.mxu0 %v841
    %877 = vmatpush.bf16.msra.mxu0 %v839
    %878 = vmatmul.bf16.gmra.mxu0 %v854
    %v879 = vpop.f32.mrf.mxu0
    %v880 = vadd.f32 0.0, %v879
    %v881 = vpop.f32.mrf.mxu0
    %v882 = vadd.f32 0.0, %v881
    %883 = vdwg.mxu0
    %v884 = vadd.f32 %v680, %v866
    %v885 = vadd.f32 %v681, %v880
    %v886 = vadd.f32 %v682, %v868
    %v887 = vadd.f32 %v683, %v882
    %s888 = scalar_lea.vmem [#allocation3], 128
    %v889 = vld [vmem:[%s888] sm:$0xff]
    %v890 = vld [vmem:[%s888 + $0x8] sm:$0xff]
    %v891 = vld [vmem:[%s888 + $0x10] sm:$0xff]
    %v892 = vld [vmem:[%s888 + $0x18] sm:$0xff]
    %v893 = vld [vmem:[%s888 + $0x20] sm:$0xff]
    %v894 = vld [vmem:[%s888 + $0x28] sm:$0xff]
    %v895 = vld [vmem:[%s888 + $0x30] sm:$0xff]
    %v896 = vld [vmem:[%s888 + $0x38] sm:$0xff]
    %897 = vst [vmem:[#allocation1] ss:$9 sm:$0xff] %v781
    %s898 = scalar_lea.vmem [#allocation1], 1
    %899 = vst [vmem:[%s898] ss:$9 sm:$0xff] %v783
    %s900 = scalar_lea.vmem [#allocation1], 2
    %901 = vst [vmem:[%s900] ss:$9 sm:$0xff] %v785
    %s902 = scalar_lea.vmem [#allocation1], 3
    %903 = vst [vmem:[%s902] ss:$9 sm:$0xff] %v788
    %s904 = scalar_lea.vmem [#allocation1], 4
    %905 = vst [vmem:[%s904] ss:$9 sm:$0xff] %v790
    %s906 = scalar_lea.vmem [#allocation1], 5
    %907 = vst [vmem:[%s906] ss:$9 sm:$0xff] %v792
    %v908 = vld [vmem:[#allocation1] sm:$0xff]
    %v917 = vunpack.c.l.b16 %v889
    %v918 = vunpack.c.h.b16 %v889
    %v919 = vunpack.c.l.b16 %v890
    %v920 = vunpack.c.h.b16 %v890
    %v921 = vunpack.c.l.b16 %v891
    %v922 = vunpack.c.h.b16 %v891
    %v923 = vunpack.c.l.b16 %v892
    %v924 = vunpack.c.h.b16 %v892
    %v925 = vunpack.c.l.b16 %v893
    %v926 = vunpack.c.h.b16 %v893
    %v927 = vunpack.c.l.b16 %v894
    %v928 = vunpack.c.h.b16 %v894
    %v929 = vunpack.c.l.b16 %v895
    %v930 = vunpack.c.h.b16 %v895
    %v931 = vunpack.c.l.b16 %v896
    %v932 = vunpack.c.h.b16 %v896
    %v933 = vpack.c.b16 %v919, %v917
    %v934 = vpack.c.b16 %v920, %v918
    %v935 = vpack.c.b16 %v923, %v921
    %v936 = vpack.c.b16 %v924, %v922
    %v937 = vpack.c.b16 %v927, %v925
    %v938 = vpack.c.b16 %v928, %v926
    %v939 = vpack.c.b16 %v931, %v929
    %v940 = vpack.c.b16 %v932, %v930
    %v949 = vsel %vm378, %v908, 0
    %951 = vmatpush.bf16.msra.mxu0 0
    %952 = vmatpush.bf16.msra.mxu0 0
    %953 = vmatpush.bf16.msra.mxu0 0
    %954 = vmatpush.bf16.msra.mxu0 0
    %955 = vmatpush.bf16.msra.mxu0 %v939
    %956 = vmatpush.bf16.msra.mxu0 %v937
    %957 = vmatpush.bf16.msra.mxu0 %v935
    %958 = vmatpush.bf16.msra.mxu0 %v933
    %959 = vmatmul.bf16.gmra.mxu0 %v949
    %v960 = vpop.f32.mrf.mxu0
    %v961 = vadd.f32 0.0, %v960
    %v962 = vpop.f32.mrf.mxu0
    %v963 = vadd.f32 0.0, %v962
    %964 = vdwg.mxu0
    %965 = vmatpush.bf16.msra.mxu0 0
    %966 = vmatpush.bf16.msra.mxu0 0
    %967 = vmatpush.bf16.msra.mxu0 0
    %968 = vmatpush.bf16.msra.mxu0 0
    %969 = vmatpush.bf16.msra.mxu0 %v940
    %970 = vmatpush.bf16.msra.mxu0 %v938
    %971 = vmatpush.bf16.msra.mxu0 %v936
    %972 = vmatpush.bf16.msra.mxu0 %v934
    %973 = vmatmul.bf16.gmra.mxu0 %v949
    %v974 = vpop.f32.mrf.mxu0
    %v975 = vadd.f32 0.0, %v974
    %v976 = vpop.f32.mrf.mxu0
    %v977 = vadd.f32 0.0, %v976
    %978 = vdwg.mxu0
    %v979 = vadd.f32 %v775, %v961
    %v980 = vadd.f32 %v776, %v975
    %v981 = vadd.f32 %v777, %v963
    %v982 = vadd.f32 %v778, %v977
    %v983 = vxor.u32 %v979, 2147483648
    %v984 = vxor.u32 %v980, 2147483648
    %v985 = vxor.u32 %v981, 2147483648
    %v986 = vxor.u32 %v982, 2147483648
    %v987 = vmul.f32 %v983, 1.442695
    %v988 = vpow.pop %v987
    %v989 = vmul.f32 %v984, 1.442695
    %v990 = vpow.pop %v989
    %v991 = vmul.f32 %v985, 1.442695
    %v992 = vpow.pop %v991
    %v993 = vmul.f32 %v986, 1.442695
    %v994 = vpow.pop %v993
    %v995 = vadd.f32 %v988, 1.0
    %v996 = vadd.f32 %v990, 1.0
    %v997 = vadd.f32 %v992, 1.0
    %v998 = vadd.f32 %v994, 1.0
    %v999 = vrcp.pop %v995
    %v1000 = vmul.f32 %v995, %v999
    %v1001 = vsub.f32 1.0, %v1000
    %v1002 = vmul.f32 %v999, %v1001
    %v1003 = vadd.f32 %v999, %v1002
    %vm1004 = vweird.f32 %v995
    %vm1005 = vweird.f32 %v999
    %vm1006 = vmor %vm1004, %vm1005
    %v1007 = vsel %vm1006, %v999, %v1003
    %v1008 = vand.u32 2147483647, %v995
    %vm1009 = vcmp.eq.f32.partialorder %v1008, 8.507059e+37
    %v1010 = vand.u32 %v995, 2147483648
    %v1011 = vor.u32 1.1754944e-38, %v1010
    %v1012 = vsel %vm1009, %v1011, %v1007
    %v1013 = vmul.f32 1.0, %v1012
    %v1014 = vrcp.pop %v996
    %v1015 = vmul.f32 %v996, %v1014
    %v1016 = vsub.f32 1.0, %v1015
    %v1017 = vmul.f32 %v1014, %v1016
    %v1018 = vadd.f32 %v1014, %v1017
    %vm1019 = vweird.f32 %v996
    %vm1020 = vweird.f32 %v1014
    %vm1021 = vmor %vm1019, %vm1020
    %v1022 = vsel %vm1021, %v1014, %v1018
    %v1023 = vand.u32 2147483647, %v996
    %vm1024 = vcmp.eq.f32.partialorder %v1023, 8.507059e+37
    %v1025 = vand.u32 %v996, 2147483648
    %v1026 = vor.u32 1.1754944e-38, %v1025
    %v1027 = vsel %vm1024, %v1026, %v1022
    %v1028 = vmul.f32 1.0, %v1027
    %v1029 = vrcp.pop %v997
    %v1030 = vmul.f32 %v997, %v1029
    %v1031 = vsub.f32 1.0, %v1030
    %v1032 = vmul.f32 %v1029, %v1031
    %v1033 = vadd.f32 %v1029, %v1032
    %vm1034 = vweird.f32 %v997
    %vm1035 = vweird.f32 %v1029
    %vm1036 = vmor %vm1034, %vm1035
    %v1037 = vsel %vm1036, %v1029, %v1033
    %v1038 = vand.u32 2147483647, %v997
    %vm1039 = vcmp.eq.f32.partialorder %v1038, 8.507059e+37
    %v1040 = vand.u32 %v997, 2147483648
    %v1041 = vor.u32 1.1754944e-38, %v1040
    %v1042 = vsel %vm1039, %v1041, %v1037
    %v1043 = vmul.f32 1.0, %v1042
    %v1044 = vrcp.pop %v998
    %v1045 = vmul.f32 %v998, %v1044
    %v1046 = vsub.f32 1.0, %v1045
    %v1047 = vmul.f32 %v1044, %v1046
    %v1048 = vadd.f32 %v1044, %v1047
    %vm1049 = vweird.f32 %v998
    %vm1050 = vweird.f32 %v1044
    %vm1051 = vmor %vm1049, %vm1050
    %v1052 = vsel %vm1051, %v1044, %v1048
    %v1053 = vand.u32 2147483647, %v998
    %vm1054 = vcmp.eq.f32.partialorder %v1053, 8.507059e+37
    %v1055 = vand.u32 %v998, 2147483648
    %v1056 = vor.u32 1.1754944e-38, %v1055
    %v1057 = vsel %vm1054, %v1056, %v1052
    %v1058 = vmul.f32 1.0, %v1057
    %v1059 = vmul.f32 %v884, %v1013
    %v1060 = vmul.f32 %v885, %v1028
    %v1061 = vmul.f32 %v886, %v1043
    %v1062 = vmul.f32 %v887, %v1058
    %v1063 = vpack.c.bf16 %v1061, %v1059
    %v1064 = vpack.c.bf16 %v1062, %v1060
    %v1065 = vld [vmem:[#allocation5] sm:$0xf]
    %v1066 = vld [vmem:[#allocation5 + $0x4] sm:$0xf]
    %v1067 = vld [vmem:[#allocation5 + $0x8] sm:$0xf]
    %v1068 = vld [vmem:[#allocation5 + $0xc] sm:$0xf]
    %v1069 = vld [vmem:[#allocation5 + $0x10] sm:$0xf]
    %v1070 = vld [vmem:[#allocation5 + $0x14] sm:$0xf]
    %v1071 = vld [vmem:[#allocation5 + $0x18] sm:$0xf]
    %v1072 = vld [vmem:[#allocation5 + $0x1c] sm:$0xf]
    %v1073 = vld [vmem:[#allocation5 + $0x20] sm:$0xf]
    %v1074 = vld [vmem:[#allocation5 + $0x24] sm:$0xf]
    %v1075 = vld [vmem:[#allocation5 + $0x28] sm:$0xf]
    %v1076 = vld [vmem:[#allocation5 + $0x2c] sm:$0xf]
    %v1077 = vld [vmem:[#allocation5 + $0x30] sm:$0xf]
    %v1078 = vld [vmem:[#allocation5 + $0x34] sm:$0xf]
    %v1079 = vld [vmem:[#allocation5 + $0x38] sm:$0xf]
    %v1080 = vld [vmem:[#allocation5 + $0x3c] sm:$0xf]
    %v1081 = vld [vmem:[#allocation5 + $0x40] sm:$0xf]
    %v1082 = vld [vmem:[#allocation5 + $0x44] sm:$0xf]
    %v1083 = vld [vmem:[#allocation5 + $0x48] sm:$0xf]
    %v1084 = vld [vmem:[#allocation5 + $0x4c] sm:$0xf]
    %v1085 = vld [vmem:[#allocation5 + $0x50] sm:$0xf]
    %v1086 = vld [vmem:[#allocation5 + $0x54] sm:$0xf]
    %v1087 = vld [vmem:[#allocation5 + $0x58] sm:$0xf]
    %v1088 = vld [vmem:[#allocation5 + $0x5c] sm:$0xf]
    %v1089 = vld [vmem:[#allocation5 + $0x60] sm:$0xf]
    %v1090 = vld [vmem:[#allocation5 + $0x64] sm:$0xf]
    %v1091 = vld [vmem:[#allocation5 + $0x68] sm:$0xf]
    %v1092 = vld [vmem:[#allocation5 + $0x6c] sm:$0xf]
    %v1093 = vld [vmem:[#allocation5 + $0x70] sm:$0xf]
    %v1094 = vld [vmem:[#allocation5 + $0x74] sm:$0xf]
    %v1095 = vld [vmem:[#allocation5 + $0x78] sm:$0xf]
    %v1096 = vld [vmem:[#allocation5 + $0x7c] sm:$0xf]
    %v1097 = vld [vmem:[%s6] sm:$0x1]
    %v1099 = vperm.slane %v1097, 0
    %v1133 = vunpack.c.l.b16 %v1065
    %v1134 = vunpack.c.l.b16 %v1066
    %v1135 = vunpack.c.l.b16 %v1067
    %v1136 = vunpack.c.l.b16 %v1068
    %v1137 = vunpack.c.l.b16 %v1069
    %v1138 = vunpack.c.l.b16 %v1070
    %v1139 = vunpack.c.l.b16 %v1071
    %v1140 = vunpack.c.l.b16 %v1072
    %v1141 = vunpack.c.l.b16 %v1073
    %v1142 = vunpack.c.l.b16 %v1074
    %v1143 = vunpack.c.l.b16 %v1075
    %v1144 = vunpack.c.l.b16 %v1076
    %v1145 = vunpack.c.l.b16 %v1077
    %v1146 = vunpack.c.l.b16 %v1078
    %v1147 = vunpack.c.l.b16 %v1079
    %v1148 = vunpack.c.l.b16 %v1080
    %v1149 = vunpack.c.l.b16 %v1081
    %v1150 = vunpack.c.l.b16 %v1082
    %v1151 = vunpack.c.l.b16 %v1083
    %v1152 = vunpack.c.l.b16 %v1084
    %v1153 = vunpack.c.l.b16 %v1085
    %v1154 = vunpack.c.l.b16 %v1086
    %v1155 = vunpack.c.l.b16 %v1087
    %v1156 = vunpack.c.l.b16 %v1088
    %v1157 = vunpack.c.l.b16 %v1089
    %v1158 = vunpack.c.l.b16 %v1090
    %v1159 = vunpack.c.l.b16 %v1091
    %v1160 = vunpack.c.l.b16 %v1092
    %v1161 = vunpack.c.l.b16 %v1093
    %v1162 = vunpack.c.l.b16 %v1094
    %v1163 = vunpack.c.l.b16 %v1095
    %v1164 = vunpack.c.l.b16 %v1096
    %v1165 = vpack.c.b16 %v1134, %v1133
    %v1166 = vpack.c.b16 %v1136, %v1135
    %v1167 = vpack.c.b16 %v1138, %v1137
    %v1168 = vpack.c.b16 %v1140, %v1139
    %v1169 = vpack.c.b16 %v1142, %v1141
    %v1170 = vpack.c.b16 %v1144, %v1143
    %v1171 = vpack.c.b16 %v1146, %v1145
    %v1172 = vpack.c.b16 %v1148, %v1147
    %v1173 = vpack.c.b16 %v1150, %v1149
    %v1174 = vpack.c.b16 %v1152, %v1151
    %v1175 = vpack.c.b16 %v1154, %v1153
    %v1176 = vpack.c.b16 %v1156, %v1155
    %v1177 = vpack.c.b16 %v1158, %v1157
    %v1178 = vpack.c.b16 %v1160, %v1159
    %v1179 = vpack.c.b16 %v1162, %v1161
    %v1180 = vpack.c.b16 %v1164, %v1163
    %1197 = vmatpush.bf16.msra.mxu0 %v1172
    %1198 = vmatpush.bf16.msra.mxu0 %v1171
    %1199 = vmatpush.bf16.msra.mxu0 %v1170
    %1200 = vmatpush.bf16.msra.mxu0 %v1169
    %1201 = vmatpush.bf16.msra.mxu0 %v1168
    %1202 = vmatpush.bf16.msra.mxu0 %v1167
    %1203 = vmatpush.bf16.msra.mxu0 %v1166
    %1204 = vmatpush.bf16.msra.mxu0 %v1165
    %1205 = vmatmul.bf16.gmra.mxu0 %v1063
    %v1206 = vpop.f32.mrf.mxu0
    %v1207 = vadd.f32 %v1099, %v1206
    %v1208 = vpop.f32.mrf.mxu0
    %v1209 = vadd.f32 %v1099, %v1208
    %1210 = vdwg.mxu0
    %1211 = vmatpush.bf16.msra.mxu0 %v1180
    %1212 = vmatpush.bf16.msra.mxu0 %v1179
    %1213 = vmatpush.bf16.msra.mxu0 %v1178
    %1214 = vmatpush.bf16.msra.mxu0 %v1177
    %1215 = vmatpush.bf16.msra.mxu0 %v1176
    %1216 = vmatpush.bf16.msra.mxu0 %v1175
    %1217 = vmatpush.bf16.msra.mxu0 %v1174
    %1218 = vmatpush.bf16.msra.mxu0 %v1173
    %1219 = vmatmul.bf16.gmra.mxu0 %v1064
    %v1220 = vpop.f32.mrf.mxu0
    %v1221 = vadd.f32 %v1207, %v1220
    %v1222 = vpop.f32.mrf.mxu0
    %v1223 = vadd.f32 %v1209, %v1222
    %1224 = vdwg.mxu0
    %v1225 = vmax.f32 %v1221, 0.0
    %v1226 = vmax.f32 %v1223, 0.0
    %1229 = vrot.lane.b32.xlu0 %v1225, 120
    %v1230 = vpop.permute.xlu0 %1229
    %1231 = vrot.lane.b32.xlu0 %v1226, 120
    %v1232 = vpop.permute.xlu0 %1231
    %1235 = vrot.lane.b32.xlu0 %v1225, 112
    %v1236 = vpop.permute.xlu0 %1235
    %1237 = vrot.lane.b32.xlu0 %v1226, 112
    %v1238 = vpop.permute.xlu0 %1237
    %1241 = vrot.lane.b32.xlu0 %v1225, 104
    %v1242 = vpop.permute.xlu0 %1241
    %1243 = vrot.lane.b32.xlu0 %v1226, 104
    %v1244 = vpop.permute.xlu0 %1243
    %1247 = vrot.lane.b32.xlu0 %v1225, 96
    %v1248 = vpop.permute.xlu0 %1247
    %1249 = vrot.lane.b32.xlu0 %v1226, 96
    %v1250 = vpop.permute.xlu0 %1249
    %1253 = vrot.lane.b32.xlu0 %v1225, 88
    %v1254 = vpop.permute.xlu0 %1253
    %1255 = vrot.lane.b32.xlu0 %v1226, 88
    %v1256 = vpop.permute.xlu0 %1255
    %1259 = vrot.lane.b32.xlu0 %v1225, 80
    %v1260 = vpop.permute.xlu0 %1259
    %1261 = vrot.lane.b32.xlu0 %v1226, 80
    %v1262 = vpop.permute.xlu0 %1261
    %1265 = vrot.lane.b32.xlu0 %v1225, 72
    %v1266 = vpop.permute.xlu0 %1265
    %1267 = vrot.lane.b32.xlu0 %v1226, 72
    %v1268 = vpop.permute.xlu0 %1267
    %1271 = vrot.lane.b32.xlu0 %v1225, 64
    %v1272 = vpop.permute.xlu0 %1271
    %1273 = vrot.lane.b32.xlu0 %v1226, 64
    %v1274 = vpop.permute.xlu0 %1273
    %1277 = vrot.lane.b32.xlu0 %v1225, 56
    %v1278 = vpop.permute.xlu0 %1277
    %1279 = vrot.lane.b32.xlu0 %v1226, 56
    %v1280 = vpop.permute.xlu0 %1279
    %1283 = vrot.lane.b32.xlu0 %v1225, 48
    %v1284 = vpop.permute.xlu0 %1283
    %1285 = vrot.lane.b32.xlu0 %v1226, 48
    %v1286 = vpop.permute.xlu0 %1285
    %1289 = vrot.lane.b32.xlu0 %v1225, 40
    %v1290 = vpop.permute.xlu0 %1289
    %1291 = vrot.lane.b32.xlu0 %v1226, 40
    %v1292 = vpop.permute.xlu0 %1291
    %1295 = vrot.lane.b32.xlu0 %v1225, 32
    %v1296 = vpop.permute.xlu0 %1295
    %1297 = vrot.lane.b32.xlu0 %v1226, 32
    %v1298 = vpop.permute.xlu0 %1297
    %1301 = vrot.lane.b32.xlu0 %v1225, 24
    %v1302 = vpop.permute.xlu0 %1301
    %1303 = vrot.lane.b32.xlu0 %v1226, 24
    %v1304 = vpop.permute.xlu0 %1303
    %1307 = vrot.lane.b32.xlu0 %v1225, 16
    %v1308 = vpop.permute.xlu0 %1307
    %1309 = vrot.lane.b32.xlu0 %v1226, 16
    %v1310 = vpop.permute.xlu0 %1309
    %1313 = vrot.lane.b32.xlu0 %v1225, 8
    %v1314 = vpop.permute.xlu0 %1313
    %1315 = vrot.lane.b32.xlu0 %v1226, 8
    %v1316 = vpop.permute.xlu0 %1315
    %v1319 = vrot.slane %v1236, 4
    %vm1320 = vcmask 1047556
    %v1321 = vsel %vm1320, %v1319, %v1225
    %v1322 = vrot.slane %v1225, 4
    %v1323 = vsel %vm1320, %v1236, %v1322
    %v1325 = vunpack.c.l.s4 1983009808
    %v1326 = vunpack.c.0.s8 %v1325
    %v1327 = vperm.slane %v1321, %v1326
    %v1329 = vunpack.c.l.s4 1983009808
    %v1330 = vunpack.c.0.s8 %v1329
    %v1331 = vperm.slane %v1323, %v1330
    %v1332 = vrot.slane %v1242, 4
    %v1333 = vsel %vm1320, %v1332, %v1230
    %v1334 = vrot.slane %v1230, 4
    %v1335 = vsel %vm1320, %v1242, %v1334
    %v1337 = vunpack.c.l.s4 1983009808
    %v1338 = vunpack.c.0.s8 %v1337
    %v1339 = vperm.slane %v1333, %v1338
    %v1341 = vunpack.c.l.s4 1983009808
    %v1342 = vunpack.c.0.s8 %v1341
    %v1343 = vperm.slane %v1335, %v1342
    %v1344 = vrot.slane %v1260, 4
    %v1345 = vsel %vm1320, %v1344, %v1248
    %v1346 = vrot.slane %v1248, 4
    %v1347 = vsel %vm1320, %v1260, %v1346
    %v1349 = vunpack.c.l.s4 1983009808
    %v1350 = vunpack.c.0.s8 %v1349
    %v1351 = vperm.slane %v1345, %v1350
    %v1353 = vunpack.c.l.s4 1983009808
    %v1354 = vunpack.c.0.s8 %v1353
    %v1355 = vperm.slane %v1347, %v1354
    %v1356 = vrot.slane %v1266, 4
    %v1357 = vsel %vm1320, %v1356, %v1254
    %v1358 = vrot.slane %v1254, 4
    %v1359 = vsel %vm1320, %v1266, %v1358
    %v1361 = vunpack.c.l.s4 1983009808
    %v1362 = vunpack.c.0.s8 %v1361
    %v1363 = vperm.slane %v1357, %v1362
    %v1365 = vunpack.c.l.s4 1983009808
    %v1366 = vunpack.c.0.s8 %v1365
    %v1367 = vperm.slane %v1359, %v1366
    %v1368 = vrot.slane %v1339, 4
    %v1369 = vsel %vm1320, %v1368, %v1327
    %v1370 = vrot.slane %v1327, 4
    %v1371 = vsel %vm1320, %v1339, %v1370
    %v1373 = vunpack.c.l.s4 1934713408
    %v1374 = vunpack.c.0.s8 %v1373
    %v1375 = vperm.slane %v1369, %v1374
    %v1377 = vunpack.c.l.s4 1934713408
    %v1378 = vunpack.c.0.s8 %v1377
    %v1379 = vperm.slane %v1371, %v1378
    %v1380 = vrot.slane %v1343, 4
    %v1381 = vsel %vm1320, %v1380, %v1331
    %v1382 = vrot.slane %v1331, 4
    %v1383 = vsel %vm1320, %v1343, %v1382
    %v1385 = vunpack.c.l.s4 1934713408
    %v1386 = vunpack.c.0.s8 %v1385
    %v1387 = vperm.slane %v1381, %v1386
    %v1389 = vunpack.c.l.s4 1934713408
    %v1390 = vunpack.c.0.s8 %v1389
    %v1391 = vperm.slane %v1383, %v1390
    %v1392 = vrot.slane %v1363, 4
    %v1393 = vsel %vm1320, %v1392, %v1351
    %v1394 = vrot.slane %v1351, 4
    %v1395 = vsel %vm1320, %v1363, %v1394
    %v1397 = vunpack.c.l.s4 1934713408
    %v1398 = vunpack.c.0.s8 %v1397
    %v1399 = vperm.slane %v1393, %v1398
    %v1401 = vunpack.c.l.s4 1934713408
    %v1402 = vunpack.c.0.s8 %v1401
    %v1403 = vperm.slane %v1395, %v1402
    %v1404 = vrot.slane %v1367, 4
    %v1405 = vsel %vm1320, %v1404, %v1355
    %v1406 = vrot.slane %v1355, 4
    %v1407 = vsel %vm1320, %v1367, %v1406
    %v1409 = vunpack.c.l.s4 1934713408
    %v1410 = vunpack.c.0.s8 %v1409
    %v1411 = vperm.slane %v1405, %v1410
    %v1413 = vunpack.c.l.s4 1934713408
    %v1414 = vunpack.c.0.s8 %v1413
    %v1415 = vperm.slane %v1407, %v1414
    %v1416 = vrot.slane %v1399, 4
    %v1417 = vsel %vm1320, %v1416, %v1375
    %v1418 = vrot.slane %v1375, 4
    %v1419 = vsel %vm1320, %v1399, %v1418
    %v1420 = vrot.slane %v1403, 4
    %v1421 = vsel %vm1320, %v1420, %v1379
    %v1422 = vrot.slane %v1379, 4
    %v1423 = vsel %vm1320, %v1403, %v1422
    %v1424 = vrot.slane %v1411, 4
    %v1425 = vsel %vm1320, %v1424, %v1387
    %v1426 = vrot.slane %v1387, 4
    %v1427 = vsel %vm1320, %v1411, %v1426
    %v1428 = vrot.slane %v1415, 4
    %v1429 = vsel %vm1320, %v1428, %v1391
    %v1430 = vrot.slane %v1391, 4
    %v1431 = vsel %vm1320, %v1415, %v1430
    %v1432 = vrot.slane %v1284, 4
    %v1433 = vsel %vm1320, %v1432, %v1272
    %v1434 = vrot.slane %v1272, 4
    %v1435 = vsel %vm1320, %v1284, %v1434
    %v1437 = vunpack.c.l.s4 1983009808
    %v1438 = vunpack.c.0.s8 %v1437
    %v1439 = vperm.slane %v1433, %v1438
    %v1441 = vunpack.c.l.s4 1983009808
    %v1442 = vunpack.c.0.s8 %v1441
    %v1443 = vperm.slane %v1435, %v1442
    %v1444 = vrot.slane %v1290, 4
    %v1445 = vsel %vm1320, %v1444, %v1278
    %v1446 = vrot.slane %v1278, 4
    %v1447 = vsel %vm1320, %v1290, %v1446
    %v1449 = vunpack.c.l.s4 1983009808
    %v1450 = vunpack.c.0.s8 %v1449
    %v1451 = vperm.slane %v1445, %v1450
    %v1453 = vunpack.c.l.s4 1983009808
    %v1454 = vunpack.c.0.s8 %v1453
    %v1455 = vperm.slane %v1447, %v1454
    %v1456 = vrot.slane %v1308, 4
    %v1457 = vsel %vm1320, %v1456, %v1296
    %v1458 = vrot.slane %v1296, 4
    %v1459 = vsel %vm1320, %v1308, %v1458
    %v1461 = vunpack.c.l.s4 1983009808
    %v1462 = vunpack.c.0.s8 %v1461
    %v1463 = vperm.slane %v1457, %v1462
    %v1465 = vunpack.c.l.s4 1983009808
    %v1466 = vunpack.c.0.s8 %v1465
    %v1467 = vperm.slane %v1459, %v1466
    %v1468 = vrot.slane %v1314, 4
    %v1469 = vsel %vm1320, %v1468, %v1302
    %v1470 = vrot.slane %v1302, 4
    %v1471 = vsel %vm1320, %v1314, %v1470
    %v1473 = vunpack.c.l.s4 1983009808
    %v1474 = vunpack.c.0.s8 %v1473
    %v1475 = vperm.slane %v1469, %v1474
    %v1477 = vunpack.c.l.s4 1983009808
    %v1478 = vunpack.c.0.s8 %v1477
    %v1479 = vperm.slane %v1471, %v1478
    %v1480 = vrot.slane %v1451, 4
    %v1481 = vsel %vm1320, %v1480, %v1439
    %v1482 = vrot.slane %v1439, 4
    %v1483 = vsel %vm1320, %v1451, %v1482
    %v1485 = vunpack.c.l.s4 1934713408
    %v1486 = vunpack.c.0.s8 %v1485
    %v1487 = vperm.slane %v1481, %v1486
    %v1489 = vunpack.c.l.s4 1934713408
    %v1490 = vunpack.c.0.s8 %v1489
    %v1491 = vperm.slane %v1483, %v1490
    %v1492 = vrot.slane %v1455, 4
    %v1493 = vsel %vm1320, %v1492, %v1443
    %v1494 = vrot.slane %v1443, 4
    %v1495 = vsel %vm1320, %v1455, %v1494
    %v1497 = vunpack.c.l.s4 1934713408
    %v1498 = vunpack.c.0.s8 %v1497
    %v1499 = vperm.slane %v1493, %v1498
    %v1501 = vunpack.c.l.s4 1934713408
    %v1502 = vunpack.c.0.s8 %v1501
    %v1503 = vperm.slane %v1495, %v1502
    %v1504 = vrot.slane %v1475, 4
    %v1505 = vsel %vm1320, %v1504, %v1463
    %v1506 = vrot.slane %v1463, 4
    %v1507 = vsel %vm1320, %v1475, %v1506
    %v1509 = vunpack.c.l.s4 1934713408
    %v1510 = vunpack.c.0.s8 %v1509
    %v1511 = vperm.slane %v1505, %v1510
    %v1513 = vunpack.c.l.s4 1934713408
    %v1514 = vunpack.c.0.s8 %v1513
    %v1515 = vperm.slane %v1507, %v1514
    %v1516 = vrot.slane %v1479, 4
    %v1517 = vsel %vm1320, %v1516, %v1467
    %v1518 = vrot.slane %v1467, 4
    %v1519 = vsel %vm1320, %v1479, %v1518
    %v1521 = vunpack.c.l.s4 1934713408
    %v1522 = vunpack.c.0.s8 %v1521
    %v1523 = vperm.slane %v1517, %v1522
    %v1525 = vunpack.c.l.s4 1934713408
    %v1526 = vunpack.c.0.s8 %v1525
    %v1527 = vperm.slane %v1519, %v1526
    %v1528 = vrot.slane %v1511, 4
    %v1529 = vsel %vm1320, %v1528, %v1487
    %v1530 = vrot.slane %v1487, 4
    %v1531 = vsel %vm1320, %v1511, %v1530
    %v1532 = vrot.slane %v1515, 4
    %v1533 = vsel %vm1320, %v1532, %v1491
    %v1534 = vrot.slane %v1491, 4
    %v1535 = vsel %vm1320, %v1515, %v1534
    %v1536 = vrot.slane %v1523, 4
    %v1537 = vsel %vm1320, %v1536, %v1499
    %v1538 = vrot.slane %v1499, 4
    %v1539 = vsel %vm1320, %v1523, %v1538
    %v1540 = vrot.slane %v1527, 4
    %v1541 = vsel %vm1320, %v1540, %v1503
    %v1542 = vrot.slane %v1503, 4
    %v1543 = vsel %vm1320, %v1527, %v1542
    %v1544 = vrot.slane %v1238, 4
    %v1545 = vsel %vm1320, %v1544, %v1226
    %v1547 = vunpack.c.l.s4 1983009808
    %v1548 = vunpack.c.0.s8 %v1547
    %v1549 = vperm.slane %v1545, %v1548
    %v1550 = vrot.slane %v1244, 4
    %v1551 = vsel %vm1320, %v1550, %v1232
    %v1553 = vunpack.c.l.s4 1983009808
    %v1554 = vunpack.c.0.s8 %v1553
    %v1555 = vperm.slane %v1551, %v1554
    %v1556 = vrot.slane %v1262, 4
    %v1557 = vsel %vm1320, %v1556, %v1250
    %v1559 = vunpack.c.l.s4 1983009808
    %v1560 = vunpack.c.0.s8 %v1559
    %v1561 = vperm.slane %v1557, %v1560
    %v1562 = vrot.slane %v1268, 4
    %v1563 = vsel %vm1320, %v1562, %v1256
    %v1565 = vunpack.c.l.s4 1983009808
    %v1566 = vunpack.c.0.s8 %v1565
    %v1567 = vperm.slane %v1563, %v1566
    %v1568 = vrot.slane %v1555, 4
    %v1569 = vsel %vm1320, %v1568, %v1549
    %v1570 = vrot.slane %v1549, 4
    %v1571 = vsel %vm1320, %v1555, %v1570
    %v1573 = vunpack.c.l.s4 1934713408
    %v1574 = vunpack.c.0.s8 %v1573
    %v1575 = vperm.slane %v1569, %v1574
    %v1577 = vunpack.c.l.s4 1934713408
    %v1578 = vunpack.c.0.s8 %v1577
    %v1579 = vperm.slane %v1571, %v1578
    %v1580 = vrot.slane %v1567, 4
    %v1581 = vsel %vm1320, %v1580, %v1561
    %v1582 = vrot.slane %v1561, 4
    %v1583 = vsel %vm1320, %v1567, %v1582
    %v1585 = vunpack.c.l.s4 1934713408
    %v1586 = vunpack.c.0.s8 %v1585
    %v1587 = vperm.slane %v1581, %v1586
    %v1589 = vunpack.c.l.s4 1934713408
    %v1590 = vunpack.c.0.s8 %v1589
    %v1591 = vperm.slane %v1583, %v1590
    %v1592 = vrot.slane %v1587, 4
    %v1593 = vsel %vm1320, %v1592, %v1575
    %v1594 = vrot.slane %v1575, 4
    %v1595 = vsel %vm1320, %v1587, %v1594
    %v1596 = vrot.slane %v1591, 4
    %v1597 = vsel %vm1320, %v1596, %v1579
    %v1598 = vrot.slane %v1579, 4
    %v1599 = vsel %vm1320, %v1591, %v1598
    %v1600 = vrot.slane %v1286, 4
    %v1601 = vsel %vm1320, %v1600, %v1274
    %v1603 = vunpack.c.l.s4 1983009808
    %v1604 = vunpack.c.0.s8 %v1603
    %v1605 = vperm.slane %v1601, %v1604
    %v1606 = vrot.slane %v1292, 4
    %v1607 = vsel %vm1320, %v1606, %v1280
    %v1609 = vunpack.c.l.s4 1983009808
    %v1610 = vunpack.c.0.s8 %v1609
    %v1611 = vperm.slane %v1607, %v1610
    %v1612 = vrot.slane %v1310, 4
    %v1613 = vsel %vm1320, %v1612, %v1298
    %v1615 = vunpack.c.l.s4 1983009808
    %v1616 = vunpack.c.0.s8 %v1615
    %v1617 = vperm.slane %v1613, %v1616
    %v1618 = vrot.slane %v1316, 4
    %v1619 = vsel %vm1320, %v1618, %v1304
    %v1621 = vunpack.c.l.s4 1983009808
    %v1622 = vunpack.c.0.s8 %v1621
    %v1623 = vperm.slane %v1619, %v1622
    %v1624 = vrot.slane %v1611, 4
    %v1625 = vsel %vm1320, %v1624, %v1605
    %v1626 = vrot.slane %v1605, 4
    %v1627 = vsel %vm1320, %v1611, %v1626
    %v1629 = vunpack.c.l.s4 1934713408
    %v1630 = vunpack.c.0.s8 %v1629
    %v1631 = vperm.slane %v1625, %v1630
    %v1633 = vunpack.c.l.s4 1934713408
    %v1634 = vunpack.c.0.s8 %v1633
    %v1635 = vperm.slane %v1627, %v1634
    %v1636 = vrot.slane %v1623, 4
    %v1637 = vsel %vm1320, %v1636, %v1617
    %v1638 = vrot.slane %v1617, 4
    %v1639 = vsel %vm1320, %v1623, %v1638
    %v1641 = vunpack.c.l.s4 1934713408
    %v1642 = vunpack.c.0.s8 %v1641
    %v1643 = vperm.slane %v1637, %v1642
    %v1645 = vunpack.c.l.s4 1934713408
    %v1646 = vunpack.c.0.s8 %v1645
    %v1647 = vperm.slane %v1639, %v1646
    %v1648 = vrot.slane %v1643, 4
    %v1649 = vsel %vm1320, %v1648, %v1631
    %v1650 = vrot.slane %v1631, 4
    %v1651 = vsel %vm1320, %v1643, %v1650
    %v1652 = vrot.slane %v1647, 4
    %v1653 = vsel %vm1320, %v1652, %v1635
    %v1654 = vrot.slane %v1635, 4
    %v1655 = vsel %vm1320, %v1647, %v1654
    %v1656 = vld [vmem:[%s9] sm:$0x1]
    %v1657 = vld [vmem:[#allocation8] sm:$0x1]
    %v1658 = vld [vmem:[%s7] sm:$0xff]
    %vm1659 = vcmask 64512
    %v1661 = vsel %vm1659, %v1417, 0
    %v1664 = vsel %vm1659, %v1529, 0
    %v1667 = vsel %vm1659, %v1419, 0
    %v1670 = vsel %vm1659, %v1531, 0
    %v1673 = vsel %vm1659, %v1421, 0
    %v1676 = vsel %vm1659, %v1533, 0
    %v1679 = vsel %vm1659, %v1423, 0
    %v1682 = vsel %vm1659, %v1535, 0
    %v1685 = vsel %vm1659, %v1429, 0
    %v1688 = vsel %vm1659, %v1541, 0
    %v1691 = vsel %vm1659, %v1431, 0
    %v1694 = vsel %vm1659, %v1543, 0
    %v1697 = vsel %vm1659, %v1593, 0
    %v1700 = vsel %vm1659, %v1649, 0
    %v1703 = vsel %vm1659, %v1595, 0
    %v1706 = vsel %vm1659, %v1651, 0
    %1708 = vmatpush.msra.mxu0 0.0
    %1709 = vmatpush.msra.mxu0 0.0
    %1710 = vmatpush.msra.mxu0 0.0
    %1711 = vmatpush.msra.mxu0 0.0
    %1712 = vmatpush.msra.mxu0 0.0
    %1713 = vmatpush.msra.mxu0 0.0
    %1714 = vmatpush.msra.mxu0 0.0
    %1715 = vmatpush.msra.mxu0 0.0
    %1716 = vmatpush.msra.mxu0 0.0
    %1717 = vmatpush.msra.mxu0 0.0
    %1718 = vmatpush.msra.mxu0 0.0
    %1719 = vmatpush.msra.mxu0 0.0
    %1720 = vmatpush.msra.mxu0 0.0
    %1721 = vmatpush.msra.mxu0 0.0
    %1722 = vmatpush.msra.mxu0 0.0
    %1723 = vmatpush.msra.mxu0 %v1658
    %1724 = vmatmul.f32.gmra.mxu0 %v1661
    %v1725 = vpop.f32.mrf.mxu0
    %v1726 = vadd.f32 0.0, %v1725
    %1727 = vmatmul.f32.gmra.mxu0 %v1664
    %v1728 = vpop.f32.mrf.mxu0
    %v1729 = vadd.f32 0.0, %v1728
    %1730 = vmatmul.f32.gmra.mxu0 %v1667
    %v1731 = vpop.f32.mrf.mxu0
    %v1732 = vadd.f32 0.0, %v1731
    %1733 = vmatmul.f32.gmra.mxu0 %v1670
    %v1734 = vpop.f32.mrf.mxu0
    %v1735 = vadd.f32 0.0, %v1734
    %1736 = vmatmul.f32.gmra.mxu0 %v1673
    %v1737 = vpop.f32.mrf.mxu0
    %v1738 = vadd.f32 0.0, %v1737
    %1739 = vmatmul.f32.gmra.mxu0 %v1676
    %v1740 = vpop.f32.mrf.mxu0
    %v1741 = vadd.f32 0.0, %v1740
    %1742 = vmatmul.f32.gmra.mxu0 %v1679
    %v1743 = vpop.f32.mrf.mxu0
    %v1744 = vadd.f32 0.0, %v1743
    %1745 = vmatmul.f32.gmra.mxu0 %v1682
    %v1746 = vpop.f32.mrf.mxu0
    %v1747 = vadd.f32 0.0, %v1746
    %1748 = vmatmul.f32.gmra.mxu0 %v1685
    %v1749 = vpop.f32.mrf.mxu0
    %v1750 = vadd.f32 0.0, %v1749
    %1751 = vmatmul.f32.gmra.mxu0 %v1688
    %v1752 = vpop.f32.mrf.mxu0
    %v1753 = vadd.f32 0.0, %v1752
    %1754 = vmatmul.f32.gmra.mxu0 %v1691
    %v1755 = vpop.f32.mrf.mxu0
    %v1756 = vadd.f32 0.0, %v1755
    %1757 = vmatmul.f32.gmra.mxu0 %v1694
    %v1758 = vpop.f32.mrf.mxu0
    %v1759 = vadd.f32 0.0, %v1758
    %1760 = vmatmul.f32.gmra.mxu0 %v1697
    %v1761 = vpop.f32.mrf.mxu0
    %v1762 = vadd.f32 0.0, %v1761
    %1763 = vmatmul.f32.gmra.mxu0 %v1700
    %v1764 = vpop.f32.mrf.mxu0
    %v1765 = vadd.f32 0.0, %v1764
    %1766 = vmatmul.f32.gmra.mxu0 %v1703
    %v1767 = vpop.f32.mrf.mxu0
    %v1768 = vadd.f32 0.0, %v1767
    %1769 = vmatmul.f32.gmra.mxu0 %v1706
    %v1770 = vpop.f32.mrf.mxu0
    %v1771 = vadd.f32 0.0, %v1770
    %1772 = vdwg.mxu0
    %v1774 = vperm.slane %v1656, 0
    %v1776 = vadd.f32 %v1774, %v1726
    %v1777 = vadd.f32 %v1774, %v1729
    %v1778 = vadd.f32 %v1774, %v1732
    %v1779 = vadd.f32 %v1774, %v1735
    %v1780 = vadd.f32 %v1774, %v1738
    %v1781 = vadd.f32 %v1774, %v1741
    %v1782 = vadd.f32 %v1774, %v1744
    %v1783 = vadd.f32 %v1774, %v1747
    %v1784 = vadd.f32 %v1774, %v1750
    %v1785 = vadd.f32 %v1774, %v1753
    %v1786 = vadd.f32 %v1774, %v1756
    %v1787 = vadd.f32 %v1774, %v1759
    %v1788 = vadd.f32 %v1774, %v1762
    %v1789 = vadd.f32 %v1774, %v1765
    %v1790 = vadd.f32 %v1774, %v1768
    %v1791 = vadd.f32 %v1774, %v1771
    %v1792 = vld [vmem:[#allocation7] sm:$0xff]
    %1793 = vmatpush.msra.mxu0 0.0
    %1794 = vmatpush.msra.mxu0 0.0
    %1795 = vmatpush.msra.mxu0 0.0
    %1796 = vmatpush.msra.mxu0 0.0
    %1797 = vmatpush.msra.mxu0 0.0
    %1798 = vmatpush.msra.mxu0 0.0
    %1799 = vmatpush.msra.mxu0 0.0
    %1800 = vmatpush.msra.mxu0 0.0
    %1801 = vmatpush.msra.mxu0 0.0
    %1802 = vmatpush.msra.mxu0 0.0
    %1803 = vmatpush.msra.mxu0 0.0
    %1804 = vmatpush.msra.mxu0 0.0
    %1805 = vmatpush.msra.mxu0 0.0
    %1806 = vmatpush.msra.mxu0 0.0
    %1807 = vmatpush.msra.mxu0 0.0
    %1808 = vmatpush.msra.mxu0 %v1792
    %1809 = vmatmul.f32.gmra.mxu0 %v1661
    %v1810 = vpop.f32.mrf.mxu0
    %v1811 = vadd.f32 0.0, %v1810
    %1812 = vmatmul.f32.gmra.mxu0 %v1664
    %v1813 = vpop.f32.mrf.mxu0
    %v1814 = vadd.f32 0.0, %v1813
    %1815 = vmatmul.f32.gmra.mxu0 %v1667
    %v1816 = vpop.f32.mrf.mxu0
    %v1817 = vadd.f32 0.0, %v1816
    %1818 = vmatmul.f32.gmra.mxu0 %v1670
    %v1819 = vpop.f32.mrf.mxu0
    %v1820 = vadd.f32 0.0, %v1819
    %1821 = vmatmul.f32.gmra.mxu0 %v1673
    %v1822 = vpop.f32.mrf.mxu0
    %v1823 = vadd.f32 0.0, %v1822
    %1824 = vmatmul.f32.gmra.mxu0 %v1676
    %v1825 = vpop.f32.mrf.mxu0
    %v1826 = vadd.f32 0.0, %v1825
    %1827 = vmatmul.f32.gmra.mxu0 %v1679
    %v1828 = vpop.f32.mrf.mxu0
    %v1829 = vadd.f32 0.0, %v1828
    %1830 = vmatmul.f32.gmra.mxu0 %v1682
    %v1831 = vpop.f32.mrf.mxu0
    %v1832 = vadd.f32 0.0, %v1831
    %1833 = vmatmul.f32.gmra.mxu0 %v1685
    %v1834 = vpop.f32.mrf.mxu0
    %v1835 = vadd.f32 0.0, %v1834
    %1836 = vmatmul.f32.gmra.mxu0 %v1688
    %v1837 = vpop.f32.mrf.mxu0
    %v1838 = vadd.f32 0.0, %v1837
    %1839 = vmatmul.f32.gmra.mxu0 %v1691
    %v1840 = vpop.f32.mrf.mxu0
    %v1841 = vadd.f32 0.0, %v1840
    %1842 = vmatmul.f32.gmra.mxu0 %v1694
    %v1843 = vpop.f32.mrf.mxu0
    %v1844 = vadd.f32 0.0, %v1843
    %1845 = vmatmul.f32.gmra.mxu0 %v1697
    %v1846 = vpop.f32.mrf.mxu0
    %v1847 = vadd.f32 0.0, %v1846
    %1848 = vmatmul.f32.gmra.mxu0 %v1700
    %v1849 = vpop.f32.mrf.mxu0
    %v1850 = vadd.f32 0.0, %v1849
    %1851 = vmatmul.f32.gmra.mxu0 %v1703
    %v1852 = vpop.f32.mrf.mxu0
    %v1853 = vadd.f32 0.0, %v1852
    %1854 = vmatmul.f32.gmra.mxu0 %v1706
    %v1855 = vpop.f32.mrf.mxu0
    %v1856 = vadd.f32 0.0, %v1855
    %1857 = vdwg.mxu0
    %v1859 = vperm.slane %v1657, 0
    %v1861 = vadd.f32 %v1859, %v1811
    %v1862 = vadd.f32 %v1859, %v1814
    %v1863 = vadd.f32 %v1859, %v1817
    %v1864 = vadd.f32 %v1859, %v1820
    %v1865 = vadd.f32 %v1859, %v1823
    %v1866 = vadd.f32 %v1859, %v1826
    %v1867 = vadd.f32 %v1859, %v1829
    %v1868 = vadd.f32 %v1859, %v1832
    %v1869 = vadd.f32 %v1859, %v1835
    %v1870 = vadd.f32 %v1859, %v1838
    %v1871 = vadd.f32 %v1859, %v1841
    %v1872 = vadd.f32 %v1859, %v1844
    %v1873 = vadd.f32 %v1859, %v1847
    %v1874 = vadd.f32 %v1859, %v1850
    %v1875 = vadd.f32 %v1859, %v1853
    %v1876 = vadd.f32 %v1859, %v1856
    %s1877 = scalar_lea.vmem %s7, 8
    %v1878 = vld [vmem:[%s1877] sm:$0xff]
    %v1880 = vsel %vm1659, %v1425, 0
    %v1883 = vsel %vm1659, %v1537, 0
    %v1886 = vsel %vm1659, %v1597, 0
    %v1889 = vsel %vm1659, %v1653, 0
    %1891 = vmatpush.msra.mxu0 0.0
    %1892 = vmatpush.msra.mxu0 0.0
    %1893 = vmatpush.msra.mxu0 0.0
    %1894 = vmatpush.msra.mxu0 0.0
    %1895 = vmatpush.msra.mxu0 0.0
    %1896 = vmatpush.msra.mxu0 0.0
    %1897 = vmatpush.msra.mxu0 0.0
    %1898 = vmatpush.msra.mxu0 0.0
    %1899 = vmatpush.msra.mxu0 0.0
    %1900 = vmatpush.msra.mxu0 0.0
    %1901 = vmatpush.msra.mxu0 0.0
    %1902 = vmatpush.msra.mxu0 0.0
    %1903 = vmatpush.msra.mxu0 0.0
    %1904 = vmatpush.msra.mxu0 0.0
    %1905 = vmatpush.msra.mxu0 0.0
    %1906 = vmatpush.msra.mxu0 %v1878
    %1907 = vmatmul.f32.gmra.mxu0 %v1667
    %v1908 = vpop.f32.mrf.mxu0
    %v1909 = vadd.f32 0.0, %v1908
    %1910 = vmatmul.f32.gmra.mxu0 %v1670
    %v1911 = vpop.f32.mrf.mxu0
    %v1912 = vadd.f32 0.0, %v1911
    %1913 = vmatmul.f32.gmra.mxu0 %v1673
    %v1914 = vpop.f32.mrf.mxu0
    %v1915 = vadd.f32 0.0, %v1914
    %1916 = vmatmul.f32.gmra.mxu0 %v1676
    %v1917 = vpop.f32.mrf.mxu0
    %v1918 = vadd.f32 0.0, %v1917
    %1919 = vmatmul.f32.gmra.mxu0 %v1679
    %v1920 = vpop.f32.mrf.mxu0
    %v1921 = vadd.f32 0.0, %v1920
    %1922 = vmatmul.f32.gmra.mxu0 %v1682
    %v1923 = vpop.f32.mrf.mxu0
    %v1924 = vadd.f32 0.0, %v1923
    %1925 = vmatmul.f32.gmra.mxu0 %v1880
    %v1926 = vpop.f32.mrf.mxu0
    %v1927 = vadd.f32 0.0, %v1926
    %1928 = vmatmul.f32.gmra.mxu0 %v1883
    %v1929 = vpop.f32.mrf.mxu0
    %v1930 = vadd.f32 0.0, %v1929
    %1931 = vmatmul.f32.gmra.mxu0 %v1691
    %v1932 = vpop.f32.mrf.mxu0
    %v1933 = vadd.f32 0.0, %v1932
    %1934 = vmatmul.f32.gmra.mxu0 %v1694
    %v1935 = vpop.f32.mrf.mxu0
    %v1936 = vadd.f32 0.0, %v1935
    %1937 = vmatmul.f32.gmra.mxu0 %v1697
    %v1938 = vpop.f32.mrf.mxu0
    %v1939 = vadd.f32 0.0, %v1938
    %1940 = vmatmul.f32.gmra.mxu0 %v1700
    %v1941 = vpop.f32.mrf.mxu0
    %v1942 = vadd.f32 0.0, %v1941
    %1943 = vmatmul.f32.gmra.mxu0 %v1703
    %v1944 = vpop.f32.mrf.mxu0
    %v1945 = vadd.f32 0.0, %v1944
    %1946 = vmatmul.f32.gmra.mxu0 %v1706
    %v1947 = vpop.f32.mrf.mxu0
    %v1948 = vadd.f32 0.0, %v1947
    %1949 = vmatmul.f32.gmra.mxu0 %v1886
    %v1950 = vpop.f32.mrf.mxu0
    %v1951 = vadd.f32 0.0, %v1950
    %1952 = vmatmul.f32.gmra.mxu0 %v1889
    %v1953 = vpop.f32.mrf.mxu0
    %v1954 = vadd.f32 0.0, %v1953
    %1955 = vdwg.mxu0
    %v1956 = vadd.f32 %v1776, %v1909
    %v1957 = vadd.f32 %v1777, %v1912
    %v1958 = vadd.f32 %v1778, %v1915
    %v1959 = vadd.f32 %v1779, %v1918
    %v1960 = vadd.f32 %v1780, %v1921
    %v1961 = vadd.f32 %v1781, %v1924
    %v1962 = vadd.f32 %v1782, %v1927
    %v1963 = vadd.f32 %v1783, %v1930
    %v1964 = vadd.f32 %v1784, %v1933
    %v1965 = vadd.f32 %v1785, %v1936
    %v1966 = vadd.f32 %v1786, %v1939
    %v1967 = vadd.f32 %v1787, %v1942
    %v1968 = vadd.f32 %v1788, %v1945
    %v1969 = vadd.f32 %v1789, %v1948
    %v1970 = vadd.f32 %v1790, %v1951
    %v1971 = vadd.f32 %v1791, %v1954
    %s1972 = scalar_lea.vmem [#allocation7], 8
    %v1973 = vld [vmem:[%s1972] sm:$0xff]
    %1974 = vmatpush.msra.mxu0 0.0
    %1975 = vmatpush.msra.mxu0 0.0
    %1976 = vmatpush.msra.mxu0 0.0
    %1977 = vmatpush.msra.mxu0 0.0
    %1978 = vmatpush.msra.mxu0 0.0
    %1979 = vmatpush.msra.mxu0 0.0
    %1980 = vmatpush.msra.mxu0 0.0
    %1981 = vmatpush.msra.mxu0 0.0
    %1982 = vmatpush.msra.mxu0 0.0
    %1983 = vmatpush.msra.mxu0 0.0
    %1984 = vmatpush.msra.mxu0 0.0
    %1985 = vmatpush.msra.mxu0 0.0
    %1986 = vmatpush.msra.mxu0 0.0
    %1987 = vmatpush.msra.mxu0 0.0
    %1988 = vmatpush.msra.mxu0 0.0
    %1989 = vmatpush.msra.mxu0 %v1973
    %1990 = vmatmul.f32.gmra.mxu0 %v1667
    %v1991 = vpop.f32.mrf.mxu0
    %v1992 = vadd.f32 0.0, %v1991
    %1993 = vmatmul.f32.gmra.mxu0 %v1670
    %v1994 = vpop.f32.mrf.mxu0
    %v1995 = vadd.f32 0.0, %v1994
    %1996 = vmatmul.f32.gmra.mxu0 %v1673
    %v1997 = vpop.f32.mrf.mxu0
    %v1998 = vadd.f32 0.0, %v1997
    %1999 = vmatmul.f32.gmra.mxu0 %v1676
    %v2000 = vpop.f32.mrf.mxu0
    %v2001 = vadd.f32 0.0, %v2000
    %2002 = vmatmul.f32.gmra.mxu0 %v1679
    %v2003 = vpop.f32.mrf.mxu0
    %v2004 = vadd.f32 0.0, %v2003
    %2005 = vmatmul.f32.gmra.mxu0 %v1682
    %v2006 = vpop.f32.mrf.mxu0
    %v2007 = vadd.f32 0.0, %v2006
    %2008 = vmatmul.f32.gmra.mxu0 %v1880
    %v2009 = vpop.f32.mrf.mxu0
    %v2010 = vadd.f32 0.0, %v2009
    %2011 = vmatmul.f32.gmra.mxu0 %v1883
    %v2012 = vpop.f32.mrf.mxu0
    %v2013 = vadd.f32 0.0, %v2012
    %2014 = vmatmul.f32.gmra.mxu0 %v1691
    %v2015 = vpop.f32.mrf.mxu0
    %v2016 = vadd.f32 0.0, %v2015
    %2017 = vmatmul.f32.gmra.mxu0 %v1694
    %v2018 = vpop.f32.mrf.mxu0
    %v2019 = vadd.f32 0.0, %v2018
    %2020 = vmatmul.f32.gmra.mxu0 %v1697
    %v2021 = vpop.f32.mrf.mxu0
    %v2022 = vadd.f32 0.0, %v2021
    %2023 = vmatmul.f32.gmra.mxu0 %v1700
    %v2024 = vpop.f32.mrf.mxu0
    %v2025 = vadd.f32 0.0, %v2024
    %2026 = vmatmul.f32.gmra.mxu0 %v1703
    %v2027 = vpop.f32.mrf.mxu0
    %v2028 = vadd.f32 0.0, %v2027
    %2029 = vmatmul.f32.gmra.mxu0 %v1706
    %v2030 = vpop.f32.mrf.mxu0
    %v2031 = vadd.f32 0.0, %v2030
    %2032 = vmatmul.f32.gmra.mxu0 %v1886
    %v2033 = vpop.f32.mrf.mxu0
    %v2034 = vadd.f32 0.0, %v2033
    %2035 = vmatmul.f32.gmra.mxu0 %v1889
    %v2036 = vpop.f32.mrf.mxu0
    %v2037 = vadd.f32 0.0, %v2036
    %2038 = vdwg.mxu0
    %v2039 = vadd.f32 %v1861, %v1992
    %v2040 = vadd.f32 %v1862, %v1995
    %v2041 = vadd.f32 %v1863, %v1998
    %v2042 = vadd.f32 %v1864, %v2001
    %v2043 = vadd.f32 %v1865, %v2004
    %v2044 = vadd.f32 %v1866, %v2007
    %v2045 = vadd.f32 %v1867, %v2010
    %v2046 = vadd.f32 %v1868, %v2013
    %v2047 = vadd.f32 %v1869, %v2016
    %v2048 = vadd.f32 %v1870, %v2019
    %v2049 = vadd.f32 %v1871, %v2022
    %v2050 = vadd.f32 %v1872, %v2025
    %v2051 = vadd.f32 %v1873, %v2028
    %v2052 = vadd.f32 %v1874, %v2031
    %v2053 = vadd.f32 %v1875, %v2034
    %v2054 = vadd.f32 %v1876, %v2037
    %s2055 = scalar_lea.vmem %s7, 16
    %v2056 = vld [vmem:[%s2055] sm:$0xff]
    %v2058 = vsel %vm1659, %v1427, 0
    %v2061 = vsel %vm1659, %v1539, 0
    %v2064 = vsel %vm1659, %v1599, 0
    %v2067 = vsel %vm1659, %v1655, 0
    %2069 = vmatpush.msra.mxu0 0.0
    %2070 = vmatpush.msra.mxu0 0.0
    %2071 = vmatpush.msra.mxu0 0.0
    %2072 = vmatpush.msra.mxu0 0.0
    %2073 = vmatpush.msra.mxu0 0.0
    %2074 = vmatpush.msra.mxu0 0.0
    %2075 = vmatpush.msra.mxu0 0.0
    %2076 = vmatpush.msra.mxu0 0.0
    %2077 = vmatpush.msra.mxu0 0.0
    %2078 = vmatpush.msra.mxu0 0.0
    %2079 = vmatpush.msra.mxu0 0.0
    %2080 = vmatpush.msra.mxu0 0.0
    %2081 = vmatpush.msra.mxu0 0.0
    %2082 = vmatpush.msra.mxu0 0.0
    %2083 = vmatpush.msra.mxu0 0.0
    %2084 = vmatpush.msra.mxu0 %v2056
    %2085 = vmatmul.f32.gmra.mxu0 %v1673
    %v2086 = vpop.f32.mrf.mxu0
    %v2087 = vadd.f32 0.0, %v2086
    %2088 = vmatmul.f32.gmra.mxu0 %v1676
    %v2089 = vpop.f32.mrf.mxu0
    %v2090 = vadd.f32 0.0, %v2089
    %2091 = vmatmul.f32.gmra.mxu0 %v1679
    %v2092 = vpop.f32.mrf.mxu0
    %v2093 = vadd.f32 0.0, %v2092
    %2094 = vmatmul.f32.gmra.mxu0 %v1682
    %v2095 = vpop.f32.mrf.mxu0
    %v2096 = vadd.f32 0.0, %v2095
    %2097 = vmatmul.f32.gmra.mxu0 %v1880
    %v2098 = vpop.f32.mrf.mxu0
    %v2099 = vadd.f32 0.0, %v2098
    %2100 = vmatmul.f32.gmra.mxu0 %v1883
    %v2101 = vpop.f32.mrf.mxu0
    %v2102 = vadd.f32 0.0, %v2101
    %2103 = vmatmul.f32.gmra.mxu0 %v2058
    %v2104 = vpop.f32.mrf.mxu0
    %v2105 = vadd.f32 0.0, %v2104
    %2106 = vmatmul.f32.gmra.mxu0 %v2061
    %v2107 = vpop.f32.mrf.mxu0
    %v2108 = vadd.f32 0.0, %v2107
    %2109 = vmatmul.f32.gmra.mxu0 %v1697
    %v2110 = vpop.f32.mrf.mxu0
    %v2111 = vadd.f32 0.0, %v2110
    %2112 = vmatmul.f32.gmra.mxu0 %v1700
    %v2113 = vpop.f32.mrf.mxu0
    %v2114 = vadd.f32 0.0, %v2113
    %2115 = vmatmul.f32.gmra.mxu0 %v1703
    %v2116 = vpop.f32.mrf.mxu0
    %v2117 = vadd.f32 0.0, %v2116
    %2118 = vmatmul.f32.gmra.mxu0 %v1706
    %v2119 = vpop.f32.mrf.mxu0
    %v2120 = vadd.f32 0.0, %v2119
    %2121 = vmatmul.f32.gmra.mxu0 %v1886
    %v2122 = vpop.f32.mrf.mxu0
    %v2123 = vadd.f32 0.0, %v2122
    %2124 = vmatmul.f32.gmra.mxu0 %v1889
    %v2125 = vpop.f32.mrf.mxu0
    %v2126 = vadd.f32 0.0, %v2125
    %2127 = vmatmul.f32.gmra.mxu0 %v2064
    %v2128 = vpop.f32.mrf.mxu0
    %v2129 = vadd.f32 0.0, %v2128
    %2130 = vmatmul.f32.gmra.mxu0 %v2067
    %v2131 = vpop.f32.mrf.mxu0
    %v2132 = vadd.f32 0.0, %v2131
    %2133 = vdwg.mxu0
    %v2134 = vadd.f32 %v1956, %v2087
    %v2135 = vadd.f32 %v1957, %v2090
    %v2136 = vadd.f32 %v1958, %v2093
    %v2137 = vadd.f32 %v1959, %v2096
    %v2138 = vadd.f32 %v1960, %v2099
    %v2139 = vadd.f32 %v1961, %v2102
    %v2140 = vadd.f32 %v1962, %v2105
    %v2141 = vadd.f32 %v1963, %v2108
    %v2142 = vadd.f32 %v1964, %v2111
    %v2143 = vadd.f32 %v1965, %v2114
    %v2144 = vadd.f32 %v1966, %v2117
    %v2145 = vadd.f32 %v1967, %v2120
    %v2146 = vadd.f32 %v1968, %v2123
    %v2147 = vadd.f32 %v1969, %v2126
    %v2148 = vadd.f32 %v1970, %v2129
    %v2149 = vadd.f32 %v1971, %v2132
    %s2150 = scalar_lea.vmem [#allocation7], 16
    %v2151 = vld [vmem:[%s2150] sm:$0xff]
    %2152 = vmatpush.msra.mxu0 0.0
    %2153 = vmatpush.msra.mxu0 0.0
    %2154 = vmatpush.msra.mxu0 0.0
    %2155 = vmatpush.msra.mxu0 0.0
    %2156 = vmatpush.msra.mxu0 0.0
    %2157 = vmatpush.msra.mxu0 0.0
    %2158 = vmatpush.msra.mxu0 0.0
    %2159 = vmatpush.msra.mxu0 0.0
    %2160 = vmatpush.msra.mxu0 0.0
    %2161 = vmatpush.msra.mxu0 0.0
    %2162 = vmatpush.msra.mxu0 0.0
    %2163 = vmatpush.msra.mxu0 0.0
    %2164 = vmatpush.msra.mxu0 0.0
    %2165 = vmatpush.msra.mxu0 0.0
    %2166 = vmatpush.msra.mxu0 0.0
    %2167 = vmatpush.msra.mxu0 %v2151
    %2168 = vmatmul.f32.gmra.mxu0 %v1673
    %v2169 = vpop.f32.mrf.mxu0
    %v2170 = vadd.f32 0.0, %v2169
    %2171 = vmatmul.f32.gmra.mxu0 %v1676
    %v2172 = vpop.f32.mrf.mxu0
    %v2173 = vadd.f32 0.0, %v2172
    %2174 = vmatmul.f32.gmra.mxu0 %v1679
    %v2175 = vpop.f32.mrf.mxu0
    %v2176 = vadd.f32 0.0, %v2175
    %2177 = vmatmul.f32.gmra.mxu0 %v1682
    %v2178 = vpop.f32.mrf.mxu0
    %v2179 = vadd.f32 0.0, %v2178
    %2180 = vmatmul.f32.gmra.mxu0 %v1880
    %v2181 = vpop.f32.mrf.mxu0
    %v2182 = vadd.f32 0.0, %v2181
    %2183 = vmatmul.f32.gmra.mxu0 %v1883
    %v2184 = vpop.f32.mrf.mxu0
    %v2185 = vadd.f32 0.0, %v2184
    %2186 = vmatmul.f32.gmra.mxu0 %v2058
    %v2187 = vpop.f32.mrf.mxu0
    %v2188 = vadd.f32 0.0, %v2187
    %2189 = vmatmul.f32.gmra.mxu0 %v2061
    %v2190 = vpop.f32.mrf.mxu0
    %v2191 = vadd.f32 0.0, %v2190
    %2192 = vmatmul.f32.gmra.mxu0 %v1697
    %v2193 = vpop.f32.mrf.mxu0
    %v2194 = vadd.f32 0.0, %v2193
    %2195 = vmatmul.f32.gmra.mxu0 %v1700
    %v2196 = vpop.f32.mrf.mxu0
    %v2197 = vadd.f32 0.0, %v2196
    %2198 = vmatmul.f32.gmra.mxu0 %v1703
    %v2199 = vpop.f32.mrf.mxu0
    %v2200 = vadd.f32 0.0, %v2199
    %2201 = vmatmul.f32.gmra.mxu0 %v1706
    %v2202 = vpop.f32.mrf.mxu0
    %v2203 = vadd.f32 0.0, %v2202
    %2204 = vmatmul.f32.gmra.mxu0 %v1886
    %v2205 = vpop.f32.mrf.mxu0
    %v2206 = vadd.f32 0.0, %v2205
    %2207 = vmatmul.f32.gmra.mxu0 %v1889
    %v2208 = vpop.f32.mrf.mxu0
    %v2209 = vadd.f32 0.0, %v2208
    %2210 = vmatmul.f32.gmra.mxu0 %v2064
    %v2211 = vpop.f32.mrf.mxu0
    %v2212 = vadd.f32 0.0, %v2211
    %2213 = vmatmul.f32.gmra.mxu0 %v2067
    %v2214 = vpop.f32.mrf.mxu0
    %v2215 = vadd.f32 0.0, %v2214
    %2216 = vdwg.mxu0
    %v2217 = vadd.f32 %v2039, %v2170
    %v2218 = vadd.f32 %v2040, %v2173
    %v2219 = vadd.f32 %v2041, %v2176
    %v2220 = vadd.f32 %v2042, %v2179
    %v2221 = vadd.f32 %v2043, %v2182
    %v2222 = vadd.f32 %v2044, %v2185
    %v2223 = vadd.f32 %v2045, %v2188
    %v2224 = vadd.f32 %v2046, %v2191
    %v2225 = vadd.f32 %v2047, %v2194
    %v2226 = vadd.f32 %v2048, %v2197
    %v2227 = vadd.f32 %v2049, %v2200
    %v2228 = vadd.f32 %v2050, %v2203
    %v2229 = vadd.f32 %v2051, %v2206
    %v2230 = vadd.f32 %v2052, %v2209
    %v2231 = vadd.f32 %v2053, %v2212
    %v2232 = vadd.f32 %v2054, %v2215
    %v2233 = vxor.u32 %v2217, 2147483648
    %v2234 = vxor.u32 %v2218, 2147483648
    %v2235 = vxor.u32 %v2219, 2147483648
    %v2236 = vxor.u32 %v2220, 2147483648
    %v2237 = vxor.u32 %v2221, 2147483648
    %v2238 = vxor.u32 %v2222, 2147483648
    %v2239 = vxor.u32 %v2223, 2147483648
    %v2240 = vxor.u32 %v2224, 2147483648
    %v2241 = vxor.u32 %v2225, 2147483648
    %v2242 = vxor.u32 %v2226, 2147483648
    %v2243 = vxor.u32 %v2227, 2147483648
    %v2244 = vxor.u32 %v2228, 2147483648
    %v2245 = vxor.u32 %v2229, 2147483648
    %v2246 = vxor.u32 %v2230, 2147483648
    %v2247 = vxor.u32 %v2231, 2147483648
    %v2248 = vxor.u32 %v2232, 2147483648
    %v2249 = vmul.f32 %v2233, 1.442695
    %v2250 = vpow.pop %v2249
    %v2251 = vmul.f32 %v2234, 1.442695
    %v2252 = vpow.pop %v2251
    %v2253 = vmul.f32 %v2235, 1.442695
    %v2254 = vpow.pop %v2253
    %v2255 = vmul.f32 %v2236, 1.442695
    %v2256 = vpow.pop %v2255
    %v2257 = vmul.f32 %v2237, 1.442695
    %v2258 = vpow.pop %v2257
    %v2259 = vmul.f32 %v2238, 1.442695
    %v2260 = vpow.pop %v2259
    %v2261 = vmul.f32 %v2239, 1.442695
    %v2262 = vpow.pop %v2261
    %v2263 = vmul.f32 %v2240, 1.442695
    %v2264 = vpow.pop %v2263
    %v2265 = vmul.f32 %v2241, 1.442695
    %v2266 = vpow.pop %v2265
    %v2267 = vmul.f32 %v2242, 1.442695
    %v2268 = vpow.pop %v2267
    %v2269 = vmul.f32 %v2243, 1.442695
    %v2270 = vpow.pop %v2269
    %v2271 = vmul.f32 %v2244, 1.442695
    %v2272 = vpow.pop %v2271
    %v2273 = vmul.f32 %v2245, 1.442695
    %v2274 = vpow.pop %v2273
    %v2275 = vmul.f32 %v2246, 1.442695
    %v2276 = vpow.pop %v2275
    %v2277 = vmul.f32 %v2247, 1.442695
    %v2278 = vpow.pop %v2277
    %v2279 = vmul.f32 %v2248, 1.442695
    %v2280 = vpow.pop %v2279
    %v2281 = vadd.f32 %v2250, 1.0
    %v2282 = vadd.f32 %v2252, 1.0
    %v2283 = vadd.f32 %v2254, 1.0
    %v2284 = vadd.f32 %v2256, 1.0
    %v2285 = vadd.f32 %v2258, 1.0
    %v2286 = vadd.f32 %v2260, 1.0
    %v2287 = vadd.f32 %v2262, 1.0
    %v2288 = vadd.f32 %v2264, 1.0
    %v2289 = vadd.f32 %v2266, 1.0
    %v2290 = vadd.f32 %v2268, 1.0
    %v2291 = vadd.f32 %v2270, 1.0
    %v2292 = vadd.f32 %v2272, 1.0
    %v2293 = vadd.f32 %v2274, 1.0
    %v2294 = vadd.f32 %v2276, 1.0
    %v2295 = vadd.f32 %v2278, 1.0
    %v2296 = vadd.f32 %v2280, 1.0
    %v2297 = vrcp.pop %v2281
    %v2298 = vmul.f32 %v2281, %v2297
    %v2299 = vsub.f32 1.0, %v2298
    %v2300 = vmul.f32 %v2297, %v2299
    %v2301 = vadd.f32 %v2297, %v2300
    %vm2302 = vweird.f32 %v2281
    %vm2303 = vweird.f32 %v2297
    %vm2304 = vmor %vm2302, %vm2303
    %v2305 = vsel %vm2304, %v2297, %v2301
    %v2306 = vand.u32 2147483647, %v2281
    %vm2307 = vcmp.eq.f32.partialorder %v2306, 8.507059e+37
    %v2308 = vand.u32 %v2281, 2147483648
    %v2309 = vor.u32 1.1754944e-38, %v2308
    %v2310 = vsel %vm2307, %v2309, %v2305
    %v2311 = vmul.f32 1.0, %v2310
    %v2312 = vrcp.pop %v2282
    %v2313 = vmul.f32 %v2282, %v2312
    %v2314 = vsub.f32 1.0, %v2313
    %v2315 = vmul.f32 %v2312, %v2314
    %v2316 = vadd.f32 %v2312, %v2315
    %vm2317 = vweird.f32 %v2282
    %vm2318 = vweird.f32 %v2312
    %vm2319 = vmor %vm2317, %vm2318
    %v2320 = vsel %vm2319, %v2312, %v2316
    %v2321 = vand.u32 2147483647, %v2282
    %vm2322 = vcmp.eq.f32.partialorder %v2321, 8.507059e+37
    %v2323 = vand.u32 %v2282, 2147483648
    %v2324 = vor.u32 1.1754944e-38, %v2323
    %v2325 = vsel %vm2322, %v2324, %v2320
    %v2326 = vmul.f32 1.0, %v2325
    %v2327 = vrcp.pop %v2283
    %v2328 = vmul.f32 %v2283, %v2327
    %v2329 = vsub.f32 1.0, %v2328
    %v2330 = vmul.f32 %v2327, %v2329
    %v2331 = vadd.f32 %v2327, %v2330
    %vm2332 = vweird.f32 %v2283
    %vm2333 = vweird.f32 %v2327
    %vm2334 = vmor %vm2332, %vm2333
    %v2335 = vsel %vm2334, %v2327, %v2331
    %v2336 = vand.u32 2147483647, %v2283
    %vm2337 = vcmp.eq.f32.partialorder %v2336, 8.507059e+37
    %v2338 = vand.u32 %v2283, 2147483648
    %v2339 = vor.u32 1.1754944e-38, %v2338
    %v2340 = vsel %vm2337, %v2339, %v2335
    %v2341 = vmul.f32 1.0, %v2340
    %v2342 = vrcp.pop %v2284
    %v2343 = vmul.f32 %v2284, %v2342
    %v2344 = vsub.f32 1.0, %v2343
    %v2345 = vmul.f32 %v2342, %v2344
    %v2346 = vadd.f32 %v2342, %v2345
    %vm2347 = vweird.f32 %v2284
    %vm2348 = vweird.f32 %v2342
    %vm2349 = vmor %vm2347, %vm2348
    %v2350 = vsel %vm2349, %v2342, %v2346
    %v2351 = vand.u32 2147483647, %v2284
    %vm2352 = vcmp.eq.f32.partialorder %v2351, 8.507059e+37
    %v2353 = vand.u32 %v2284, 2147483648
    %v2354 = vor.u32 1.1754944e-38, %v2353
    %v2355 = vsel %vm2352, %v2354, %v2350
    %v2356 = vmul.f32 1.0, %v2355
    %v2357 = vrcp.pop %v2285
    %v2358 = vmul.f32 %v2285, %v2357
    %v2359 = vsub.f32 1.0, %v2358
    %v2360 = vmul.f32 %v2357, %v2359
    %v2361 = vadd.f32 %v2357, %v2360
    %vm2362 = vweird.f32 %v2285
    %vm2363 = vweird.f32 %v2357
    %vm2364 = vmor %vm2362, %vm2363
    %v2365 = vsel %vm2364, %v2357, %v2361
    %v2366 = vand.u32 2147483647, %v2285
    %vm2367 = vcmp.eq.f32.partialorder %v2366, 8.507059e+37
    %v2368 = vand.u32 %v2285, 2147483648
    %v2369 = vor.u32 1.1754944e-38, %v2368
    %v2370 = vsel %vm2367, %v2369, %v2365
    %v2371 = vmul.f32 1.0, %v2370
    %v2372 = vrcp.pop %v2286
    %v2373 = vmul.f32 %v2286, %v2372
    %v2374 = vsub.f32 1.0, %v2373
    %v2375 = vmul.f32 %v2372, %v2374
    %v2376 = vadd.f32 %v2372, %v2375
    %vm2377 = vweird.f32 %v2286
    %vm2378 = vweird.f32 %v2372
    %vm2379 = vmor %vm2377, %vm2378
    %v2380 = vsel %vm2379, %v2372, %v2376
    %v2381 = vand.u32 2147483647, %v2286
    %vm2382 = vcmp.eq.f32.partialorder %v2381, 8.507059e+37
    %v2383 = vand.u32 %v2286, 2147483648
    %v2384 = vor.u32 1.1754944e-38, %v2383
    %v2385 = vsel %vm2382, %v2384, %v2380
    %v2386 = vmul.f32 1.0, %v2385
    %v2387 = vrcp.pop %v2287
    %v2388 = vmul.f32 %v2287, %v2387
    %v2389 = vsub.f32 1.0, %v2388
    %v2390 = vmul.f32 %v2387, %v2389
    %v2391 = vadd.f32 %v2387, %v2390
    %vm2392 = vweird.f32 %v2287
    %vm2393 = vweird.f32 %v2387
    %vm2394 = vmor %vm2392, %vm2393
    %v2395 = vsel %vm2394, %v2387, %v2391
    %v2396 = vand.u32 2147483647, %v2287
    %vm2397 = vcmp.eq.f32.partialorder %v2396, 8.507059e+37
    %v2398 = vand.u32 %v2287, 2147483648
    %v2399 = vor.u32 1.1754944e-38, %v2398
    %v2400 = vsel %vm2397, %v2399, %v2395
    %v2401 = vmul.f32 1.0, %v2400
    %v2402 = vrcp.pop %v2288
    %v2403 = vmul.f32 %v2288, %v2402
    %v2404 = vsub.f32 1.0, %v2403
    %v2405 = vmul.f32 %v2402, %v2404
    %v2406 = vadd.f32 %v2402, %v2405
    %vm2407 = vweird.f32 %v2288
    %vm2408 = vweird.f32 %v2402
    %vm2409 = vmor %vm2407, %vm2408
    %v2410 = vsel %vm2409, %v2402, %v2406
    %v2411 = vand.u32 2147483647, %v2288
    %vm2412 = vcmp.eq.f32.partialorder %v2411, 8.507059e+37
    %v2413 = vand.u32 %v2288, 2147483648
    %v2414 = vor.u32 1.1754944e-38, %v2413
    %v2415 = vsel %vm2412, %v2414, %v2410
    %v2416 = vmul.f32 1.0, %v2415
    %v2417 = vrcp.pop %v2289
    %v2418 = vmul.f32 %v2289, %v2417
    %v2419 = vsub.f32 1.0, %v2418
    %v2420 = vmul.f32 %v2417, %v2419
    %v2421 = vadd.f32 %v2417, %v2420
    %vm2422 = vweird.f32 %v2289
    %vm2423 = vweird.f32 %v2417
    %vm2424 = vmor %vm2422, %vm2423
    %v2425 = vsel %vm2424, %v2417, %v2421
    %v2426 = vand.u32 2147483647, %v2289
    %vm2427 = vcmp.eq.f32.partialorder %v2426, 8.507059e+37
    %v2428 = vand.u32 %v2289, 2147483648
    %v2429 = vor.u32 1.1754944e-38, %v2428
    %v2430 = vsel %vm2427, %v2429, %v2425
    %v2431 = vmul.f32 1.0, %v2430
    %v2432 = vrcp.pop %v2290
    %v2433 = vmul.f32 %v2290, %v2432
    %v2434 = vsub.f32 1.0, %v2433
    %v2435 = vmul.f32 %v2432, %v2434
    %v2436 = vadd.f32 %v2432, %v2435
    %vm2437 = vweird.f32 %v2290
    %vm2438 = vweird.f32 %v2432
    %vm2439 = vmor %vm2437, %vm2438
    %v2440 = vsel %vm2439, %v2432, %v2436
    %v2441 = vand.u32 2147483647, %v2290
    %vm2442 = vcmp.eq.f32.partialorder %v2441, 8.507059e+37
    %v2443 = vand.u32 %v2290, 2147483648
    %v2444 = vor.u32 1.1754944e-38, %v2443
    %v2445 = vsel %vm2442, %v2444, %v2440
    %v2446 = vmul.f32 1.0, %v2445
    %v2447 = vrcp.pop %v2291
    %v2448 = vmul.f32 %v2291, %v2447
    %v2449 = vsub.f32 1.0, %v2448
    %v2450 = vmul.f32 %v2447, %v2449
    %v2451 = vadd.f32 %v2447, %v2450
    %vm2452 = vweird.f32 %v2291
    %vm2453 = vweird.f32 %v2447
    %vm2454 = vmor %vm2452, %vm2453
    %v2455 = vsel %vm2454, %v2447, %v2451
    %v2456 = vand.u32 2147483647, %v2291
    %vm2457 = vcmp.eq.f32.partialorder %v2456, 8.507059e+37
    %v2458 = vand.u32 %v2291, 2147483648
    %v2459 = vor.u32 1.1754944e-38, %v2458
    %v2460 = vsel %vm2457, %v2459, %v2455
    %v2461 = vmul.f32 1.0, %v2460
    %v2462 = vrcp.pop %v2292
    %v2463 = vmul.f32 %v2292, %v2462
    %v2464 = vsub.f32 1.0, %v2463
    %v2465 = vmul.f32 %v2462, %v2464
    %v2466 = vadd.f32 %v2462, %v2465
    %vm2467 = vweird.f32 %v2292
    %vm2468 = vweird.f32 %v2462
    %vm2469 = vmor %vm2467, %vm2468
    %v2470 = vsel %vm2469, %v2462, %v2466
    %v2471 = vand.u32 2147483647, %v2292
    %vm2472 = vcmp.eq.f32.partialorder %v2471, 8.507059e+37
    %v2473 = vand.u32 %v2292, 2147483648
    %v2474 = vor.u32 1.1754944e-38, %v2473
    %v2475 = vsel %vm2472, %v2474, %v2470
    %v2476 = vmul.f32 1.0, %v2475
    %v2477 = vrcp.pop %v2293
    %v2478 = vmul.f32 %v2293, %v2477
    %v2479 = vsub.f32 1.0, %v2478
    %v2480 = vmul.f32 %v2477, %v2479
    %v2481 = vadd.f32 %v2477, %v2480
    %vm2482 = vweird.f32 %v2293
    %vm2483 = vweird.f32 %v2477
    %vm2484 = vmor %vm2482, %vm2483
    %v2485 = vsel %vm2484, %v2477, %v2481
    %v2486 = vand.u32 2147483647, %v2293
    %vm2487 = vcmp.eq.f32.partialorder %v2486, 8.507059e+37
    %v2488 = vand.u32 %v2293, 2147483648
    %v2489 = vor.u32 1.1754944e-38, %v2488
    %v2490 = vsel %vm2487, %v2489, %v2485
    %v2491 = vmul.f32 1.0, %v2490
    %v2492 = vrcp.pop %v2294
    %v2493 = vmul.f32 %v2294, %v2492
    %v2494 = vsub.f32 1.0, %v2493
    %v2495 = vmul.f32 %v2492, %v2494
    %v2496 = vadd.f32 %v2492, %v2495
    %vm2497 = vweird.f32 %v2294
    %vm2498 = vweird.f32 %v2492
    %vm2499 = vmor %vm2497, %vm2498
    %v2500 = vsel %vm2499, %v2492, %v2496
    %v2501 = vand.u32 2147483647, %v2294
    %vm2502 = vcmp.eq.f32.partialorder %v2501, 8.507059e+37
    %v2503 = vand.u32 %v2294, 2147483648
    %v2504 = vor.u32 1.1754944e-38, %v2503
    %v2505 = vsel %vm2502, %v2504, %v2500
    %v2506 = vmul.f32 1.0, %v2505
    %v2507 = vrcp.pop %v2295
    %v2508 = vmul.f32 %v2295, %v2507
    %v2509 = vsub.f32 1.0, %v2508
    %v2510 = vmul.f32 %v2507, %v2509
    %v2511 = vadd.f32 %v2507, %v2510
    %vm2512 = vweird.f32 %v2295
    %vm2513 = vweird.f32 %v2507
    %vm2514 = vmor %vm2512, %vm2513
    %v2515 = vsel %vm2514, %v2507, %v2511
    %v2516 = vand.u32 2147483647, %v2295
    %vm2517 = vcmp.eq.f32.partialorder %v2516, 8.507059e+37
    %v2518 = vand.u32 %v2295, 2147483648
    %v2519 = vor.u32 1.1754944e-38, %v2518
    %v2520 = vsel %vm2517, %v2519, %v2515
    %v2521 = vmul.f32 1.0, %v2520
    %v2522 = vrcp.pop %v2296
    %v2523 = vmul.f32 %v2296, %v2522
    %v2524 = vsub.f32 1.0, %v2523
    %v2525 = vmul.f32 %v2522, %v2524
    %v2526 = vadd.f32 %v2522, %v2525
    %vm2527 = vweird.f32 %v2296
    %vm2528 = vweird.f32 %v2522
    %vm2529 = vmor %vm2527, %vm2528
    %v2530 = vsel %vm2529, %v2522, %v2526
    %v2531 = vand.u32 2147483647, %v2296
    %vm2532 = vcmp.eq.f32.partialorder %v2531, 8.507059e+37
    %v2533 = vand.u32 %v2296, 2147483648
    %v2534 = vor.u32 1.1754944e-38, %v2533
    %v2535 = vsel %vm2532, %v2534, %v2530
    %v2536 = vmul.f32 1.0, %v2535
    %v2537 = vmul.f32 %v2134, %v2311
    %v2538 = vmul.f32 %v2135, %v2326
    %v2539 = vmul.f32 %v2136, %v2341
    %v2540 = vmul.f32 %v2137, %v2356
    %v2541 = vmul.f32 %v2138, %v2371
    %v2542 = vmul.f32 %v2139, %v2386
    %v2543 = vmul.f32 %v2140, %v2401
    %v2544 = vmul.f32 %v2141, %v2416
    %v2545 = vmul.f32 %v2142, %v2431
    %v2546 = vmul.f32 %v2143, %v2446
    %v2547 = vmul.f32 %v2144, %v2461
    %v2548 = vmul.f32 %v2145, %v2476
    %v2549 = vmul.f32 %v2146, %v2491
    %v2550 = vmul.f32 %v2147, %v2506
    %v2551 = vmul.f32 %v2148, %v2521
    %v2552 = vmul.f32 %v2149, %v2536
    %v2553 = vld [vmem:[#allocation10] sm:$0xff]
    %v2554 = vld [vmem:[#allocation10 + $0x8] sm:$0xff]
    %v2555 = vld [vmem:[#allocation11] sm:$0xff]
    %v2556 = vld [vmem:[#allocation11 + $0x8] sm:$0xff]
    %vm2557 = vcmask 130048
    %v2558 = vsel %vm2557, %v2537, 0.0
    %2559 = vadd.xlane.f32.xlu0 %v2558
    %v2560 = vpop.xlane.xlu0 %2559
    %v2561 = vsel %vm2557, %v2538, 0.0
    %2562 = vadd.xlane.f32.xlu0 %v2561
    %v2563 = vpop.xlane.xlu0 %2562
    %v2564 = vsel %vm2557, %v2539, 0.0
    %2565 = vadd.xlane.f32.xlu0 %v2564
    %v2566 = vpop.xlane.xlu0 %2565
    %v2567 = vsel %vm2557, %v2540, 0.0
    %2568 = vadd.xlane.f32.xlu0 %v2567
    %v2569 = vpop.xlane.xlu0 %2568
    %v2570 = vsel %vm2557, %v2541, 0.0
    %2571 = vadd.xlane.f32.xlu0 %v2570
    %v2572 = vpop.xlane.xlu0 %2571
    %v2573 = vsel %vm2557, %v2542, 0.0
    %2574 = vadd.xlane.f32.xlu0 %v2573
    %v2575 = vpop.xlane.xlu0 %2574
    %v2576 = vsel %vm2557, %v2543, 0.0
    %2577 = vadd.xlane.f32.xlu0 %v2576
    %v2578 = vpop.xlane.xlu0 %2577
    %v2579 = vsel %vm2557, %v2544, 0.0
    %2580 = vadd.xlane.f32.xlu0 %v2579
    %v2581 = vpop.xlane.xlu0 %2580
    %v2582 = vsel %vm2557, %v2545, 0.0
    %2583 = vadd.xlane.f32.xlu0 %v2582
    %v2584 = vpop.xlane.xlu0 %2583
    %v2585 = vsel %vm2557, %v2546, 0.0
    %2586 = vadd.xlane.f32.xlu0 %v2585
    %v2587 = vpop.xlane.xlu0 %2586
    %v2588 = vsel %vm2557, %v2547, 0.0
    %2589 = vadd.xlane.f32.xlu0 %v2588
    %v2590 = vpop.xlane.xlu0 %2589
    %v2591 = vsel %vm2557, %v2548, 0.0
    %2592 = vadd.xlane.f32.xlu0 %v2591
    %v2593 = vpop.xlane.xlu0 %2592
    %v2594 = vsel %vm2557, %v2549, 0.0
    %2595 = vadd.xlane.f32.xlu0 %v2594
    %v2596 = vpop.xlane.xlu0 %2595
    %v2597 = vsel %vm2557, %v2550, 0.0
    %2598 = vadd.xlane.f32.xlu0 %v2597
    %v2599 = vpop.xlane.xlu0 %2598
    %v2600 = vsel %vm2557, %v2551, 0.0
    %2601 = vadd.xlane.f32.xlu0 %v2600
    %v2602 = vpop.xlane.xlu0 %2601
    %v2603 = vsel %vm2557, %v2552, 0.0
    %2604 = vadd.xlane.f32.xlu0 %v2603
    %v2605 = vpop.xlane.xlu0 %2604
    %v2606 = vadd.f32 %v2560, %v2563
    %v2607 = vrot.slane %v2606, 4
    %v2608 = vadd.f32 %v2606, %v2607
    %v2609 = vrot.slane %v2608, 2
    %v2610 = vadd.f32 %v2608, %v2609
    %v2611 = vrot.slane %v2610, 1
    %v2612 = vadd.f32 %v2610, %v2611
    %v2613 = vadd.f32 %v2566, %v2569
    %v2614 = vrot.slane %v2613, 4
    %v2615 = vadd.f32 %v2613, %v2614
    %v2616 = vrot.slane %v2615, 2
    %v2617 = vadd.f32 %v2615, %v2616
    %v2618 = vrot.slane %v2617, 1
    %v2619 = vadd.f32 %v2617, %v2618
    %v2620 = vadd.f32 %v2572, %v2575
    %v2621 = vrot.slane %v2620, 4
    %v2622 = vadd.f32 %v2620, %v2621
    %v2623 = vrot.slane %v2622, 2
    %v2624 = vadd.f32 %v2622, %v2623
    %v2625 = vrot.slane %v2624, 1
    %v2626 = vadd.f32 %v2624, %v2625
    %v2627 = vadd.f32 %v2578, %v2581
    %v2628 = vrot.slane %v2627, 4
    %v2629 = vadd.f32 %v2627, %v2628
    %v2630 = vrot.slane %v2629, 2
    %v2631 = vadd.f32 %v2629, %v2630
    %v2632 = vrot.slane %v2631, 1
    %v2633 = vadd.f32 %v2631, %v2632
    %v2634 = vadd.f32 %v2584, %v2587
    %v2635 = vrot.slane %v2634, 4
    %v2636 = vadd.f32 %v2634, %v2635
    %v2637 = vrot.slane %v2636, 2
    %v2638 = vadd.f32 %v2636, %v2637
    %v2639 = vrot.slane %v2638, 1
    %v2640 = vadd.f32 %v2638, %v2639
    %v2641 = vadd.f32 %v2590, %v2593
    %v2642 = vrot.slane %v2641, 4
    %v2643 = vadd.f32 %v2641, %v2642
    %v2644 = vrot.slane %v2643, 2
    %v2645 = vadd.f32 %v2643, %v2644
    %v2646 = vrot.slane %v2645, 1
    %v2647 = vadd.f32 %v2645, %v2646
    %v2648 = vadd.f32 %v2596, %v2599
    %v2649 = vrot.slane %v2648, 4
    %v2650 = vadd.f32 %v2648, %v2649
    %v2651 = vrot.slane %v2650, 2
    %v2652 = vadd.f32 %v2650, %v2651
    %v2653 = vrot.slane %v2652, 1
    %v2654 = vadd.f32 %v2652, %v2653
    %v2655 = vadd.f32 %v2602, %v2605
    %v2656 = vrot.slane %v2655, 4
    %v2657 = vadd.f32 %v2655, %v2656
    %v2658 = vrot.slane %v2657, 2
    %v2659 = vadd.f32 %v2657, %v2658
    %v2660 = vrot.slane %v2659, 1
    %v2661 = vadd.f32 %v2659, %v2660
    %v2662 = vmul.f32 %v2612, 0.00390625
    %v2663 = vmul.f32 %v2619, 0.00390625
    %v2664 = vmul.f32 %v2626, 0.00390625
    %v2665 = vmul.f32 %v2633, 0.00390625
    %v2666 = vmul.f32 %v2640, 0.00390625
    %v2667 = vmul.f32 %v2647, 0.00390625
    %v2668 = vmul.f32 %v2654, 0.00390625
    %v2669 = vmul.f32 %v2661, 0.00390625
    %v2670 = vsub.f32 %v2537, %v2662
    %v2671 = vsub.f32 %v2538, %v2662
    %v2672 = vsub.f32 %v2539, %v2663
    %v2673 = vsub.f32 %v2540, %v2663
    %v2674 = vsub.f32 %v2541, %v2664
    %v2675 = vsub.f32 %v2542, %v2664
    %v2676 = vsub.f32 %v2543, %v2665
    %v2677 = vsub.f32 %v2544, %v2665
    %v2678 = vsub.f32 %v2545, %v2666
    %v2679 = vsub.f32 %v2546, %v2666
    %v2680 = vsub.f32 %v2547, %v2667
    %v2681 = vsub.f32 %v2548, %v2667
    %v2682 = vsub.f32 %v2549, %v2668
    %v2683 = vsub.f32 %v2550, %v2668
    %v2684 = vsub.f32 %v2551, %v2669
    %v2685 = vsub.f32 %v2552, %v2669
    %v2686 = vmul.f32 %v2670, %v2670
    %v2687 = vmul.f32 %v2671, %v2671
    %v2688 = vmul.f32 %v2672, %v2672
    %v2689 = vmul.f32 %v2673, %v2673
    %v2690 = vmul.f32 %v2674, %v2674
    %v2691 = vmul.f32 %v2675, %v2675
    %v2692 = vmul.f32 %v2676, %v2676
    %v2693 = vmul.f32 %v2677, %v2677
    %v2694 = vmul.f32 %v2678, %v2678
    %v2695 = vmul.f32 %v2679, %v2679
    %v2696 = vmul.f32 %v2680, %v2680
    %v2697 = vmul.f32 %v2681, %v2681
    %v2698 = vmul.f32 %v2682, %v2682
    %v2699 = vmul.f32 %v2683, %v2683
    %v2700 = vmul.f32 %v2684, %v2684
    %v2701 = vmul.f32 %v2685, %v2685
    %v2702 = vsel %vm2557, %v2686, 0.0
    %2703 = vadd.xlane.f32.xlu0 %v2702
    %v2704 = vpop.xlane.xlu0 %2703
    %v2705 = vsel %vm2557, %v2687, 0.0
    %2706 = vadd.xlane.f32.xlu0 %v2705
    %v2707 = vpop.xlane.xlu0 %2706
    %v2708 = vsel %vm2557, %v2688, 0.0
    %2709 = vadd.xlane.f32.xlu0 %v2708
    %v2710 = vpop.xlane.xlu0 %2709
    %v2711 = vsel %vm2557, %v2689, 0.0
    %2712 = vadd.xlane.f32.xlu0 %v2711
    %v2713 = vpop.xlane.xlu0 %2712
    %v2714 = vsel %vm2557, %v2690, 0.0
    %2715 = vadd.xlane.f32.xlu0 %v2714
    %v2716 = vpop.xlane.xlu0 %2715
    %v2717 = vsel %vm2557, %v2691, 0.0
    %2718 = vadd.xlane.f32.xlu0 %v2717
    %v2719 = vpop.xlane.xlu0 %2718
    %v2720 = vsel %vm2557, %v2692, 0.0
    %2721 = vadd.xlane.f32.xlu0 %v2720
    %v2722 = vpop.xlane.xlu0 %2721
    %v2723 = vsel %vm2557, %v2693, 0.0
    %2724 = vadd.xlane.f32.xlu0 %v2723
    %v2725 = vpop.xlane.xlu0 %2724
    %v2726 = vsel %vm2557, %v2694, 0.0
    %2727 = vadd.xlane.f32.xlu0 %v2726
    %v2728 = vpop.xlane.xlu0 %2727
    %v2729 = vsel %vm2557, %v2695, 0.0
    %2730 = vadd.xlane.f32.xlu0 %v2729
    %v2731 = vpop.xlane.xlu0 %2730
    %v2732 = vsel %vm2557, %v2696, 0.0
    %2733 = vadd.xlane.f32.xlu0 %v2732
    %v2734 = vpop.xlane.xlu0 %2733
    %v2735 = vsel %vm2557, %v2697, 0.0
    %2736 = vadd.xlane.f32.xlu0 %v2735
    %v2737 = vpop.xlane.xlu0 %2736
    %v2738 = vsel %vm2557, %v2698, 0.0
    %2739 = vadd.xlane.f32.xlu0 %v2738
    %v2740 = vpop.xlane.xlu0 %2739
    %v2741 = vsel %vm2557, %v2699, 0.0
    %2742 = vadd.xlane.f32.xlu0 %v2741
    %v2743 = vpop.xlane.xlu0 %2742
    %v2744 = vsel %vm2557, %v2700, 0.0
    %2745 = vadd.xlane.f32.xlu0 %v2744
    %v2746 = vpop.xlane.xlu0 %2745
    %v2747 = vsel %vm2557, %v2701, 0.0
    %2748 = vadd.xlane.f32.xlu0 %v2747
    %v2749 = vpop.xlane.xlu0 %2748
    %v2750 = vadd.f32 %v2704, %v2707
    %v2751 = vrot.slane %v2750, 4
    %v2752 = vadd.f32 %v2750, %v2751
    %v2753 = vrot.slane %v2752, 2
    %v2754 = vadd.f32 %v2752, %v2753
    %v2755 = vrot.slane %v2754, 1
    %v2756 = vadd.f32 %v2754, %v2755
    %v2757 = vadd.f32 %v2710, %v2713
    %v2758 = vrot.slane %v2757, 4
    %v2759 = vadd.f32 %v2757, %v2758
    %v2760 = vrot.slane %v2759, 2
    %v2761 = vadd.f32 %v2759, %v2760
    %v2762 = vrot.slane %v2761, 1
    %v2763 = vadd.f32 %v2761, %v2762
    %v2764 = vadd.f32 %v2716, %v2719
    %v2765 = vrot.slane %v2764, 4
    %v2766 = vadd.f32 %v2764, %v2765
    %v2767 = vrot.slane %v2766, 2
    %v2768 = vadd.f32 %v2766, %v2767
    %v2769 = vrot.slane %v2768, 1
    %v2770 = vadd.f32 %v2768, %v2769
    %v2771 = vadd.f32 %v2722, %v2725
    %v2772 = vrot.slane %v2771, 4
    %v2773 = vadd.f32 %v2771, %v2772
    %v2774 = vrot.slane %v2773, 2
    %v2775 = vadd.f32 %v2773, %v2774
    %v2776 = vrot.slane %v2775, 1
    %v2777 = vadd.f32 %v2775, %v2776
    %v2778 = vadd.f32 %v2728, %v2731
    %v2779 = vrot.slane %v2778, 4
    %v2780 = vadd.f32 %v2778, %v2779
    %v2781 = vrot.slane %v2780, 2
    %v2782 = vadd.f32 %v2780, %v2781
    %v2783 = vrot.slane %v2782, 1
    %v2784 = vadd.f32 %v2782, %v2783
    %v2785 = vadd.f32 %v2734, %v2737
    %v2786 = vrot.slane %v2785, 4
    %v2787 = vadd.f32 %v2785, %v2786
    %v2788 = vrot.slane %v2787, 2
    %v2789 = vadd.f32 %v2787, %v2788
    %v2790 = vrot.slane %v2789, 1
    %v2791 = vadd.f32 %v2789, %v2790
    %v2792 = vadd.f32 %v2740, %v2743
    %v2793 = vrot.slane %v2792, 4
    %v2794 = vadd.f32 %v2792, %v2793
    %v2795 = vrot.slane %v2794, 2
    %v2796 = vadd.f32 %v2794, %v2795
    %v2797 = vrot.slane %v2796, 1
    %v2798 = vadd.f32 %v2796, %v2797
    %v2799 = vadd.f32 %v2746, %v2749
    %v2800 = vrot.slane %v2799, 4
    %v2801 = vadd.f32 %v2799, %v2800
    %v2802 = vrot.slane %v2801, 2
    %v2803 = vadd.f32 %v2801, %v2802
    %v2804 = vrot.slane %v2803, 1
    %v2805 = vadd.f32 %v2803, %v2804
    %v2806 = vmul.f32 %v2756, 0.00390625
    %v2807 = vmul.f32 %v2763, 0.00390625
    %v2808 = vmul.f32 %v2770, 0.00390625
    %v2809 = vmul.f32 %v2777, 0.00390625
    %v2810 = vmul.f32 %v2784, 0.00390625
    %v2811 = vmul.f32 %v2791, 0.00390625
    %v2812 = vmul.f32 %v2798, 0.00390625
    %v2813 = vmul.f32 %v2805, 0.00390625
    %v2814 = vadd.f32 %v2806, 1e-12
    %v2815 = vadd.f32 %v2807, 1e-12
    %v2816 = vadd.f32 %v2808, 1e-12
    %v2817 = vadd.f32 %v2809, 1e-12
    %v2818 = vadd.f32 %v2810, 1e-12
    %v2819 = vadd.f32 %v2811, 1e-12
    %v2820 = vadd.f32 %v2812, 1e-12
    %v2821 = vadd.f32 %v2813, 1e-12
    %v2822 = vrsqrt.pop %v2814
    %v2823 = vmul.f32 %v2822, %v2814
    %v2824 = vmul.f32 %v2823, %v2822
    %v2825 = vmul.f32 0.5, %v2824
    %v2826 = vsub.f32 1.5, %v2825
    %v2827 = vmul.f32 %v2822, %v2826
    %vm2828 = vweird.f32 %v2814
    %vm2829 = vweird.f32 %v2822
    %vm2830 = vmor %vm2828, %vm2829
    %v2831 = vsel %vm2830, %v2822, %v2827
    %v2832 = vrsqrt.pop %v2815
    %v2833 = vmul.f32 %v2832, %v2815
    %v2834 = vmul.f32 %v2833, %v2832
    %v2835 = vmul.f32 0.5, %v2834
    %v2836 = vsub.f32 1.5, %v2835
    %v2837 = vmul.f32 %v2832, %v2836
    %vm2838 = vweird.f32 %v2815
    %vm2839 = vweird.f32 %v2832
    %vm2840 = vmor %vm2838, %vm2839
    %v2841 = vsel %vm2840, %v2832, %v2837
    %v2842 = vrsqrt.pop %v2816
    %v2843 = vmul.f32 %v2842, %v2816
    %v2844 = vmul.f32 %v2843, %v2842
    %v2845 = vmul.f32 0.5, %v2844
    %v2846 = vsub.f32 1.5, %v2845
    %v2847 = vmul.f32 %v2842, %v2846
    %vm2848 = vweird.f32 %v2816
    %vm2849 = vweird.f32 %v2842
    %vm2850 = vmor %vm2848, %vm2849
    %v2851 = vsel %vm2850, %v2842, %v2847
    %v2852 = vrsqrt.pop %v2817
    %v2853 = vmul.f32 %v2852, %v2817
    %v2854 = vmul.f32 %v2853, %v2852
    %v2855 = vmul.f32 0.5, %v2854
    %v2856 = vsub.f32 1.5, %v2855
    %v2857 = vmul.f32 %v2852, %v2856
    %vm2858 = vweird.f32 %v2817
    %vm2859 = vweird.f32 %v2852
    %vm2860 = vmor %vm2858, %vm2859
    %v2861 = vsel %vm2860, %v2852, %v2857
    %v2862 = vrsqrt.pop %v2818
    %v2863 = vmul.f32 %v2862, %v2818
    %v2864 = vmul.f32 %v2863, %v2862
    %v2865 = vmul.f32 0.5, %v2864
    %v2866 = vsub.f32 1.5, %v2865
    %v2867 = vmul.f32 %v2862, %v2866
    %vm2868 = vweird.f32 %v2818
    %vm2869 = vweird.f32 %v2862
    %vm2870 = vmor %vm2868, %vm2869
    %v2871 = vsel %vm2870, %v2862, %v2867
    %v2872 = vrsqrt.pop %v2819
    %v2873 = vmul.f32 %v2872, %v2819
    %v2874 = vmul.f32 %v2873, %v2872
    %v2875 = vmul.f32 0.5, %v2874
    %v2876 = vsub.f32 1.5, %v2875
    %v2877 = vmul.f32 %v2872, %v2876
    %vm2878 = vweird.f32 %v2819
    %vm2879 = vweird.f32 %v2872
    %vm2880 = vmor %vm2878, %vm2879
    %v2881 = vsel %vm2880, %v2872, %v2877
    %v2882 = vrsqrt.pop %v2820
    %v2883 = vmul.f32 %v2882, %v2820
    %v2884 = vmul.f32 %v2883, %v2882
    %v2885 = vmul.f32 0.5, %v2884
    %v2886 = vsub.f32 1.5, %v2885
    %v2887 = vmul.f32 %v2882, %v2886
    %vm2888 = vweird.f32 %v2820
    %vm2889 = vweird.f32 %v2882
    %vm2890 = vmor %vm2888, %vm2889
    %v2891 = vsel %vm2890, %v2882, %v2887
    %v2892 = vrsqrt.pop %v2821
    %v2893 = vmul.f32 %v2892, %v2821
    %v2894 = vmul.f32 %v2893, %v2892
    %v2895 = vmul.f32 0.5, %v2894
    %v2896 = vsub.f32 1.5, %v2895
    %v2897 = vmul.f32 %v2892, %v2896
    %vm2898 = vweird.f32 %v2821
    %vm2899 = vweird.f32 %v2892
    %vm2900 = vmor %vm2898, %vm2899
    %v2901 = vsel %vm2900, %v2892, %v2897
    %v2902 = vmul.f32 %v2670, %v2831
    %v2903 = vmul.f32 %v2671, %v2831
    %v2904 = vmul.f32 %v2672, %v2841
    %v2905 = vmul.f32 %v2673, %v2841
    %v2906 = vmul.f32 %v2674, %v2851
    %v2907 = vmul.f32 %v2675, %v2851
    %v2908 = vmul.f32 %v2676, %v2861
    %v2909 = vmul.f32 %v2677, %v2861
    %v2910 = vmul.f32 %v2678, %v2871
    %v2911 = vmul.f32 %v2679, %v2871
    %v2912 = vmul.f32 %v2680, %v2881
    %v2913 = vmul.f32 %v2681, %v2881
    %v2914 = vmul.f32 %v2682, %v2891
    %v2915 = vmul.f32 %v2683, %v2891
    %v2916 = vmul.f32 %v2684, %v2901
    %v2917 = vmul.f32 %v2685, %v2901
    %v2918 = vmul.f32 %v2902, %v2553
    %v2919 = vmul.f32 %v2903, %v2554
    %v2920 = vmul.f32 %v2904, %v2553
    %v2921 = vmul.f32 %v2905, %v2554
    %v2922 = vmul.f32 %v2906, %v2553
    %v2923 = vmul.f32 %v2907, %v2554
    %v2924 = vmul.f32 %v2908, %v2553
    %v2925 = vmul.f32 %v2909, %v2554
    %v2926 = vmul.f32 %v2910, %v2553
    %v2927 = vmul.f32 %v2911, %v2554
    %v2928 = vmul.f32 %v2912, %v2553
    %v2929 = vmul.f32 %v2913, %v2554
    %v2930 = vmul.f32 %v2914, %v2553
    %v2931 = vmul.f32 %v2915, %v2554
    %v2932 = vmul.f32 %v2916, %v2553
    %v2933 = vmul.f32 %v2917, %v2554
    %v2934 = vadd.f32 %v2918, %v2555
    %v2935 = vadd.f32 %v2919, %v2556
    %v2936 = vadd.f32 %v2920, %v2555
    %v2937 = vadd.f32 %v2921, %v2556
    %v2938 = vadd.f32 %v2922, %v2555
    %v2939 = vadd.f32 %v2923, %v2556
    %v2940 = vadd.f32 %v2924, %v2555
    %v2941 = vadd.f32 %v2925, %v2556
    %v2942 = vadd.f32 %v2926, %v2555
    %v2943 = vadd.f32 %v2927, %v2556
    %v2944 = vadd.f32 %v2928, %v2555
    %v2945 = vadd.f32 %v2929, %v2556
    %v2946 = vadd.f32 %v2930, %v2555
    %v2947 = vadd.f32 %v2931, %v2556
    %v2948 = vadd.f32 %v2932, %v2555
    %v2949 = vadd.f32 %v2933, %v2556
    %v2950 = vld [vmem:[#allocation14] sm:$0x1]
    %v2951 = vld [vmem:[#allocation16] sm:$0x1]
    %v2952 = vld [vmem:[%s13] sm:$0xff]
    %v2953 = vld [vmem:[%s13 + $0x8] sm:$0xff]
    %v2955 = vsel %vm2557, %v2934, 0
    %v2958 = vsel %vm2557, %v2935, 0
    %v2961 = vsel %vm2557, %v2942, 0
    %v2964 = vsel %vm2557, %v2943, 0
    %2966 = vmatpush.msra.mxu0 0.0
    %2967 = vmatpush.msra.mxu0 0.0
    %2968 = vmatpush.msra.mxu0 0.0
    %2969 = vmatpush.msra.mxu0 0.0
    %2970 = vmatpush.msra.mxu0 0.0
    %2971 = vmatpush.msra.mxu0 0.0
    %2972 = vmatpush.msra.mxu0 0.0
    %2973 = vmatpush.msra.mxu0 0.0
    %2974 = vmatpush.msra.mxu0 0.0
    %2975 = vmatpush.msra.mxu0 0.0
    %2976 = vmatpush.msra.mxu0 0.0
    %2977 = vmatpush.msra.mxu0 0.0
    %2978 = vmatpush.msra.mxu0 0.0
    %2979 = vmatpush.msra.mxu0 0.0
    %2980 = vmatpush.msra.mxu0 %v2953
    %2981 = vmatpush.msra.mxu0 %v2952
    %2982 = vmatmul.f32.gmra.mxu0 %v2955
    %v2983 = vpop.f32.mrf.mxu0
    %v2984 = vadd.f32 0.0, %v2983
    %2985 = vmatmul.f32.gmra.mxu0 %v2958
    %v2986 = vpop.f32.mrf.mxu0
    %v2987 = vadd.f32 0.0, %v2986
    %2988 = vmatmul.f32.gmra.mxu0 %v2961
    %v2989 = vpop.f32.mrf.mxu0
    %v2990 = vadd.f32 0.0, %v2989
    %2991 = vmatmul.f32.gmra.mxu0 %v2964
    %v2992 = vpop.f32.mrf.mxu0
    %v2993 = vadd.f32 0.0, %v2992
    %2994 = vdwg.mxu0
    %v2996 = vperm.slane %v2950, 0
    %v2998 = vadd.f32 %v2996, %v2984
    %v2999 = vadd.f32 %v2996, %v2987
    %v3000 = vadd.f32 %v2996, %v2990
    %v3001 = vadd.f32 %v2996, %v2993
    %v3002 = vld [vmem:[#allocation13] sm:$0xff]
    %v3003 = vld [vmem:[#allocation13 + $0x8] sm:$0xff]
    %3004 = vmatpush.msra.mxu0 0.0
    %3005 = vmatpush.msra.mxu0 0.0
    %3006 = vmatpush.msra.mxu0 0.0
    %3007 = vmatpush.msra.mxu0 0.0
    %3008 = vmatpush.msra.mxu0 0.0
    %3009 = vmatpush.msra.mxu0 0.0
    %3010 = vmatpush.msra.mxu0 0.0
    %3011 = vmatpush.msra.mxu0 0.0
    %3012 = vmatpush.msra.mxu0 0.0
    %3013 = vmatpush.msra.mxu0 0.0
    %3014 = vmatpush.msra.mxu0 0.0
    %3015 = vmatpush.msra.mxu0 0.0
    %3016 = vmatpush.msra.mxu0 0.0
    %3017 = vmatpush.msra.mxu0 0.0
    %3018 = vmatpush.msra.mxu0 %v3003
    %3019 = vmatpush.msra.mxu0 %v3002
    %3020 = vmatmul.f32.gmra.mxu0 %v2955
    %v3021 = vpop.f32.mrf.mxu0
    %v3022 = vadd.f32 0.0, %v3021
    %3023 = vmatmul.f32.gmra.mxu0 %v2958
    %v3024 = vpop.f32.mrf.mxu0
    %v3025 = vadd.f32 0.0, %v3024
    %3026 = vmatmul.f32.gmra.mxu0 %v2961
    %v3027 = vpop.f32.mrf.mxu0
    %v3028 = vadd.f32 0.0, %v3027
    %3029 = vmatmul.f32.gmra.mxu0 %v2964
    %v3030 = vpop.f32.mrf.mxu0
    %v3031 = vadd.f32 0.0, %v3030
    %3032 = vdwg.mxu0
    %v3034 = vperm.slane %v2951, 0
    %v3036 = vadd.f32 %v3034, %v3022
    %v3037 = vadd.f32 %v3034, %v3025
    %v3038 = vadd.f32 %v3034, %v3028
    %v3039 = vadd.f32 %v3034, %v3031
    %s3040 = scalar_lea.vmem %s13, 16
    %v3041 = vld [vmem:[%s3040] sm:$0xff]
    %v3042 = vld [vmem:[%s3040 + $0x8] sm:$0xff]
    %v3044 = vsel %vm2557, %v2936, 0
    %v3047 = vsel %vm2557, %v2937, 0
    %v3050 = vsel %vm2557, %v2944, 0
    %v3053 = vsel %vm2557, %v2945, 0
    %3055 = vmatpush.msra.mxu0 0.0
    %3056 = vmatpush.msra.mxu0 0.0
    %3057 = vmatpush.msra.mxu0 0.0
    %3058 = vmatpush.msra.mxu0 0.0
    %3059 = vmatpush.msra.mxu0 0.0
    %3060 = vmatpush.msra.mxu0 0.0
    %3061 = vmatpush.msra.mxu0 0.0
    %3062 = vmatpush.msra.mxu0 0.0
    %3063 = vmatpush.msra.mxu0 0.0
    %3064 = vmatpush.msra.mxu0 0.0
    %3065 = vmatpush.msra.mxu0 0.0
    %3066 = vmatpush.msra.mxu0 0.0
    %3067 = vmatpush.msra.mxu0 0.0
    %3068 = vmatpush.msra.mxu0 0.0
    %3069 = vmatpush.msra.mxu0 %v3042
    %3070 = vmatpush.msra.mxu0 %v3041
    %3071 = vmatmul.f32.gmra.mxu0 %v3044
    %v3072 = vpop.f32.mrf.mxu0
    %v3073 = vadd.f32 0.0, %v3072
    %3074 = vmatmul.f32.gmra.mxu0 %v3047
    %v3075 = vpop.f32.mrf.mxu0
    %v3076 = vadd.f32 0.0, %v3075
    %3077 = vmatmul.f32.gmra.mxu0 %v3050
    %v3078 = vpop.f32.mrf.mxu0
    %v3079 = vadd.f32 0.0, %v3078
    %3080 = vmatmul.f32.gmra.mxu0 %v3053
    %v3081 = vpop.f32.mrf.mxu0
    %v3082 = vadd.f32 0.0, %v3081
    %3083 = vdwg.mxu0
    %v3084 = vadd.f32 %v2998, %v3073
    %v3085 = vadd.f32 %v2999, %v3076
    %v3086 = vadd.f32 %v3000, %v3079
    %v3087 = vadd.f32 %v3001, %v3082
    %s3088 = scalar_lea.vmem [#allocation13], 16
    %v3089 = vld [vmem:[%s3088] sm:$0xff]
    %v3090 = vld [vmem:[%s3088 + $0x8] sm:$0xff]
    %3091 = vmatpush.msra.mxu0 0.0
    %3092 = vmatpush.msra.mxu0 0.0
    %3093 = vmatpush.msra.mxu0 0.0
    %3094 = vmatpush.msra.mxu0 0.0
    %3095 = vmatpush.msra.mxu0 0.0
    %3096 = vmatpush.msra.mxu0 0.0
    %3097 = vmatpush.msra.mxu0 0.0
    %3098 = vmatpush.msra.mxu0 0.0
    %3099 = vmatpush.msra.mxu0 0.0
    %3100 = vmatpush.msra.mxu0 0.0
    %3101 = vmatpush.msra.mxu0 0.0
    %3102 = vmatpush.msra.mxu0 0.0
    %3103 = vmatpush.msra.mxu0 0.0
    %3104 = vmatpush.msra.mxu0 0.0
    %3105 = vmatpush.msra.mxu0 %v3090
    %3106 = vmatpush.msra.mxu0 %v3089
    %3107 = vmatmul.f32.gmra.mxu0 %v3044
    %v3108 = vpop.f32.mrf.mxu0
    %v3109 = vadd.f32 0.0, %v3108
    %3110 = vmatmul.f32.gmra.mxu0 %v3047
    %v3111 = vpop.f32.mrf.mxu0
    %v3112 = vadd.f32 0.0, %v3111
    %3113 = vmatmul.f32.gmra.mxu0 %v3050
    %v3114 = vpop.f32.mrf.mxu0
    %v3115 = vadd.f32 0.0, %v3114
    %3116 = vmatmul.f32.gmra.mxu0 %v3053
    %v3117 = vpop.f32.mrf.mxu0
    %v3118 = vadd.f32 0.0, %v3117
    %3119 = vdwg.mxu0
    %v3120 = vadd.f32 %v3036, %v3109
    %v3121 = vadd.f32 %v3037, %v3112
    %v3122 = vadd.f32 %v3038, %v3115
    %v3123 = vadd.f32 %v3039, %v3118
    %s3124 = scalar_lea.vmem %s13, 32
    %v3125 = vld [vmem:[%s3124] sm:$0xff]
    %v3126 = vld [vmem:[%s3124 + $0x8] sm:$0xff]
    %v3128 = vsel %vm2557, %v2938, 0
    %v3131 = vsel %vm2557, %v2939, 0
    %v3134 = vsel %vm2557, %v2946, 0
    %v3137 = vsel %vm2557, %v2947, 0
    %3139 = vmatpush.msra.mxu0 0.0
    %3140 = vmatpush.msra.mxu0 0.0
    %3141 = vmatpush.msra.mxu0 0.0
    %3142 = vmatpush.msra.mxu0 0.0
    %3143 = vmatpush.msra.mxu0 0.0
    %3144 = vmatpush.msra.mxu0 0.0
    %3145 = vmatpush.msra.mxu0 0.0
    %3146 = vmatpush.msra.mxu0 0.0
    %3147 = vmatpush.msra.mxu0 0.0
    %3148 = vmatpush.msra.mxu0 0.0
    %3149 = vmatpush.msra.mxu0 0.0
    %3150 = vmatpush.msra.mxu0 0.0
    %3151 = vmatpush.msra.mxu0 0.0
    %3152 = vmatpush.msra.mxu0 0.0
    %3153 = vmatpush.msra.mxu0 %v3126
    %3154 = vmatpush.msra.mxu0 %v3125
    %3155 = vmatmul.f32.gmra.mxu0 %v3128
    %v3156 = vpop.f32.mrf.mxu0
    %v3157 = vadd.f32 0.0, %v3156
    %3158 = vmatmul.f32.gmra.mxu0 %v3131
    %v3159 = vpop.f32.mrf.mxu0
    %v3160 = vadd.f32 0.0, %v3159
    %3161 = vmatmul.f32.gmra.mxu0 %v3134
    %v3162 = vpop.f32.mrf.mxu0
    %v3163 = vadd.f32 0.0, %v3162
    %3164 = vmatmul.f32.gmra.mxu0 %v3137
    %v3165 = vpop.f32.mrf.mxu0
    %v3166 = vadd.f32 0.0, %v3165
    %3167 = vdwg.mxu0
    %v3168 = vadd.f32 %v3084, %v3157
    %v3169 = vadd.f32 %v3085, %v3160
    %v3170 = vadd.f32 %v3086, %v3163
    %v3171 = vadd.f32 %v3087, %v3166
    %s3172 = scalar_lea.vmem [#allocation13], 32
    %v3173 = vld [vmem:[%s3172] sm:$0xff]
    %v3174 = vld [vmem:[%s3172 + $0x8] sm:$0xff]
    %3175 = vmatpush.msra.mxu0 0.0
    %3176 = vmatpush.msra.mxu0 0.0
    %3177 = vmatpush.msra.mxu0 0.0
    %3178 = vmatpush.msra.mxu0 0.0
    %3179 = vmatpush.msra.mxu0 0.0
    %3180 = vmatpush.msra.mxu0 0.0
    %3181 = vmatpush.msra.mxu0 0.0
    %3182 = vmatpush.msra.mxu0 0.0
    %3183 = vmatpush.msra.mxu0 0.0
    %3184 = vmatpush.msra.mxu0 0.0
    %3185 = vmatpush.msra.mxu0 0.0
    %3186 = vmatpush.msra.mxu0 0.0
    %3187 = vmatpush.msra.mxu0 0.0
    %3188 = vmatpush.msra.mxu0 0.0
    %3189 = vmatpush.msra.mxu0 %v3174
    %3190 = vmatpush.msra.mxu0 %v3173
    %3191 = vmatmul.f32.gmra.mxu0 %v3128
    %v3192 = vpop.f32.mrf.mxu0
    %v3193 = vadd.f32 0.0, %v3192
    %3194 = vmatmul.f32.gmra.mxu0 %v3131
    %v3195 = vpop.f32.mrf.mxu0
    %v3196 = vadd.f32 0.0, %v3195
    %3197 = vmatmul.f32.gmra.mxu0 %v3134
    %v3198 = vpop.f32.mrf.mxu0
    %v3199 = vadd.f32 0.0, %v3198
    %3200 = vmatmul.f32.gmra.mxu0 %v3137
    %v3201 = vpop.f32.mrf.mxu0
    %v3202 = vadd.f32 0.0, %v3201
    %3203 = vdwg.mxu0
    %v3204 = vadd.f32 %v3120, %v3193
    %v3205 = vadd.f32 %v3121, %v3196
    %v3206 = vadd.f32 %v3122, %v3199
    %v3207 = vadd.f32 %v3123, %v3202
    %s3208 = scalar_lea.vmem %s13, 48
    %v3209 = vld [vmem:[%s3208] sm:$0xff]
    %v3210 = vld [vmem:[%s3208 + $0x8] sm:$0xff]
    %v3212 = vsel %vm2557, %v2940, 0
    %v3215 = vsel %vm2557, %v2941, 0
    %v3218 = vsel %vm2557, %v2948, 0
    %v3221 = vsel %vm2557, %v2949, 0
    %3223 = vmatpush.msra.mxu0 0.0
    %3224 = vmatpush.msra.mxu0 0.0
    %3225 = vmatpush.msra.mxu0 0.0
    %3226 = vmatpush.msra.mxu0 0.0
    %3227 = vmatpush.msra.mxu0 0.0
    %3228 = vmatpush.msra.mxu0 0.0
    %3229 = vmatpush.msra.mxu0 0.0
    %3230 = vmatpush.msra.mxu0 0.0
    %3231 = vmatpush.msra.mxu0 0.0
    %3232 = vmatpush.msra.mxu0 0.0
    %3233 = vmatpush.msra.mxu0 0.0
    %3234 = vmatpush.msra.mxu0 0.0
    %3235 = vmatpush.msra.mxu0 0.0
    %3236 = vmatpush.msra.mxu0 0.0
    %3237 = vmatpush.msra.mxu0 %v3210
    %3238 = vmatpush.msra.mxu0 %v3209
    %3239 = vmatmul.f32.gmra.mxu0 %v3212
    %v3240 = vpop.f32.mrf.mxu0
    %v3241 = vadd.f32 0.0, %v3240
    %3242 = vmatmul.f32.gmra.mxu0 %v3215
    %v3243 = vpop.f32.mrf.mxu0
    %v3244 = vadd.f32 0.0, %v3243
    %3245 = vmatmul.f32.gmra.mxu0 %v3218
    %v3246 = vpop.f32.mrf.mxu0
    %v3247 = vadd.f32 0.0, %v3246
    %3248 = vmatmul.f32.gmra.mxu0 %v3221
    %v3249 = vpop.f32.mrf.mxu0
    %v3250 = vadd.f32 0.0, %v3249
    %3251 = vdwg.mxu0
    %v3252 = vadd.f32 %v3168, %v3241
    %v3253 = vadd.f32 %v3169, %v3244
    %v3254 = vadd.f32 %v3170, %v3247
    %v3255 = vadd.f32 %v3171, %v3250
    %s3256 = scalar_lea.vmem [#allocation13], 48
    %v3257 = vld [vmem:[%s3256] sm:$0xff]
    %v3258 = vld [vmem:[%s3256 + $0x8] sm:$0xff]
    %3259 = vmatpush.msra.mxu0 0.0
    %3260 = vmatpush.msra.mxu0 0.0
    %3261 = vmatpush.msra.mxu0 0.0
    %3262 = vmatpush.msra.mxu0 0.0
    %3263 = vmatpush.msra.mxu0 0.0
    %3264 = vmatpush.msra.mxu0 0.0
    %3265 = vmatpush.msra.mxu0 0.0
    %3266 = vmatpush.msra.mxu0 0.0
    %3267 = vmatpush.msra.mxu0 0.0
    %3268 = vmatpush.msra.mxu0 0.0
    %3269 = vmatpush.msra.mxu0 0.0
    %3270 = vmatpush.msra.mxu0 0.0
    %3271 = vmatpush.msra.mxu0 0.0
    %3272 = vmatpush.msra.mxu0 0.0
    %3273 = vmatpush.msra.mxu0 %v3258
    %3274 = vmatpush.msra.mxu0 %v3257
    %3275 = vmatmul.f32.gmra.mxu0 %v3212
    %v3276 = vpop.f32.mrf.mxu0
    %v3277 = vadd.f32 0.0, %v3276
    %3278 = vmatmul.f32.gmra.mxu0 %v3215
    %v3279 = vpop.f32.mrf.mxu0
    %v3280 = vadd.f32 0.0, %v3279
    %3281 = vmatmul.f32.gmra.mxu0 %v3218
    %v3282 = vpop.f32.mrf.mxu0
    %v3283 = vadd.f32 0.0, %v3282
    %3284 = vmatmul.f32.gmra.mxu0 %v3221
    %v3285 = vpop.f32.mrf.mxu0
    %v3286 = vadd.f32 0.0, %v3285
    %3287 = vdwg.mxu0
    %v3288 = vadd.f32 %v3204, %v3277
    %v3289 = vadd.f32 %v3205, %v3280
    %v3290 = vadd.f32 %v3206, %v3283
    %v3291 = vadd.f32 %v3207, %v3286
    %v3292 = vxor.u32 %v3288, 2147483648
    %v3293 = vxor.u32 %v3289, 2147483648
    %v3294 = vxor.u32 %v3290, 2147483648
    %v3295 = vxor.u32 %v3291, 2147483648
    %v3296 = vmul.f32 %v3292, 1.442695
    %v3297 = vpow.pop %v3296
    %v3298 = vmul.f32 %v3293, 1.442695
    %v3299 = vpow.pop %v3298
    %v3300 = vmul.f32 %v3294, 1.442695
    %v3301 = vpow.pop %v3300
    %v3302 = vmul.f32 %v3295, 1.442695
    %v3303 = vpow.pop %v3302
    %v3304 = vadd.f32 %v3297, 1.0
    %v3305 = vadd.f32 %v3299, 1.0
    %v3306 = vadd.f32 %v3301, 1.0
    %v3307 = vadd.f32 %v3303, 1.0
    %v3308 = vrcp.pop %v3304
    %v3309 = vmul.f32 %v3304, %v3308
    %v3310 = vsub.f32 1.0, %v3309
    %v3311 = vmul.f32 %v3308, %v3310
    %v3312 = vadd.f32 %v3308, %v3311
    %vm3313 = vweird.f32 %v3304
    %vm3314 = vweird.f32 %v3308
    %vm3315 = vmor %vm3313, %vm3314
    %v3316 = vsel %vm3315, %v3308, %v3312
    %v3317 = vand.u32 2147483647, %v3304
    %vm3318 = vcmp.eq.f32.partialorder %v3317, 8.507059e+37
    %v3319 = vand.u32 %v3304, 2147483648
    %v3320 = vor.u32 1.1754944e-38, %v3319
    %v3321 = vsel %vm3318, %v3320, %v3316
    %v3322 = vmul.f32 1.0, %v3321
    %v3323 = vrcp.pop %v3305
    %v3324 = vmul.f32 %v3305, %v3323
    %v3325 = vsub.f32 1.0, %v3324
    %v3326 = vmul.f32 %v3323, %v3325
    %v3327 = vadd.f32 %v3323, %v3326
    %vm3328 = vweird.f32 %v3305
    %vm3329 = vweird.f32 %v3323
    %vm3330 = vmor %vm3328, %vm3329
    %v3331 = vsel %vm3330, %v3323, %v3327
    %v3332 = vand.u32 2147483647, %v3305
    %vm3333 = vcmp.eq.f32.partialorder %v3332, 8.507059e+37
    %v3334 = vand.u32 %v3305, 2147483648
    %v3335 = vor.u32 1.1754944e-38, %v3334
    %v3336 = vsel %vm3333, %v3335, %v3331
    %v3337 = vmul.f32 1.0, %v3336
    %v3338 = vrcp.pop %v3306
    %v3339 = vmul.f32 %v3306, %v3338
    %v3340 = vsub.f32 1.0, %v3339
    %v3341 = vmul.f32 %v3338, %v3340
    %v3342 = vadd.f32 %v3338, %v3341
    %vm3343 = vweird.f32 %v3306
    %vm3344 = vweird.f32 %v3338
    %vm3345 = vmor %vm3343, %vm3344
    %v3346 = vsel %vm3345, %v3338, %v3342
    %v3347 = vand.u32 2147483647, %v3306
    %vm3348 = vcmp.eq.f32.partialorder %v3347, 8.507059e+37
    %v3349 = vand.u32 %v3306, 2147483648
    %v3350 = vor.u32 1.1754944e-38, %v3349
    %v3351 = vsel %vm3348, %v3350, %v3346
    %v3352 = vmul.f32 1.0, %v3351
    %v3353 = vrcp.pop %v3307
    %v3354 = vmul.f32 %v3307, %v3353
    %v3355 = vsub.f32 1.0, %v3354
    %v3356 = vmul.f32 %v3353, %v3355
    %v3357 = vadd.f32 %v3353, %v3356
    %vm3358 = vweird.f32 %v3307
    %vm3359 = vweird.f32 %v3353
    %vm3360 = vmor %vm3358, %vm3359
    %v3361 = vsel %vm3360, %v3353, %v3357
    %v3362 = vand.u32 2147483647, %v3307
    %vm3363 = vcmp.eq.f32.partialorder %v3362, 8.507059e+37
    %v3364 = vand.u32 %v3307, 2147483648
    %v3365 = vor.u32 1.1754944e-38, %v3364
    %v3366 = vsel %vm3363, %v3365, %v3361
    %v3367 = vmul.f32 1.0, %v3366
    %v3368 = vmul.f32 %v3252, %v3322
    %v3369 = vmul.f32 %v3253, %v3337
    %v3370 = vmul.f32 %v3254, %v3352
    %v3371 = vmul.f32 %v3255, %v3367
    %v3372 = vld [vmem:[#allocation17] sm:$0xff]
    %v3373 = vld [vmem:[#allocation17 + $0x8] sm:$0xff]
    %v3374 = vld [vmem:[#allocation19] sm:$0xff]
    %v3375 = vld [vmem:[#allocation19 + $0x8] sm:$0xff]
    %v3376 = vsel %vm2557, %v3368, 0.0
    %3377 = vadd.xlane.f32.xlu0 %v3376
    %v3378 = vpop.xlane.xlu0 %3377
    %v3379 = vsel %vm2557, %v3369, 0.0
    %3380 = vadd.xlane.f32.xlu0 %v3379
    %v3381 = vpop.xlane.xlu0 %3380
    %v3382 = vsel %vm2557, %v3370, 0.0
    %3383 = vadd.xlane.f32.xlu0 %v3382
    %v3384 = vpop.xlane.xlu0 %3383
    %v3385 = vsel %vm2557, %v3371, 0.0
    %3386 = vadd.xlane.f32.xlu0 %v3385
    %v3387 = vpop.xlane.xlu0 %3386
    %v3388 = vadd.f32 %v3378, %v3381
    %v3389 = vrot.slane %v3388, 4
    %v3390 = vadd.f32 %v3388, %v3389
    %v3391 = vrot.slane %v3390, 2
    %v3392 = vadd.f32 %v3390, %v3391
    %v3393 = vrot.slane %v3392, 1
    %v3394 = vadd.f32 %v3392, %v3393
    %v3395 = vadd.f32 %v3384, %v3387
    %v3396 = vrot.slane %v3395, 4
    %v3397 = vadd.f32 %v3395, %v3396
    %v3398 = vrot.slane %v3397, 2
    %v3399 = vadd.f32 %v3397, %v3398
    %v3400 = vrot.slane %v3399, 1
    %v3401 = vadd.f32 %v3399, %v3400
    %v3402 = vmul.f32 %v3394, 0.00390625
    %v3403 = vmul.f32 %v3401, 0.00390625
    %v3404 = vsub.f32 %v3368, %v3402
    %v3405 = vsub.f32 %v3369, %v3402
    %v3406 = vsub.f32 %v3370, %v3403
    %v3407 = vsub.f32 %v3371, %v3403
    %v3408 = vmul.f32 %v3404, %v3404
    %v3409 = vmul.f32 %v3405, %v3405
    %v3410 = vmul.f32 %v3406, %v3406
    %v3411 = vmul.f32 %v3407, %v3407
    %v3412 = vsel %vm2557, %v3408, 0.0
    %3413 = vadd.xlane.f32.xlu0 %v3412
    %v3414 = vpop.xlane.xlu0 %3413
    %v3415 = vsel %vm2557, %v3409, 0.0
    %3416 = vadd.xlane.f32.xlu0 %v3415
    %v3417 = vpop.xlane.xlu0 %3416
    %v3418 = vsel %vm2557, %v3410, 0.0
    %3419 = vadd.xlane.f32.xlu0 %v3418
    %v3420 = vpop.xlane.xlu0 %3419
    %v3421 = vsel %vm2557, %v3411, 0.0
    %3422 = vadd.xlane.f32.xlu0 %v3421
    %v3423 = vpop.xlane.xlu0 %3422
    %v3424 = vadd.f32 %v3414, %v3417
    %v3425 = vrot.slane %v3424, 4
    %v3426 = vadd.f32 %v3424, %v3425
    %v3427 = vrot.slane %v3426, 2
    %v3428 = vadd.f32 %v3426, %v3427
    %v3429 = vrot.slane %v3428, 1
    %v3430 = vadd.f32 %v3428, %v3429
    %v3431 = vadd.f32 %v3420, %v3423
    %v3432 = vrot.slane %v3431, 4
    %v3433 = vadd.f32 %v3431, %v3432
    %v3434 = vrot.slane %v3433, 2
    %v3435 = vadd.f32 %v3433, %v3434
    %v3436 = vrot.slane %v3435, 1
    %v3437 = vadd.f32 %v3435, %v3436
    %v3438 = vmul.f32 %v3430, 0.00390625
    %v3439 = vmul.f32 %v3437, 0.00390625
    %v3440 = vadd.f32 %v3438, 1e-12
    %v3441 = vadd.f32 %v3439, 1e-12
    %v3442 = vrsqrt.pop %v3440
    %v3443 = vmul.f32 %v3442, %v3440
    %v3444 = vmul.f32 %v3443, %v3442
    %v3445 = vmul.f32 0.5, %v3444
    %v3446 = vsub.f32 1.5, %v3445
    %v3447 = vmul.f32 %v3442, %v3446
    %vm3448 = vweird.f32 %v3440
    %vm3449 = vweird.f32 %v3442
    %vm3450 = vmor %vm3448, %vm3449
    %v3451 = vsel %vm3450, %v3442, %v3447
    %v3452 = vrsqrt.pop %v3441
    %v3453 = vmul.f32 %v3452, %v3441
    %v3454 = vmul.f32 %v3453, %v3452
    %v3455 = vmul.f32 0.5, %v3454
    %v3456 = vsub.f32 1.5, %v3455
    %v3457 = vmul.f32 %v3452, %v3456
    %vm3458 = vweird.f32 %v3441
    %vm3459 = vweird.f32 %v3452
    %vm3460 = vmor %vm3458, %vm3459
    %v3461 = vsel %vm3460, %v3452, %v3457
    %v3462 = vmul.f32 %v3404, %v3451
    %v3463 = vmul.f32 %v3405, %v3451
    %v3464 = vmul.f32 %v3406, %v3461
    %v3465 = vmul.f32 %v3407, %v3461
    %v3466 = vmul.f32 %v3462, %v3372
    %v3467 = vmul.f32 %v3463, %v3373
    %v3468 = vmul.f32 %v3464, %v3372
    %v3469 = vmul.f32 %v3465, %v3373
    %v3470 = vadd.f32 %v3466, %v3374
    %v3471 = vadd.f32 %v3467, %v3375
    %v3472 = vadd.f32 %v3468, %v3374
    %v3473 = vadd.f32 %v3469, %v3375
    %v3474 = vld [vmem:[#allocation20] sm:$0xff]
    %v3475 = vld [vmem:[#allocation20 + $0x8] sm:$0xff]
    %v3476 = vld [vmem:[#allocation22] sm:$0x1]
    %v3478 = vperm.slane %v3476, 0
    %v3481 = vsel %vm2557, %v3470, 0
    %v3484 = vsel %vm2557, %v3471, 0
    %v3487 = vsel %vm2557, %v3472, 0
    %v3490 = vsel %vm2557, %v3473, 0
    %3492 = vmatpush.msra.mxu0 0.0
    %3493 = vmatpush.msra.mxu0 0.0
    %3494 = vmatpush.msra.mxu0 0.0
    %3495 = vmatpush.msra.mxu0 0.0
    %3496 = vmatpush.msra.mxu0 0.0
    %3497 = vmatpush.msra.mxu0 0.0
    %3498 = vmatpush.msra.mxu0 0.0
    %3499 = vmatpush.msra.mxu0 0.0
    %3500 = vmatpush.msra.mxu0 0.0
    %3501 = vmatpush.msra.mxu0 0.0
    %3502 = vmatpush.msra.mxu0 0.0
    %3503 = vmatpush.msra.mxu0 0.0
    %3504 = vmatpush.msra.mxu0 0.0
    %3505 = vmatpush.msra.mxu0 0.0
    %3506 = vmatpush.msra.mxu0 %v3475
    %3507 = vmatpush.msra.mxu0 %v3474
    %3508 = vmatmul.f32.gmra.mxu0 %v3481
    %v3509 = vpop.f32.mrf.mxu0
    %v3510 = vadd.f32 %v3478, %v3509
    %3511 = vmatmul.f32.gmra.mxu0 %v3484
    %v3512 = vpop.f32.mrf.mxu0
    %v3513 = vadd.f32 %v3478, %v3512
    %3514 = vmatmul.f32.gmra.mxu0 %v3487
    %v3515 = vpop.f32.mrf.mxu0
    %v3516 = vadd.f32 %v3478, %v3515
    %3517 = vmatmul.f32.gmra.mxu0 %v3490
    %v3518 = vpop.f32.mrf.mxu0
    %v3519 = vadd.f32 %v3478, %v3518
    %3520 = vdwg.mxu0
    %v3521 = vmax.f32 %v3510, 0.0
    %v3522 = vmax.f32 %v3513, 0.0
    %v3523 = vmax.f32 %v3516, 0.0
    %v3524 = vmax.f32 %v3519, 0.0
    %v3525 = vld [vmem:[#allocation23] sm:$0x1]
    %v3527 = vperm.slane %v3525, 0
    %v3529 = vmul.f32 %v3521, %v3527
    %v3530 = vmul.f32 %v3522, %v3527
    %v3531 = vmul.f32 %v3523, %v3527
    %v3532 = vmul.f32 %v3524, %v3527
    %v3533 = vsel %vm2557, %v3529, 0.0
    %3534 = vadd.xlane.f32.xlu0 %v3533
    %v3535 = vpop.xlane.xlu0 %3534
    %v3536 = vsel %vm2557, %v3530, 0.0
    %3537 = vadd.xlane.f32.xlu0 %v3536
    %v3538 = vpop.xlane.xlu0 %3537
    %v3539 = vsel %vm2557, %v3531, 0.0
    %3540 = vadd.xlane.f32.xlu0 %v3539
    %v3541 = vpop.xlane.xlu0 %3540
    %v3542 = vsel %vm2557, %v3532, 0.0
    %3543 = vadd.xlane.f32.xlu0 %v3542
    %v3544 = vpop.xlane.xlu0 %3543
    %v3545 = vadd.f32 %v3535, %v3538
    %v3546 = vrot.slane %v3545, 4
    %v3547 = vadd.f32 %v3545, %v3546
    %v3548 = vrot.slane %v3547, 2
    %v3549 = vadd.f32 %v3547, %v3548
    %v3550 = vrot.slane %v3549, 1
    %v3551 = vadd.f32 %v3549, %v3550
    %v3552 = vadd.f32 %v3541, %v3544
    %v3553 = vrot.slane %v3552, 4
    %v3554 = vadd.f32 %v3552, %v3553
    %v3555 = vrot.slane %v3554, 2
    %v3556 = vadd.f32 %v3554, %v3555
    %v3557 = vrot.slane %v3556, 1
    %v3558 = vadd.f32 %v3556, %v3557
    %v3559 = vld [vmem:[#allocation2] sm:$0x1]
    %v3561 = vperm.slane %v3559, 0
    %v3563 = vadd.f32 %v3551, %v3561
    %v3564 = vadd.f32 %v3558, %v3561
    %3566 = vset.pattern.permute.xlu0 0
    %3567 = vperm.xlu0 %3566, %v3563
    %v3568 = vpop.permute.xlu0 %3567
    %3570 = vset.pattern.permute.xlu0 0
    %3571 = vperm.xlu0 %3570, %v3564
    %v3572 = vpop.permute.xlu0 %3571
    %v3573 = vrot.slane %v3572, 7
    %v3574 = vsel %vm297, %v3573, %v3568
    %3576 = vst [vmem:[%s23] sm:$0x3] %v3574
    // Predicated region
    $region150: #{stgcn_forward.1} parent=1 // pred_check
      _
    $region151: #{stgcn_forward.1} parent=1 // pred_check_branch
      %3578 = sbr.rel (0) target = $region153
    $region152: #{stgcn_forward.1} parent=1 // pred_region
      _
    $region153: #{stgcn_forward.1} parent=1 // pred_fallthru
      _
    // Predicated region
    $region154: #{stgcn_forward.1} parent=1 // pred_check
      _
    $region155: #{stgcn_forward.1} parent=1 // pred_check_branch
      %3580 = sbr.rel (0) target = $region157
    $region156: #{stgcn_forward.1} parent=1 // pred_region
      _
    $region157: #{stgcn_forward.1} parent=1 // pred_fallthru
      _
    %3581 = vsyncpa [#allocation4], 1
    %3582 = vsyncpa [#allocation6], 1
    %3583 = vsyncpa [#allocation9], 1
    %3584 = vsyncpa [#allocation12], 1
    %3585 = vsyncpa [#allocation15], 1
    %3586 = vsyncpa [#allocation18], 1
    %3587 = vsyncpa [#allocation21], 1
    %3588 = vsyncpa [#allocation24], 1

</llo_original>
